<compile_context>
chip_gen: v7x
topology: tpu7x:2x2x1
jax: 0.10.0
libtpu: 0.0.40
codegen_flags: <defaults>
</compile_context>

<pallas_src>
import functools

import jax
import jax.numpy as jnp
from jax.experimental import pallas as pl
from jax.experimental.pallas import tpu as pltpu

FEAT = 2048          # in/out/hidden feature dim of both Linears
BN_EPS = 1e-5


def _net_kernel(x_ref, w1t_ref, gamma_ref, beta_ref, w2t_ref, o_ref):
    """Grid = (core_split, n_inner); hidden tile index = c * n_inner + j.

    Per hidden tile:
      h   = x @ W1t[:, tile]                       (B, th)   fc1 slab (bias dropped,
                                                              cancels in training-mode BN)
      bn  = batch-norm over the batch axis (exact: stats are per-feature)
      r   = relu(bn)
      o  += r @ W2t[tile, :]                       (B, FEAT) fc2 partial
    o_ref is the grid-resident partial sum for this core's slice of the hidden
    dim; fc2's bias and the cross-core combine happen in the wrapper.
    """
    c = pl.program_id(0)
    j = pl.program_id(1)
    n_inner = pl.num_programs(1)
    tile_idx = c * n_inner + j

    @pl.when(j == 0)
    def _():
        o_ref[...] = jnp.zeros_like(o_ref)

    # fc1 slab: (B, FEAT) @ (FEAT, th) -> (B, th); weights stream to the MXU in
    # their stored dtype (bf16 default), accumulation in f32.
    h = jnp.dot(x_ref[...], w1t_ref[...], preferred_element_type=jnp.float32)
    # fc1 bias intentionally omitted: constant per-feature shift cancels exactly
    # in training-mode BatchNorm's batch-mean subtraction.

    # BatchNorm1d, training-mode batch statistics (biased variance), f32.
    mean = jnp.mean(h, axis=0, keepdims=True)
    cent = h - mean
    var = jnp.mean(cent * cent, axis=0, keepdims=True)

    # Resident gamma/beta, one (1, th) row per hidden tile; fold gamma into the
    # rsqrt scale so the per-element work is a single fma.
    g = gamma_ref[pl.ds(tile_idx, 1), :]          # (1, th)
    b = beta_ref[pl.ds(tile_idx, 1), :]           # (1, th)
    scale = g * jax.lax.rsqrt(var + BN_EPS)       # (1, th)
    hn = cent * scale + b

    # ReLU, then cast once to the weight dtype so fc2 also runs the native
    # (bf16) MXU path with f32 accumulation.
    hn = jnp.maximum(hn, 0.0).astype(w2t_ref.dtype)

    # fc2 partial contraction, accumulated directly into the resident output.
    o_ref[...] += jnp.dot(hn, w2t_ref[...], preferred_element_type=jnp.float32)


def prepare_params(w1, w2, *, weights_dtype=jnp.bfloat16):
    """One-time, off-hot-path weight prep.

    Converts PyTorch (out_features, in_features) weights to (in, out) layout so
    the kernel streams contiguous slabs with NO per-call transpose.  bf16
    storage (default) halves weight HBM traffic; pass jnp.float32 for exact
    module semantics.
    """
    w1t = jnp.asarray(w1.T, dtype=weights_dtype)   # (in=2048, out=2048)
    w2t = jnp.asarray(w2.T, dtype=weights_dtype)   # (in=2048, out=2048)
    return w1t, w2t


@functools.partial(jax.jit, static_argnames=("tile_h", "core_split"))
def _net_forward_impl(x, w1t, gamma, beta, w2t, b2, *, tile_h, core_split):
    B, F = x.shape
    assert F == FEAT
    assert FEAT % (core_split * tile_h) == 0
    n_inner = FEAT // (core_split * tile_h)   # reduction steps per core
    n_tiles = core_split * n_inner            # total hidden tiles

    # Cast activations once so the kernel's fc1 dot is a pure native-dtype MXU op.
    x_in = x.astype(w1t.dtype)
    gr = gamma.astype(jnp.float32).reshape(n_tiles, tile_h)
    br = beta.astype(jnp.float32).reshape(n_tiles, tile_h)

    wbytes = w1t.size * w1t.dtype.itemsize + w2t.size * w2t.dtype.itemsize
    cost = pl.CostEstimate(
        flops=4 * B * FEAT * FEAT,                      # two (B,2048)x(2048,2048) matmuls
        transcendentals=FEAT,                           # rsqrt per feature
        bytes_accessed=wbytes
        + B * FEAT * x_in.dtype.itemsize
        + (core_split * B * FEAT + 3 * FEAT) * 4,
    )

    partials = pl.pallas_call(
        _net_kernel,
        out_shape=jax.ShapeDtypeStruct((core_split, B, FEAT), jnp.float32),
        grid_spec=pltpu.PrefetchScalarGridSpec(
            num_scalar_prefetch=0,
            grid=(core_split, n_inner),
            in_specs=[
                pl.BlockSpec((B, FEAT), lambda c, j: (0, 0)),                     # x (resident)
                pl.BlockSpec((FEAT, tile_h), lambda c, j: (0, c * n_inner + j)),  # W1t column slab
                pl.BlockSpec((n_tiles, tile_h), lambda c, j: (0, 0)),             # gamma (resident)
                pl.BlockSpec((n_tiles, tile_h), lambda c, j: (0, 0)),             # beta  (resident)
                pl.BlockSpec((tile_h, FEAT), lambda c, j: (c * n_inner + j, 0)),  # W2t row slab
            ],
            # Per-core resident partial accumulator (leading dim squeezed).
            out_specs=pl.BlockSpec((None, B, FEAT), lambda c, j: (c, 0, 0)),
        ),
        compiler_params=pltpu.CompilerParams(
            # c-axis shards across the 2 TensorCores on v7x (size 1 elsewhere);
            # the hidden-tile axis is a reduction into the resident output.
            # TODO(synk): if xprof shows the c axis not sharding on v7x, switch
            # this axis to pltpu.CORE_PARALLEL.
            dimension_semantics=("parallel", "arbitrary"),
            vmem_limit_bytes=40 * 1024 * 1024,
        ),
        cost_estimate=cost,
    )(x_in, w1t, gr, br, w2t)

    # Tiny epilogue: combine the per-core partials (64 KiB each) and add fc2's
    # bias exactly once.
    return jnp.sum(partials, axis=0) + b2


def net_forward(x, w1t, gamma, beta, w2t, b2, *, tile_h=None, core_split=None):
    """x: (B, 2048).  w1t/w2t: (in, out) layout from prepare_params().

    Returns (B, 2048) f32.  Defaults: core_split=2 only on v7x (2 TC/chip),
    tile_h=1024 for bf16 weights / 512 for f32.
    """
    if core_split is None:
        try:
            kind = jax.devices()[0].device_kind.lower()
        except Exception:  # pragma: no cover - defensive
            kind = ""
        core_split = 2 if "v7" in kind else 1
    if tile_h is None:
        tile_h = 1024 if w1t.dtype == jnp.bfloat16 else 512
    while FEAT % (core_split * tile_h) != 0:
        tile_h //= 2
    return _net_forward_impl(x, w1t, gamma, beta, w2t, b2,
                             tile_h=int(tile_h), core_split=int(core_split))


def _reference(x, w1, b1, gamma, beta, w2, b2):
    h = x @ w1.T + b1
    mean = h.mean(axis=0, keepdims=True)
    var = ((h - mean) ** 2).mean(axis=0, keepdims=True)
    h = (h - mean) / jnp.sqrt(var + BN_EPS) * gamma + beta
    h = jnp.maximum(h, 0.0)
    return jnp.dot(h, w2.T, precision=jax.lax.Precision.HIGHEST) + b2


if __name__ == "__main__":
    B = 8  # small batch (>= 2 required for BatchNorm training-mode stats)

    key = jax.random.PRNGKey(0)
    kx, kw1, kb1, kw2, kb2 = jax.random.split(key, 5)

    x = jax.random.normal(kx, (B, FEAT), dtype=jnp.float32)

    # fc1/fc2 weights re-initialized N(0, 0.001) as in the module's __init__.
    w1 = 0.001 * jax.random.normal(kw1, (FEAT, FEAT), dtype=jnp.float32)
    w2 = 0.001 * jax.random.normal(kw2, (FEAT, FEAT), dtype=jnp.float32)
    # Linear biases keep PyTorch's default U(-1/sqrt(in), 1/sqrt(in)) init.
    # (b1 is only used by the reference: it cancels exactly through training-
    #  mode BatchNorm, so the kernel never streams it.)
    bound = 1.0 / jnp.sqrt(jnp.float32(FEAT))
    b1 = jax.random.uniform(kb1, (FEAT,), jnp.float32, -bound, bound)
    b2 = jax.random.uniform(kb2, (FEAT,), jnp.float32, -bound, bound)
    # BatchNorm1d default affine params.
    gamma = jnp.ones((FEAT,), jnp.float32)
    beta = jnp.zeros((FEAT,), jnp.float32)

    # ---- f32 weights: exact module semantics --------------------------------
    w1t_f32, w2t_f32 = prepare_params(w1, w2, weights_dtype=jnp.float32)
    out_f32 = jax.block_until_ready(
        net_forward(x, w1t_f32, gamma, beta, w2t_f32, b2))
    ref_f32 = _reference(x, w1, b1, gamma, beta, w2, b2)
    assert out_f32.shape == (B, FEAT)
    assert jnp.allclose(out_f32, ref_f32, rtol=1e-3, atol=1e-3), \
        "f32 mismatch vs reference"

    # ---- bf16 weights (default): half the weight HBM traffic ----------------
    # Validated against the same math evaluated with bf16-quantized weights/x.
    w1t_bf, w2t_bf = prepare_params(w1, w2)          # bf16 by default
    out_bf = jax.block_until_ready(
        net_forward(x, w1t_bf, gamma, beta, w2t_bf, b2))
    x_q = x.astype(jnp.bfloat16).astype(jnp.float32)
    ref_bf = _reference(x_q, w1t_bf.astype(jnp.float32).T, b1, gamma, beta,
                        w2t_bf.astype(jnp.float32).T, b2)
    assert jnp.allclose(out_bf, ref_bf, rtol=2e-3, atol=2e-3), \
        "bf16 mismatch vs bf16-quantized reference"

    print("KERNEL_OK")
</pallas_src>

<mosaic_0001>
module attributes {stable_mosaic.version = 11 : i64} {
  func.func @_net_kernel(%arg0: i32, %arg1: i32, %arg2: memref<8x2048xf32, #tpu.memory_space<vmem>>, %arg3: memref<2048x512xf32, #tpu.memory_space<vmem>>, %arg4: memref<4x512xf32, #tpu.memory_space<vmem>>, %arg5: memref<4x512xf32, #tpu.memory_space<vmem>>, %arg6: memref<512x2048xf32, #tpu.memory_space<vmem>>, %arg7: memref<1x8x2048xf32, #tpu.memory_space<vmem>>) attributes {dimension_semantics = [#tpu.dimension_semantics<parallel>, #tpu.dimension_semantics<arbitrary>], iteration_bounds = array<i64: 1, 4>, scalar_prefetch = 0 : i64, scratch_operands = 0 : i64, tpu.core_type = #tpu.core_type<tc>, window_params = [{pipeline_mode = #tpu.pipeline_mode<synchronous>, transform_indices = @transform_0, window_bounds = array<i64: 8, 2048>}, {transform_indices = @transform_1, window_bounds = array<i64: 2048, 512>}, {pipeline_mode = #tpu.pipeline_mode<synchronous>, transform_indices = @transform_2, window_bounds = array<i64: 4, 512>}, {pipeline_mode = #tpu.pipeline_mode<synchronous>, transform_indices = @transform_3, window_bounds = array<i64: 4, 512>}, {transform_indices = @transform_4, window_bounds = array<i64: 512, 2048>}, {transform_indices = @transform_5, window_bounds = array<i64: 1, 8, 2048>}]} {
    %c4_i32 = arith.constant 4 : i32
    %0 = arith.muli %arg0, %c4_i32 : i32
    %1 = arith.addi %0, %arg1 : i32
    %c0_i32 = arith.constant 0 : i32
    %2 = arith.cmpi eq, %arg1, %c0_i32 : i32
    %3 = arith.extui %2 : i1 to i32
    %c0_i32_0 = arith.constant 0 : i32
    %4 = arith.cmpi ne, %3, %c0_i32_0 : i32
    scf.if %4 {
      %cst_21 = arith.constant 0.000000e+00 : f32
      %41 = vector.broadcast %cst_21 : f32 to vector<8x2048xf32>
      %c0_22 = arith.constant 0 : index
      %c0_23 = arith.constant 0 : index
      %c0_24 = arith.constant 0 : index
      %42 = vector.load %arg7[%c0_22, %c0_23, %c0_24] : memref<1x8x2048xf32, #tpu.memory_space<vmem>>, vector<1x8x2048xf32>
      %43 = vector.shape_cast %42 : vector<1x8x2048xf32> to vector<8x2048xf32>
      %44 = vector.shape_cast %41 : vector<8x2048xf32> to vector<1x8x2048xf32>
      tpu.vector_store %arg7[%c0_22, %c0_23, %c0_24], %44 {strides = array<i32>} : memref<1x8x2048xf32, #tpu.memory_space<vmem>>, vector<1x8x2048xf32>,
    } else {
    }
    %c0 = arith.constant 0 : index
    %c0_1 = arith.constant 0 : index
    %5 = vector.load %arg2[%c0, %c0_1] : memref<8x2048xf32, #tpu.memory_space<vmem>>, vector<8x2048xf32>
    %c0_2 = arith.constant 0 : index
    %c0_3 = arith.constant 0 : index
    %6 = vector.load %arg3[%c0_2, %c0_3] : memref<2048x512xf32, #tpu.memory_space<vmem>>, vector<2048x512xf32>
    %cst = arith.constant dense<0.000000e+00> : vector<8x512xf32>
    %7 = tpu.matmul %5, %6, %cst {dimension_numbers = #tpu.dot_dimension_numbers<[1], [0], [0], [1], [0, 0, 1, 1], [], []>} : vector<8x2048xf32>, vector<2048x512xf32>, vector<8x512xf32> -> vector<8x512xf32>
    %cst_4 = arith.constant dense<0.000000e+00> : vector<512xf32>
    %8 = vector.multi_reduction <add>, %7, %cst_4 [0] : vector<8x512xf32> to vector<512xf32>
    %9 = vector.shape_cast %8 : vector<512xf32> to vector<1x512xf32>
    %cst_5 = arith.constant 8.000000e+00 : f32
    %10 = vector.broadcast %cst_5 : f32 to vector<1x512xf32>
    %11 = arith.divf %9, %10 : vector<1x512xf32>
    %12 = vector.broadcast %11 : vector<1x512xf32> to vector<8x512xf32>
    %13 = arith.subf %7, %12 : vector<8x512xf32>
    %14 = arith.mulf %13, %13 : vector<8x512xf32>
    %cst_6 = arith.constant dense<0.000000e+00> : vector<512xf32>
    %15 = vector.multi_reduction <add>, %14, %cst_6 [0] : vector<8x512xf32> to vector<512xf32>
    %16 = vector.shape_cast %15 : vector<512xf32> to vector<1x512xf32>
    %cst_7 = arith.constant 8.000000e+00 : f32
    %17 = vector.broadcast %cst_7 : f32 to vector<1x512xf32>
    %18 = arith.divf %16, %17 : vector<1x512xf32>
    %19 = arith.index_cast %1 : i32 to index
    %c0_8 = arith.constant 0 : index
    %20 = vector.load %arg4[%19, %c0_8] : memref<4x512xf32, #tpu.memory_space<vmem>>, vector<1x512xf32>
    %21 = arith.index_cast %1 : i32 to index
    %c0_9 = arith.constant 0 : index
    %22 = vector.load %arg5[%21, %c0_9] : memref<4x512xf32, #tpu.memory_space<vmem>>, vector<1x512xf32>
    %cst_10 = arith.constant 9.99999974E-6 : f32
    %23 = vector.broadcast %cst_10 : f32 to vector<1x512xf32>
    %24 = arith.addf %18, %23 : vector<1x512xf32>
    %25 = math.rsqrt %24 : vector<1x512xf32>
    %26 = arith.mulf %20, %25 : vector<1x512xf32>
    %27 = vector.broadcast %26 : vector<1x512xf32> to vector<8x512xf32>
    %28 = arith.mulf %13, %27 : vector<8x512xf32>
    %29 = vector.broadcast %22 : vector<1x512xf32> to vector<8x512xf32>
    %30 = arith.addf %28, %29 : vector<8x512xf32>
    %cst_11 = arith.constant 0.000000e+00 : f32
    %31 = vector.broadcast %cst_11 : f32 to vector<8x512xf32>
    %32 = arith.maximumf %30, %31 : vector<8x512xf32>
    %c0_12 = arith.constant 0 : index
    %c0_13 = arith.constant 0 : index
    %c0_14 = arith.constant 0 : index
    %33 = vector.load %arg7[%c0_12, %c0_13, %c0_14] : memref<1x8x2048xf32, #tpu.memory_space<vmem>>, vector<1x8x2048xf32>
    %34 = vector.shape_cast %33 : vector<1x8x2048xf32> to vector<8x2048xf32>
    %c0_15 = arith.constant 0 : index
    %c0_16 = arith.constant 0 : index
    %35 = vector.load %arg6[%c0_15, %c0_16] : memref<512x2048xf32, #tpu.memory_space<vmem>>, vector<512x2048xf32>
    %cst_17 = arith.constant dense<0.000000e+00> : vector<8x2048xf32>
    %36 = tpu.matmul %32, %35, %cst_17 {dimension_numbers = #tpu.dot_dimension_numbers<[1], [0], [0], [1], [0, 0, 1, 1], [], []>} : vector<8x512xf32>, vector<512x2048xf32>, vector<8x2048xf32> -> vector<8x2048xf32>
    %37 = arith.addf %34, %36 : vector<8x2048xf32>
    %c0_18 = arith.constant 0 : index
    %c0_19 = arith.constant 0 : index
    %c0_20 = arith.constant 0 : index
    %38 = vector.load %arg7[%c0_18, %c0_19, %c0_20] : memref<1x8x2048xf32, #tpu.memory_space<vmem>>, vector<1x8x2048xf32>
    %39 = vector.shape_cast %38 : vector<1x8x2048xf32> to vector<8x2048xf32>
    %40 = vector.shape_cast %37 : vector<8x2048xf32> to vector<1x8x2048xf32>
    tpu.vector_store %arg7[%c0_18, %c0_19, %c0_20], %40 {strides = array<i32>} : memref<1x8x2048xf32, #tpu.memory_space<vmem>>, vector<1x8x2048xf32>,
    return
  }
  func.func @transform_0(%arg0: i32, %arg1: i32) -> (i32, i32) {
    %c0_i32 = arith.constant 0 : i32
    %c0_i32_0 = arith.constant 0 : i32
    %c0_i32_1 = arith.constant 0 : i32
    return %c0_i32, %c0_i32_0 : i32, i32
  }
  func.func @transform_1(%arg0: i32, %arg1: i32) -> (i32, i32) {
    %c4_i32 = arith.constant 4 : i32
    %0 = arith.muli %arg0, %c4_i32 : i32
    %1 = arith.addi %0, %arg1 : i32
    %c0_i32 = arith.constant 0 : i32
    %c0_i32_0 = arith.constant 0 : i32
    return %c0_i32, %1 : i32, i32
  }
  func.func @transform_2(%arg0: i32, %arg1: i32) -> (i32, i32) {
    %c0_i32 = arith.constant 0 : i32
    %c0_i32_0 = arith.constant 0 : i32
    %c0_i32_1 = arith.constant 0 : i32
    return %c0_i32, %c0_i32_0 : i32, i32
  }
  func.func @transform_3(%arg0: i32, %arg1: i32) -> (i32, i32) {
    %c0_i32 = arith.constant 0 : i32
    %c0_i32_0 = arith.constant 0 : i32
    %c0_i32_1 = arith.constant 0 : i32
    return %c0_i32, %c0_i32_0 : i32, i32
  }
  func.func @transform_4(%arg0: i32, %arg1: i32) -> (i32, i32) {
    %c4_i32 = arith.constant 4 : i32
    %0 = arith.muli %arg0, %c4_i32 : i32
    %1 = arith.addi %0, %arg1 : i32
    %c0_i32 = arith.constant 0 : i32
    %c0_i32_0 = arith.constant 0 : i32
    return %1, %c0_i32 : i32, i32
  }
  func.func @transform_5(%arg0: i32, %arg1: i32) -> (i32, i32, i32) {
    %c0_i32 = arith.constant 0 : i32
    %c0_i32_0 = arith.constant 0 : i32
    %c0_i32_1 = arith.constant 0 : i32
    return %arg0, %c0_i32, %c0_i32_0 : i32, i32, i32
  }
}

</mosaic_0001>

<llo_original>
// kernel: _net_forward_impl.1
$region0: #{_net_forward_impl.1}
  #allocation0 [shape = 'u32[]', space=smem, size = 0x4, offset = 0x4, fixed_abs, tag = 'smem constant byte address 0x4 - core index']
  #allocation1 [shape = 'u32[144,128]{1,0:T(1,128)}', space=vmem, size = 0x12000, scoped, tag = 'internal scratch']
  %s0 = inlined_call_operand.hbm [shape: f32[8,2048], index: 0, kind: input, shape index: {}]
  %s1 = inlined_call_operand.hbm [shape: f32[2048,2048], index: 1, kind: input, shape index: {}]
  %s2 = inlined_call_operand.vmem [shape: f32[4,512], index: 2, kind: input, shape index: {}]
  %s3 = inlined_call_operand.vmem [shape: f32[4,512], index: 3, kind: input, shape index: {}]
  %s4 = inlined_call_operand.hbm [shape: f32[2048,2048], index: 4, kind: input, shape index: {}]
  %s5 = inlined_call_operand.vmem [shape: f32[1,8,2048], index: 5, kind: output, shape index: {}]
  %s6 = sld [smem:[#allocation0]]
  $region69: #{_net_forward_impl.1} parent=0
    _
  %s8 = ssub.s32 1, %s6
  %s9 = scalar_select 0, %s8, %s6
  $region1: #{_net_forward_impl.1} parent=0
    #allocation2 [shape = 'u8[65536]{0}', space=vmem, size = 0x10000, scoped, tag = 'input window, operand 0, single buffered']
    #allocation3 [shape = 's32[2]{0}', space=sflag, size = 0x8, scoped, tag = 'scoped memory for _net_forward_impl.1']
    #allocation4 [shape = 'u8[8388608]{0}', space=vmem, size = 0x800000, scoped, tag = 'input window, operand 1']
    #allocation5 [shape = 's32[2]{0}', space=sflag, size = 0x8, scoped, tag = 'scoped memory for _net_forward_impl.1']
    #allocation6 [shape = 'u8[8388608]{0}', space=vmem, size = 0x800000, scoped, tag = 'input window, operand 4']
    %10 = vsyncpa [#allocation3], 0
    %11 = vsyncpa [#allocation5], 0
    %s12 = scalar_lea.sflag [#allocation5], 1
    %13 = vsyncpa %s12, 0
    loop: start=0, step=1, limit=6
    $region2: #{_net_forward_impl.1} parent=1 // loop_pre_header
      _
    $region3: #{_net_forward_impl.1} parent=1 // loop_header
      %s15 = sphi 0, %s19
      %p16 = scmp.ge.s32.totalorder %s15, 6
      %s22 = sphi 0, %s34
      %s23 = sphi 0, %s30
      %s24 = sphi 0, %s22
      %s25 = sphi 0, %s23
      %s26 = sphi 0, %s24
      %s27 = sphi 0, %s25
      %s35 = sphi 0, %s35
      %s37 = sphi 0, %s35
      %s38 = sphi 0, %s37
      %s52 = sphi 0, %s38
      %s62 = sphi 0, %s64
      %s65 = sphi 0, %s62
      %s66 = sphi 0, %s65
      %s82 = sphi 0, %s66
      %s86 = sphi 0, %s86
      %s88 = sphi 0, %s86
      %s89 = sphi 0, %s88
      %s103 = sphi 0, %s89
      %s107 = sphi 0, %s107
      %s109 = sphi 0, %s107
      %s110 = sphi 0, %s109
      %s124 = sphi 0, %s110
      %s134 = sphi 0, %s136
      %s137 = sphi 0, %s134
      %s138 = sphi 0, %s137
      %s154 = sphi 0, %s138
      %s160 = sphi 0, %s162
      %s163 = sphi 0, %s160
      %s164 = sphi 0, %s163
      %s180 = sphi 0, %s164
    $region4: #{_net_forward_impl.1} parent=1 // loop_header_branch
      %18 = sbr.rel (%p16) target = $region8
    $region5: #{_net_forward_impl.1} parent=1 // loop_body
      %s20 = ssub.s32 %s15, 1
      %s21 = ssub.s32 %s15, 2
      %s28 = sadd.s32 1, %s23
      %p29 = scmp.ge.s32.totalorder %s28, 4
      %s30 = scalar_select %p29, 0, %s28
      %s31 = sadd.s32 1, %s22
      %s32 = scalar_select %p29, %s31, %s22
      %p33 = scmp.ge.s32.totalorder %s32, 1
      %s34 = scalar_select %p33, 0, %s32
      %s36 = sadd.s32 %s35, 1
      %p39 = scmp.eq.s32.totalorder %s15, 3
      %p40 = scmp.ne.s32.totalorder %s35, %s37
      %p41 = scmp.eq.s32.totalorder %s15, 0
      %p42 = por %p40, %p41
      %p43 = scmp.ne.s32.totalorder %s35, %s37
      %p44 = scmp.eq.s32.totalorder %s20, 3
      %p45 = por %p43, %p44
      %p46 = scmp.ne.s32.totalorder %s37, %s38
      %p47 = scmp.eq.s32.totalorder %s20, 0
      %p48 = por %p46, %p47
      %p49 = scmp.ne.s32.totalorder %s37, %s38
      %p50 = scmp.eq.s32.totalorder %s21, 3
      %p51 = por %p49, %p50
      %p53 = scmp.ne.s32.totalorder %s38, %s52
      %p54 = scmp.eq.s32.totalorder %s21, 0
      %p55 = por %p53, %p54
      %s56 = smul.u32 %s22, 4
      %s57 = sadd.s32 %s56, %s23
      %s58 = smul.u32 %s34, 4
      %s59 = sadd.s32 %s58, %s30
      %s60 = ssub.s32 %s57, %s59
      %p61 = scmp.eq.s32.totalorder %s60, 0
      %s63 = sadd.s32 %s62, 1
      %s64 = scalar_select %p61, %s62, %s63
      %p67 = pneg %p61
      %p68 = scmp.eq.s32.totalorder %s15, 3
      %p69 = por %p67, %p68
      %p70 = scmp.ne.s32.totalorder %s62, %s65
      %p71 = scmp.eq.s32.totalorder %s15, 0
      %p72 = por %p70, %p71
      %p73 = scmp.ne.s32.totalorder %s62, %s65
      %p74 = scmp.eq.s32.totalorder %s20, 3
      %p75 = por %p73, %p74
      %p76 = scmp.ne.s32.totalorder %s65, %s66
      %p77 = scmp.eq.s32.totalorder %s20, 0
      %p78 = por %p76, %p77
      %p79 = scmp.ne.s32.totalorder %s65, %s66
      %p80 = scmp.eq.s32.totalorder %s21, 3
      %p81 = por %p79, %p80
      %p83 = scmp.ne.s32.totalorder %s66, %s82
      %p84 = scmp.eq.s32.totalorder %s21, 0
      %p85 = por %p83, %p84
      %s87 = sadd.s32 %s86, 1
      %p90 = scmp.eq.s32.totalorder %s15, 3
      %p91 = scmp.ne.s32.totalorder %s86, %s88
      %p92 = scmp.eq.s32.totalorder %s15, 0
      %p93 = por %p91, %p92
      %p94 = scmp.ne.s32.totalorder %s86, %s88
      %p95 = scmp.eq.s32.totalorder %s20, 3
      %p96 = por %p94, %p95
      %p97 = scmp.ne.s32.totalorder %s88, %s89
      %p98 = scmp.eq.s32.totalorder %s20, 0
      %p99 = por %p97, %p98
      %p100 = scmp.ne.s32.totalorder %s88, %s89
      %p101 = scmp.eq.s32.totalorder %s21, 3
      %p102 = por %p100, %p101
      %p104 = scmp.ne.s32.totalorder %s89, %s103
      %p105 = scmp.eq.s32.totalorder %s21, 0
      %p106 = por %p104, %p105
      %s108 = sadd.s32 %s107, 1
      %p111 = scmp.eq.s32.totalorder %s15, 3
      %p112 = scmp.ne.s32.totalorder %s107, %s109
      %p113 = scmp.eq.s32.totalorder %s15, 0
      %p114 = por %p112, %p113
      %p115 = scmp.ne.s32.totalorder %s107, %s109
      %p116 = scmp.eq.s32.totalorder %s20, 3
      %p117 = por %p115, %p116
      %p118 = scmp.ne.s32.totalorder %s109, %s110
      %p119 = scmp.eq.s32.totalorder %s20, 0
      %p120 = por %p118, %p119
      %p121 = scmp.ne.s32.totalorder %s109, %s110
      %p122 = scmp.eq.s32.totalorder %s21, 3
      %p123 = por %p121, %p122
      %p125 = scmp.ne.s32.totalorder %s110, %s124
      %p126 = scmp.eq.s32.totalorder %s21, 0
      %p127 = por %p125, %p126
      %s128 = smul.u32 %s22, 4
      %s129 = sadd.s32 %s128, %s23
      %s130 = smul.u32 %s34, 4
      %s131 = sadd.s32 %s130, %s30
      %s132 = ssub.s32 %s129, %s131
      %p133 = scmp.eq.s32.totalorder %s132, 0
      %s135 = sadd.s32 %s134, 1
      %s136 = scalar_select %p133, %s134, %s135
      %p139 = pneg %p133
      %p140 = scmp.eq.s32.totalorder %s15, 3
      %p141 = por %p139, %p140
      %p142 = scmp.ne.s32.totalorder %s134, %s137
      %p143 = scmp.eq.s32.totalorder %s15, 0
      %p144 = por %p142, %p143
      %p145 = scmp.ne.s32.totalorder %s134, %s137
      %p146 = scmp.eq.s32.totalorder %s20, 3
      %p147 = por %p145, %p146
      %p148 = scmp.ne.s32.totalorder %s137, %s138
      %p149 = scmp.eq.s32.totalorder %s20, 0
      %p150 = por %p148, %p149
      %p151 = scmp.ne.s32.totalorder %s137, %s138
      %p152 = scmp.eq.s32.totalorder %s21, 3
      %p153 = por %p151, %p152
      %p155 = scmp.ne.s32.totalorder %s138, %s154
      %p156 = scmp.eq.s32.totalorder %s21, 0
      %p157 = por %p155, %p156
      %s158 = ssub.s32 %s22, %s34
      %p159 = scmp.eq.s32.totalorder %s158, 0
      %s161 = sadd.s32 %s160, 1
      %s162 = scalar_select %p159, %s160, %s161
      %p165 = pneg %p159
      %p166 = scmp.eq.s32.totalorder %s15, 3
      %p167 = por %p165, %p166
      %p168 = scmp.ne.s32.totalorder %s160, %s163
      %p169 = scmp.eq.s32.totalorder %s15, 0
      %p170 = por %p168, %p169
      %p171 = scmp.ne.s32.totalorder %s160, %s163
      %p172 = scmp.eq.s32.totalorder %s20, 3
      %p173 = por %p171, %p172
      %p174 = scmp.ne.s32.totalorder %s163, %s164
      %p175 = scmp.eq.s32.totalorder %s20, 0
      %p176 = por %p174, %p175
      %p177 = scmp.ne.s32.totalorder %s163, %s164
      %p178 = scmp.eq.s32.totalorder %s21, 3
      %p179 = por %p177, %p178
      %p181 = scmp.ne.s32.totalorder %s164, %s180
      %p182 = scmp.eq.s32.totalorder %s21, 0
      %p183 = por %p181, %p182
      %p184 = scmp.le.s32.totalorder 1, %s15
      %p185 = scmp.lt.s32.totalorder %s15, 5
      %p186 = pnand %p184, %p185
      %p187 = pneg %p186
      // Predicated region
      $region9: #{_net_forward_impl.1} parent=5 // pred_check
        _
      $region10: #{_net_forward_impl.1} parent=5 // pred_check_branch
        %189 = sbr.rel (%p186) target = $region12
      $region11: #{_net_forward_impl.1} parent=5 // pred_region
        %s190 = ssub.s32 %s15, 1
        // Predicated region
        $region13: #{_net_forward_impl.1} parent=11 // pred_check
          %p191 = pneg %p48
        $region14: #{_net_forward_impl.1} parent=11 // pred_check_branch
          %193 = sbr.rel (%p191) target = $region16
        $region15: #{_net_forward_impl.1} parent=11 // pred_region
          %s195 = ssub.s32 2048, 2048
          %196 = vsyncadd [#allocation3], %s195
          %s198 = sshll.u32 [#allocation2], 4
          %s199 = int_to_ptr.vmem [resolvable:$true] %s198
          %201 = dma.hbm_to_vmem [thread:$0]  %s0, 2048, %s199, [#allocation3]
        $region16: #{_net_forward_impl.1} parent=11 // pred_fallthru
          _
        // Predicated region
        $region17: #{_net_forward_impl.1} parent=11 // pred_check
          %p202 = pneg %p99
        $region18: #{_net_forward_impl.1} parent=11 // pred_check_branch
          %204 = sbr.rel (%p202) target = $region20
        $region19: #{_net_forward_impl.1} parent=11 // pred_region
          _
        $region20: #{_net_forward_impl.1} parent=11 // pred_fallthru
          _
        // Predicated region
        $region21: #{_net_forward_impl.1} parent=11 // pred_check
          %p205 = pneg %p120
        $region22: #{_net_forward_impl.1} parent=11 // pred_check_branch
          %207 = sbr.rel (%p205) target = $region24
        $region23: #{_net_forward_impl.1} parent=11 // pred_region
          _
        $region24: #{_net_forward_impl.1} parent=11 // pred_fallthru
          _
      $region12: #{_net_forward_impl.1} parent=5 // pred_fallthru
        _
      %p208 = scmp.lt.s32.totalorder %s15, 4
      // Predicated region
      $region25: #{_net_forward_impl.1} parent=5 // pred_check
        %p209 = pneg %p208
      $region26: #{_net_forward_impl.1} parent=5 // pred_check_branch
        %211 = sbr.rel (%p209) target = $region28
      $region27: #{_net_forward_impl.1} parent=5 // pred_region
        // Predicated region
        $region29: #{_net_forward_impl.1} parent=27 // pred_check
          %p212 = pneg %p72
        $region30: #{_net_forward_impl.1} parent=27 // pred_check_branch
          %214 = sbr.rel (%p212) target = $region32
        $region31: #{_net_forward_impl.1} parent=27 // pred_region
          %s215 = sand.u32 %s15, 1
          %s216 = scalar_lea.sflag [#allocation5], %s215
          %s217 = sand.u32 %s62, 1
          %s218 = smul.addr %s217, 8192
          %s219 = scalar_lea.vmem [#allocation4], %s218
          %s220 = smul.u32 %s22, 4
          %s221 = sadd.s32 %s220, %s23
          %s222 = smul.u32 4, %s221
          %s224 = ssub.s32 131072, 131072
          %225 = vsyncadd %s216, %s224
          %s226 = smul.addr %s222, 128
          %s227 = scalar_lea.hbm %s1, %s226
          %s228 = sshll.u32 %s219, 4
          %s229 = int_to_ptr.vmem [resolvable:$true] %s228
          %234 = dma.hbm_to_vmem [thread:$0]  %s227, 131072, %s229, %s216, 2048, 512, 32
        $region32: #{_net_forward_impl.1} parent=27 // pred_fallthru
          _
        // Predicated region
        $region33: #{_net_forward_impl.1} parent=27 // pred_check
          %p235 = pneg %p144
        $region34: #{_net_forward_impl.1} parent=27 // pred_check_branch
          %237 = sbr.rel (%p235) target = $region36
        $region35: #{_net_forward_impl.1} parent=27 // pred_region
          %s238 = sand.u32 %s15, 1
          %s239 = scalar_lea.sflag [#allocation5], %s238
          %s240 = sand.u32 %s134, 1
          %s241 = smul.addr %s240, 8192
          %s242 = scalar_lea.vmem [#allocation6], %s241
          %s243 = smul.u32 %s22, 4
          %s244 = sadd.s32 %s243, %s23
          %s245 = smul.u32 64, %s244
          %s247 = ssub.s32 131072, 131072
          %248 = vsyncadd %s239, %s247
          %s249 = smul.addr %s245, 16
          %s250 = smul.addr %s249, 128
          %s251 = scalar_lea.hbm %s4, %s250
          %s252 = sshll.u32 %s242, 4
          %s253 = int_to_ptr.vmem [resolvable:$true] %s252
          %258 = dma.hbm_to_vmem [thread:$0]  %s251, 131072, %s253, %s239, 2048, 2048, 128
        $region36: #{_net_forward_impl.1} parent=27 // pred_fallthru
          _
      $region28: #{_net_forward_impl.1} parent=5 // pred_fallthru
        _
      %p259 = scmp.le.s32.totalorder 1, %s15
      %p260 = scmp.lt.s32.totalorder %s15, 5
      %p261 = pnand %p259, %p260
      %p262 = pneg %p261
      // Predicated region
      $region37: #{_net_forward_impl.1} parent=5 // pred_check
        _
      $region38: #{_net_forward_impl.1} parent=5 // pred_check_branch
        %264 = sbr.rel (%p261) target = $region40
      $region39: #{_net_forward_impl.1} parent=5 // pred_region
        %s265 = ssub.s32 %s15, 1
        // Predicated region
        $region41: #{_net_forward_impl.1} parent=39 // pred_check
          %p266 = pneg %p48
        $region42: #{_net_forward_impl.1} parent=39 // pred_check_branch
          %268 = sbr.rel (%p266) target = $region44
        $region43: #{_net_forward_impl.1} parent=39 // pred_region
          %269 = dma.done [#allocation3], 2048
        $region44: #{_net_forward_impl.1} parent=39 // pred_fallthru
          _
        %s270 = sand.u32 %s20, 1
        %s271 = scalar_lea.sflag [#allocation5], %s270
        %s272 = sand.u32 %s65, 1
        %s273 = smul.addr %s272, 8192
        %s274 = scalar_lea.vmem [#allocation4], %s273
        // Predicated region
        $region45: #{_net_forward_impl.1} parent=39 // pred_check
          %p275 = pneg %p78
        $region46: #{_net_forward_impl.1} parent=39 // pred_check_branch
          %277 = sbr.rel (%p275) target = $region48
        $region47: #{_net_forward_impl.1} parent=39 // pred_region
          %278 = dma.done %s271, 131072
        $region48: #{_net_forward_impl.1} parent=39 // pred_fallthru
          _
        %s279 = sand.u32 %s20, 1
        %s280 = scalar_lea.sflag [#allocation5], %s279
        %s281 = sand.u32 %s137, 1
        %s282 = smul.addr %s281, 8192
        %s283 = scalar_lea.vmem [#allocation6], %s282
        // Predicated region
        $region49: #{_net_forward_impl.1} parent=39 // pred_check
          %p284 = pneg %p150
        $region50: #{_net_forward_impl.1} parent=39 // pred_check_branch
          %286 = sbr.rel (%p284) target = $region52
        $region51: #{_net_forward_impl.1} parent=39 // pred_region
          %287 = dma.done %s280, 131072
        $region52: #{_net_forward_impl.1} parent=39 // pred_fallthru
          _
        %p288 = pneg %p48
        %p289 = pneg %p45
        %s290 = sand.u32 %s20, 1
        %s291 = scalar_lea.sflag [#allocation5], %s290
        %s292 = sand.u32 %s65, 1
        %s293 = smul.addr %s292, 8192
        %s294 = scalar_lea.vmem [#allocation4], %s293
        %p295 = pneg %p78
        %p296 = pneg %p75
        %p297 = pneg %p99
        %p298 = pneg %p96
        %p299 = pneg %p120
        %p300 = pneg %p117
        %s301 = sand.u32 %s20, 1
        %s302 = scalar_lea.sflag [#allocation5], %s301
        %s303 = sand.u32 %s137, 1
        %s304 = smul.addr %s303, 8192
        %s305 = scalar_lea.vmem [#allocation6], %s304
        %p306 = pneg %p150
        %p307 = pneg %p147
        %p308 = pneg %p176
        %p309 = pneg %p173
        %p310 = scmp.lt.s32.totalorder %s24, 0
        %s311 = scalar_select %p310, %s24, 0
        %s312 = smul.addr %s311, 16
        %s313 = smul.addr %s312, 8
        %s314 = scalar_lea.vmem %s5, %s313
        %s315 = smul.u32 %s24, 4
        %s316 = sadd.s32 %s315, %s25
        %s317 = smul.u32 4, %s316
        %s318 = smul.u32 %s24, 4
        %s319 = sadd.s32 %s318, %s25
        %s320 = smul.u32 64, %s319
        %p321 = scmp.lt.s32.totalorder %s24, 0
        %s322 = scalar_select %p321, %s24, 0
        %s323 = smul.addr %s322, 16
        %s324 = smul.addr %s323, 8
        %s325 = scalar_lea.vmem %s5, %s324
        %s326 = smul.u32 %s24, 4
        %s327 = sadd.s32 %s326, %s25
        %p328 = scmp.eq.s32.totalorder %s25, 0
        // Predicated region
        $region53: #{_net_forward_impl.1} parent=39 // pred_check
          %p329 = pneg %p328
        $region54: #{_net_forward_impl.1} parent=39 // pred_check_branch
          %331 = sbr.rel (%p329) target = $region56
        $region55: #{_net_forward_impl.1} parent=39 // pred_region
          %332 = vst [vmem:[%s325] sm:$0xff] 0.0
          %333 = vst [vmem:[%s325 + $0x8] sm:$0xff] 0.0
          %334 = vst [vmem:[%s325 + $0x10] sm:$0xff] 0.0
          %335 = vst [vmem:[%s325 + $0x18] sm:$0xff] 0.0
          %336 = vst [vmem:[%s325 + $0x20] sm:$0xff] 0.0
          %337 = vst [vmem:[%s325 + $0x28] sm:$0xff] 0.0
          %338 = vst [vmem:[%s325 + $0x30] sm:$0xff] 0.0
          %339 = vst [vmem:[%s325 + $0x38] sm:$0xff] 0.0
          %340 = vst [vmem:[%s325 + $0x40] sm:$0xff] 0.0
          %341 = vst [vmem:[%s325 + $0x48] sm:$0xff] 0.0
          %342 = vst [vmem:[%s325 + $0x50] sm:$0xff] 0.0
          %343 = vst [vmem:[%s325 + $0x58] sm:$0xff] 0.0
          %344 = vst [vmem:[%s325 + $0x60] sm:$0xff] 0.0
          %345 = vst [vmem:[%s325 + $0x68] sm:$0xff] 0.0
          %346 = vst [vmem:[%s325 + $0x70] sm:$0xff] 0.0
          %347 = vst [vmem:[%s325 + $0x78] sm:$0xff] 0.0
        $region56: #{_net_forward_impl.1} parent=39 // pred_fallthru
          _
        %v348 = vld [vmem:[#allocation2] sm:$0xff]
        %v349 = vld [vmem:[#allocation2 + $0x8] sm:$0xff]
        %v350 = vld [vmem:[#allocation2 + $0x10] sm:$0xff]
        %v351 = vld [vmem:[#allocation2 + $0x18] sm:$0xff]
        %v352 = vld [vmem:[#allocation2 + $0x20] sm:$0xff]
        %v353 = vld [vmem:[#allocation2 + $0x28] sm:$0xff]
        %v354 = vld [vmem:[#allocation2 + $0x30] sm:$0xff]
        %v355 = vld [vmem:[#allocation2 + $0x38] sm:$0xff]
        %v356 = vld [vmem:[#allocation2 + $0x40] sm:$0xff]
        %v357 = vld [vmem:[#allocation2 + $0x48] sm:$0xff]
        %v358 = vld [vmem:[#allocation2 + $0x50] sm:$0xff]
        %v359 = vld [vmem:[#allocation2 + $0x58] sm:$0xff]
        %v360 = vld [vmem:[#allocation2 + $0x60] sm:$0xff]
        %v361 = vld [vmem:[#allocation2 + $0x68] sm:$0xff]
        %v362 = vld [vmem:[#allocation2 + $0x70] sm:$0xff]
        %v363 = vld [vmem:[#allocation2 + $0x78] sm:$0xff]
        %v364 = vld [vmem:[%s274] sm:$0xff]
        %v365 = vld [vmem:[%s274 + $0x8] sm:$0xff]
        %v366 = vld [vmem:[%s274 + $0x10] sm:$0xff]
        %v367 = vld [vmem:[%s274 + $0x18] sm:$0xff]
        %v368 = vld [vmem:[%s274 + $0x20] sm:$0xff]
        %v369 = vld [vmem:[%s274 + $0x28] sm:$0xff]
        %v370 = vld [vmem:[%s274 + $0x30] sm:$0xff]
        %v371 = vld [vmem:[%s274 + $0x38] sm:$0xff]
        %v372 = vld [vmem:[%s274 + $0x40] sm:$0xff]
        %v373 = vld [vmem:[%s274 + $0x48] sm:$0xff]
        %v374 = vld [vmem:[%s274 + $0x50] sm:$0xff]
        %v375 = vld [vmem:[%s274 + $0x58] sm:$0xff]
        %v376 = vld [vmem:[%s274 + $0x60] sm:$0xff]
        %v377 = vld [vmem:[%s274 + $0x68] sm:$0xff]
        %v378 = vld [vmem:[%s274 + $0x70] sm:$0xff]
        %v379 = vld [vmem:[%s274 + $0x78] sm:$0xff]
        %v380 = vld [vmem:[%s274 + $0x80] sm:$0xff]
        %v381 = vld [vmem:[%s274 + $0x88] sm:$0xff]
        %v382 = vld [vmem:[%s274 + $0x90] sm:$0xff]
        %v383 = vld [vmem:[%s274 + $0x98] sm:$0xff]
        %v384 = vld [vmem:[%s274 + $0xa0] sm:$0xff]
        %v385 = vld [vmem:[%s274 + $0xa8] sm:$0xff]
        %v386 = vld [vmem:[%s274 + $0xb0] sm:$0xff]
        %v387 = vld [vmem:[%s274 + $0xb8] sm:$0xff]
        %v388 = vld [vmem:[%s274 + $0xc0] sm:$0xff]
        %v389 = vld [vmem:[%s274 + $0xc8] sm:$0xff]
        %v390 = vld [vmem:[%s274 + $0xd0] sm:$0xff]
        %v391 = vld [vmem:[%s274 + $0xd8] sm:$0xff]
        %v392 = vld [vmem:[%s274 + $0xe0] sm:$0xff]
        %v393 = vld [vmem:[%s274 + $0xe8] sm:$0xff]
        %v394 = vld [vmem:[%s274 + $0xf0] sm:$0xff]
        %v395 = vld [vmem:[%s274 + $0xf8] sm:$0xff]
        %v396 = vld [vmem:[%s274 + $0x100] sm:$0xff]
        %v397 = vld [vmem:[%s274 + $0x108] sm:$0xff]
        %v398 = vld [vmem:[%s274 + $0x110] sm:$0xff]
        %v399 = vld [vmem:[%s274 + $0x118] sm:$0xff]
        %v400 = vld [vmem:[%s274 + $0x120] sm:$0xff]
        %v401 = vld [vmem:[%s274 + $0x128] sm:$0xff]
        %v402 = vld [vmem:[%s274 + $0x130] sm:$0xff]
        %v403 = vld [vmem:[%s274 + $0x138] sm:$0xff]
        %v404 = vld [vmem:[%s274 + $0x140] sm:$0xff]
        %v405 = vld [vmem:[%s274 + $0x148] sm:$0xff]
        %v406 = vld [vmem:[%s274 + $0x150] sm:$0xff]
        %v407 = vld [vmem:[%s274 + $0x158] sm:$0xff]
        %v408 = vld [vmem:[%s274 + $0x160] sm:$0xff]
        %v409 = vld [vmem:[%s274 + $0x168] sm:$0xff]
        %v410 = vld [vmem:[%s274 + $0x170] sm:$0xff]
        %v411 = vld [vmem:[%s274 + $0x178] sm:$0xff]
        %v412 = vld [vmem:[%s274 + $0x180] sm:$0xff]
        %v413 = vld [vmem:[%s274 + $0x188] sm:$0xff]
        %v414 = vld [vmem:[%s274 + $0x190] sm:$0xff]
        %v415 = vld [vmem:[%s274 + $0x198] sm:$0xff]
        %v416 = vld [vmem:[%s274 + $0x1a0] sm:$0xff]
        %v417 = vld [vmem:[%s274 + $0x1a8] sm:$0xff]
        %v418 = vld [vmem:[%s274 + $0x1b0] sm:$0xff]
        %v419 = vld [vmem:[%s274 + $0x1b8] sm:$0xff]
        %v420 = vld [vmem:[%s274 + $0x1c0] sm:$0xff]
        %v421 = vld [vmem:[%s274 + $0x1c8] sm:$0xff]
        %v422 = vld [vmem:[%s274 + $0x1d0] sm:$0xff]
        %v423 = vld [vmem:[%s274 + $0x1d8] sm:$0xff]
        %v424 = vld [vmem:[%s274 + $0x1e0] sm:$0xff]
        %v425 = vld [vmem:[%s274 + $0x1e8] sm:$0xff]
        %v426 = vld [vmem:[%s274 + $0x1f0] sm:$0xff]
        %v427 = vld [vmem:[%s274 + $0x1f8] sm:$0xff]
        %v428 = vld [vmem:[%s274 + $0x200] sm:$0xff]
        %v429 = vld [vmem:[%s274 + $0x208] sm:$0xff]
        %v430 = vld [vmem:[%s274 + $0x210] sm:$0xff]
        %v431 = vld [vmem:[%s274 + $0x218] sm:$0xff]
        %v432 = vld [vmem:[%s274 + $0x220] sm:$0xff]
        %v433 = vld [vmem:[%s274 + $0x228] sm:$0xff]
        %v434 = vld [vmem:[%s274 + $0x230] sm:$0xff]
        %v435 = vld [vmem:[%s274 + $0x238] sm:$0xff]
        %v436 = vld [vmem:[%s274 + $0x240] sm:$0xff]
        %v437 = vld [vmem:[%s274 + $0x248] sm:$0xff]
        %v438 = vld [vmem:[%s274 + $0x250] sm:$0xff]
        %v439 = vld [vmem:[%s274 + $0x258] sm:$0xff]
        %v440 = vld [vmem:[%s274 + $0x260] sm:$0xff]
        %v441 = vld [vmem:[%s274 + $0x268] sm:$0xff]
        %v442 = vld [vmem:[%s274 + $0x270] sm:$0xff]
        %v443 = vld [vmem:[%s274 + $0x278] sm:$0xff]
        %v444 = vld [vmem:[%s274 + $0x280] sm:$0xff]
        %v445 = vld [vmem:[%s274 + $0x288] sm:$0xff]
        %v446 = vld [vmem:[%s274 + $0x290] sm:$0xff]
        %v447 = vld [vmem:[%s274 + $0x298] sm:$0xff]
        %v448 = vld [vmem:[%s274 + $0x2a0] sm:$0xff]
        %v449 = vld [vmem:[%s274 + $0x2a8] sm:$0xff]
        %v450 = vld [vmem:[%s274 + $0x2b0] sm:$0xff]
        %v451 = vld [vmem:[%s274 + $0x2b8] sm:$0xff]
        %v452 = vld [vmem:[%s274 + $0x2c0] sm:$0xff]
        %v453 = vld [vmem:[%s274 + $0x2c8] sm:$0xff]
        %v454 = vld [vmem:[%s274 + $0x2d0] sm:$0xff]
        %v455 = vld [vmem:[%s274 + $0x2d8] sm:$0xff]
        %v456 = vld [vmem:[%s274 + $0x2e0] sm:$0xff]
        %v457 = vld [vmem:[%s274 + $0x2e8] sm:$0xff]
        %v458 = vld [vmem:[%s274 + $0x2f0] sm:$0xff]
        %v459 = vld [vmem:[%s274 + $0x2f8] sm:$0xff]
        %v460 = vld [vmem:[%s274 + $0x300] sm:$0xff]
        %v461 = vld [vmem:[%s274 + $0x308] sm:$0xff]
        %v462 = vld [vmem:[%s274 + $0x310] sm:$0xff]
        %v463 = vld [vmem:[%s274 + $0x318] sm:$0xff]
        %v464 = vld [vmem:[%s274 + $0x320] sm:$0xff]
        %v465 = vld [vmem:[%s274 + $0x328] sm:$0xff]
        %v466 = vld [vmem:[%s274 + $0x330] sm:$0xff]
        %v467 = vld [vmem:[%s274 + $0x338] sm:$0xff]
        %v468 = vld [vmem:[%s274 + $0x340] sm:$0xff]
        %v469 = vld [vmem:[%s274 + $0x348] sm:$0xff]
        %v470 = vld [vmem:[%s274 + $0x350] sm:$0xff]
        %v471 = vld [vmem:[%s274 + $0x358] sm:$0xff]
        %v472 = vld [vmem:[%s274 + $0x360] sm:$0xff]
        %v473 = vld [vmem:[%s274 + $0x368] sm:$0xff]
        %v474 = vld [vmem:[%s274 + $0x370] sm:$0xff]
        %v475 = vld [vmem:[%s274 + $0x378] sm:$0xff]
        %v476 = vld [vmem:[%s274 + $0x380] sm:$0xff]
        %v477 = vld [vmem:[%s274 + $0x388] sm:$0xff]
        %v478 = vld [vmem:[%s274 + $0x390] sm:$0xff]
        %v479 = vld [vmem:[%s274 + $0x398] sm:$0xff]
        %v480 = vld [vmem:[%s274 + $0x3a0] sm:$0xff]
        %v481 = vld [vmem:[%s274 + $0x3a8] sm:$0xff]
        %v482 = vld [vmem:[%s274 + $0x3b0] sm:$0xff]
        %v483 = vld [vmem:[%s274 + $0x3b8] sm:$0xff]
        %v484 = vld [vmem:[%s274 + $0x3c0] sm:$0xff]
        %v485 = vld [vmem:[%s274 + $0x3c8] sm:$0xff]
        %v486 = vld [vmem:[%s274 + $0x3d0] sm:$0xff]
        %v487 = vld [vmem:[%s274 + $0x3d8] sm:$0xff]
        %v488 = vld [vmem:[%s274 + $0x3e0] sm:$0xff]
        %v489 = vld [vmem:[%s274 + $0x3e8] sm:$0xff]
        %v490 = vld [vmem:[%s274 + $0x3f0] sm:$0xff]
        %v491 = vld [vmem:[%s274 + $0x3f8] sm:$0xff]
        %v492 = vld [vmem:[%s274 + $0x400] sm:$0xff]
        %v493 = vld [vmem:[%s274 + $0x408] sm:$0xff]
        %v494 = vld [vmem:[%s274 + $0x410] sm:$0xff]
        %v495 = vld [vmem:[%s274 + $0x418] sm:$0xff]
        %v496 = vld [vmem:[%s274 + $0x420] sm:$0xff]
        %v497 = vld [vmem:[%s274 + $0x428] sm:$0xff]
        %v498 = vld [vmem:[%s274 + $0x430] sm:$0xff]
        %v499 = vld [vmem:[%s274 + $0x438] sm:$0xff]
        %v500 = vld [vmem:[%s274 + $0x440] sm:$0xff]
        %v501 = vld [vmem:[%s274 + $0x448] sm:$0xff]
        %v502 = vld [vmem:[%s274 + $0x450] sm:$0xff]
        %v503 = vld [vmem:[%s274 + $0x458] sm:$0xff]
        %v504 = vld [vmem:[%s274 + $0x460] sm:$0xff]
        %v505 = vld [vmem:[%s274 + $0x468] sm:$0xff]
        %v506 = vld [vmem:[%s274 + $0x470] sm:$0xff]
        %v507 = vld [vmem:[%s274 + $0x478] sm:$0xff]
        %v508 = vld [vmem:[%s274 + $0x480] sm:$0xff]
        %v509 = vld [vmem:[%s274 + $0x488] sm:$0xff]
        %v510 = vld [vmem:[%s274 + $0x490] sm:$0xff]
        %v511 = vld [vmem:[%s274 + $0x498] sm:$0xff]
        %v512 = vld [vmem:[%s274 + $0x4a0] sm:$0xff]
        %v513 = vld [vmem:[%s274 + $0x4a8] sm:$0xff]
        %v514 = vld [vmem:[%s274 + $0x4b0] sm:$0xff]
        %v515 = vld [vmem:[%s274 + $0x4b8] sm:$0xff]
        %v516 = vld [vmem:[%s274 + $0x4c0] sm:$0xff]
        %v517 = vld [vmem:[%s274 + $0x4c8] sm:$0xff]
        %v518 = vld [vmem:[%s274 + $0x4d0] sm:$0xff]
        %v519 = vld [vmem:[%s274 + $0x4d8] sm:$0xff]
        %v520 = vld [vmem:[%s274 + $0x4e0] sm:$0xff]
        %v521 = vld [vmem:[%s274 + $0x4e8] sm:$0xff]
        %v522 = vld [vmem:[%s274 + $0x4f0] sm:$0xff]
        %v523 = vld [vmem:[%s274 + $0x4f8] sm:$0xff]
        %v524 = vld [vmem:[%s274 + $0x500] sm:$0xff]
        %v525 = vld [vmem:[%s274 + $0x508] sm:$0xff]
        %v526 = vld [vmem:[%s274 + $0x510] sm:$0xff]
        %v527 = vld [vmem:[%s274 + $0x518] sm:$0xff]
        %v528 = vld [vmem:[%s274 + $0x520] sm:$0xff]
        %v529 = vld [vmem:[%s274 + $0x528] sm:$0xff]
        %v530 = vld [vmem:[%s274 + $0x530] sm:$0xff]
        %v531 = vld [vmem:[%s274 + $0x538] sm:$0xff]
        %v532 = vld [vmem:[%s274 + $0x540] sm:$0xff]
        %v533 = vld [vmem:[%s274 + $0x548] sm:$0xff]
        %v534 = vld [vmem:[%s274 + $0x550] sm:$0xff]
        %v535 = vld [vmem:[%s274 + $0x558] sm:$0xff]
        %v536 = vld [vmem:[%s274 + $0x560] sm:$0xff]
        %v537 = vld [vmem:[%s274 + $0x568] sm:$0xff]
        %v538 = vld [vmem:[%s274 + $0x570] sm:$0xff]
        %v539 = vld [vmem:[%s274 + $0x578] sm:$0xff]
        %v540 = vld [vmem:[%s274 + $0x580] sm:$0xff]
        %v541 = vld [vmem:[%s274 + $0x588] sm:$0xff]
        %v542 = vld [vmem:[%s274 + $0x590] sm:$0xff]
        %v543 = vld [vmem:[%s274 + $0x598] sm:$0xff]
        %v544 = vld [vmem:[%s274 + $0x5a0] sm:$0xff]
        %v545 = vld [vmem:[%s274 + $0x5a8] sm:$0xff]
        %v546 = vld [vmem:[%s274 + $0x5b0] sm:$0xff]
        %v547 = vld [vmem:[%s274 + $0x5b8] sm:$0xff]
        %v548 = vld [vmem:[%s274 + $0x5c0] sm:$0xff]
        %v549 = vld [vmem:[%s274 + $0x5c8] sm:$0xff]
        %v550 = vld [vmem:[%s274 + $0x5d0] sm:$0xff]
        %v551 = vld [vmem:[%s274 + $0x5d8] sm:$0xff]
        %v552 = vld [vmem:[%s274 + $0x5e0] sm:$0xff]
        %v553 = vld [vmem:[%s274 + $0x5e8] sm:$0xff]
        %v554 = vld [vmem:[%s274 + $0x5f0] sm:$0xff]
        %v555 = vld [vmem:[%s274 + $0x5f8] sm:$0xff]
        %v556 = vld [vmem:[%s274 + $0x600] sm:$0xff]
        %v557 = vld [vmem:[%s274 + $0x608] sm:$0xff]
        %v558 = vld [vmem:[%s274 + $0x610] sm:$0xff]
        %v559 = vld [vmem:[%s274 + $0x618] sm:$0xff]
        %v560 = vld [vmem:[%s274 + $0x620] sm:$0xff]
        %v561 = vld [vmem:[%s274 + $0x628] sm:$0xff]
        %v562 = vld [vmem:[%s274 + $0x630] sm:$0xff]
        %v563 = vld [vmem:[%s274 + $0x638] sm:$0xff]
        %v564 = vld [vmem:[%s274 + $0x640] sm:$0xff]
        %v565 = vld [vmem:[%s274 + $0x648] sm:$0xff]
        %v566 = vld [vmem:[%s274 + $0x650] sm:$0xff]
        %v567 = vld [vmem:[%s274 + $0x658] sm:$0xff]
        %v568 = vld [vmem:[%s274 + $0x660] sm:$0xff]
        %v569 = vld [vmem:[%s274 + $0x668] sm:$0xff]
        %v570 = vld [vmem:[%s274 + $0x670] sm:$0xff]
        %v571 = vld [vmem:[%s274 + $0x678] sm:$0xff]
        %v572 = vld [vmem:[%s274 + $0x680] sm:$0xff]
        %v573 = vld [vmem:[%s274 + $0x688] sm:$0xff]
        %v574 = vld [vmem:[%s274 + $0x690] sm:$0xff]
        %v575 = vld [vmem:[%s274 + $0x698] sm:$0xff]
        %v576 = vld [vmem:[%s274 + $0x6a0] sm:$0xff]
        %v577 = vld [vmem:[%s274 + $0x6a8] sm:$0xff]
        %v578 = vld [vmem:[%s274 + $0x6b0] sm:$0xff]
        %v579 = vld [vmem:[%s274 + $0x6b8] sm:$0xff]
        %v580 = vld [vmem:[%s274 + $0x6c0] sm:$0xff]
        %v581 = vld [vmem:[%s274 + $0x6c8] sm:$0xff]
        %v582 = vld [vmem:[%s274 + $0x6d0] sm:$0xff]
        %v583 = vld [vmem:[%s274 + $0x6d8] sm:$0xff]
        %v584 = vld [vmem:[%s274 + $0x6e0] sm:$0xff]
        %v585 = vld [vmem:[%s274 + $0x6e8] sm:$0xff]
        %v586 = vld [vmem:[%s274 + $0x6f0] sm:$0xff]
        %v587 = vld [vmem:[%s274 + $0x6f8] sm:$0xff]
        %v588 = vld [vmem:[%s274 + $0x700] sm:$0xff]
        %v589 = vld [vmem:[%s274 + $0x708] sm:$0xff]
        %v590 = vld [vmem:[%s274 + $0x710] sm:$0xff]
        %v591 = vld [vmem:[%s274 + $0x718] sm:$0xff]
        %v592 = vld [vmem:[%s274 + $0x720] sm:$0xff]
        %v593 = vld [vmem:[%s274 + $0x728] sm:$0xff]
        %v594 = vld [vmem:[%s274 + $0x730] sm:$0xff]
        %v595 = vld [vmem:[%s274 + $0x738] sm:$0xff]
        %v596 = vld [vmem:[%s274 + $0x740] sm:$0xff]
        %v597 = vld [vmem:[%s274 + $0x748] sm:$0xff]
        %v598 = vld [vmem:[%s274 + $0x750] sm:$0xff]
        %v599 = vld [vmem:[%s274 + $0x758] sm:$0xff]
        %v600 = vld [vmem:[%s274 + $0x760] sm:$0xff]
        %v601 = vld [vmem:[%s274 + $0x768] sm:$0xff]
        %v602 = vld [vmem:[%s274 + $0x770] sm:$0xff]
        %v603 = vld [vmem:[%s274 + $0x778] sm:$0xff]
        %v604 = vld [vmem:[%s274 + $0x780] sm:$0xff]
        %v605 = vld [vmem:[%s274 + $0x788] sm:$0xff]
        %v606 = vld [vmem:[%s274 + $0x790] sm:$0xff]
        %v607 = vld [vmem:[%s274 + $0x798] sm:$0xff]
        %v608 = vld [vmem:[%s274 + $0x7a0] sm:$0xff]
        %v609 = vld [vmem:[%s274 + $0x7a8] sm:$0xff]
        %v610 = vld [vmem:[%s274 + $0x7b0] sm:$0xff]
        %v611 = vld [vmem:[%s274 + $0x7b8] sm:$0xff]
        %v612 = vld [vmem:[%s274 + $0x7c0] sm:$0xff]
        %v613 = vld [vmem:[%s274 + $0x7c8] sm:$0xff]
        %v614 = vld [vmem:[%s274 + $0x7d0] sm:$0xff]
        %v615 = vld [vmem:[%s274 + $0x7d8] sm:$0xff]
        %v616 = vld [vmem:[%s274 + $0x7e0] sm:$0xff]
        %v617 = vld [vmem:[%s274 + $0x7e8] sm:$0xff]
        %v618 = vld [vmem:[%s274 + $0x7f0] sm:$0xff]
        %v619 = vld [vmem:[%s274 + $0x7f8] sm:$0xff]
        %v620 = vld [vmem:[%s274 + $0x800] sm:$0xff]
        %v621 = vld [vmem:[%s274 + $0x808] sm:$0xff]
        %v622 = vld [vmem:[%s274 + $0x810] sm:$0xff]
        %v623 = vld [vmem:[%s274 + $0x818] sm:$0xff]
        %v624 = vld [vmem:[%s274 + $0x820] sm:$0xff]
        %v625 = vld [vmem:[%s274 + $0x828] sm:$0xff]
        %v626 = vld [vmem:[%s274 + $0x830] sm:$0xff]
        %v627 = vld [vmem:[%s274 + $0x838] sm:$0xff]
        %v628 = vld [vmem:[%s274 + $0x840] sm:$0xff]
        %v629 = vld [vmem:[%s274 + $0x848] sm:$0xff]
        %v630 = vld [vmem:[%s274 + $0x850] sm:$0xff]
        %v631 = vld [vmem:[%s274 + $0x858] sm:$0xff]
        %v632 = vld [vmem:[%s274 + $0x860] sm:$0xff]
        %v633 = vld [vmem:[%s274 + $0x868] sm:$0xff]
        %v634 = vld [vmem:[%s274 + $0x870] sm:$0xff]
        %v635 = vld [vmem:[%s274 + $0x878] sm:$0xff]
        %v636 = vld [vmem:[%s274 + $0x880] sm:$0xff]
        %v637 = vld [vmem:[%s274 + $0x888] sm:$0xff]
        %v638 = vld [vmem:[%s274 + $0x890] sm:$0xff]
        %v639 = vld [vmem:[%s274 + $0x898] sm:$0xff]
        %v640 = vld [vmem:[%s274 + $0x8a0] sm:$0xff]
        %v641 = vld [vmem:[%s274 + $0x8a8] sm:$0xff]
        %v642 = vld [vmem:[%s274 + $0x8b0] sm:$0xff]
        %v643 = vld [vmem:[%s274 + $0x8b8] sm:$0xff]
        %v644 = vld [vmem:[%s274 + $0x8c0] sm:$0xff]
        %v645 = vld [vmem:[%s274 + $0x8c8] sm:$0xff]
        %v646 = vld [vmem:[%s274 + $0x8d0] sm:$0xff]
        %v647 = vld [vmem:[%s274 + $0x8d8] sm:$0xff]
        %v648 = vld [vmem:[%s274 + $0x8e0] sm:$0xff]
        %v649 = vld [vmem:[%s274 + $0x8e8] sm:$0xff]
        %v650 = vld [vmem:[%s274 + $0x8f0] sm:$0xff]
        %v651 = vld [vmem:[%s274 + $0x8f8] sm:$0xff]
        %v652 = vld [vmem:[%s274 + $0x900] sm:$0xff]
        %v653 = vld [vmem:[%s274 + $0x908] sm:$0xff]
        %v654 = vld [vmem:[%s274 + $0x910] sm:$0xff]
        %v655 = vld [vmem:[%s274 + $0x918] sm:$0xff]
        %v656 = vld [vmem:[%s274 + $0x920] sm:$0xff]
        %v657 = vld [vmem:[%s274 + $0x928] sm:$0xff]
        %v658 = vld [vmem:[%s274 + $0x930] sm:$0xff]
        %v659 = vld [vmem:[%s274 + $0x938] sm:$0xff]
        %v660 = vld [vmem:[%s274 + $0x940] sm:$0xff]
        %v661 = vld [vmem:[%s274 + $0x948] sm:$0xff]
        %v662 = vld [vmem:[%s274 + $0x950] sm:$0xff]
        %v663 = vld [vmem:[%s274 + $0x958] sm:$0xff]
        %v664 = vld [vmem:[%s274 + $0x960] sm:$0xff]
        %v665 = vld [vmem:[%s274 + $0x968] sm:$0xff]
        %v666 = vld [vmem:[%s274 + $0x970] sm:$0xff]
        %v667 = vld [vmem:[%s274 + $0x978] sm:$0xff]
        %v668 = vld [vmem:[%s274 + $0x980] sm:$0xff]
        %v669 = vld [vmem:[%s274 + $0x988] sm:$0xff]
        %v670 = vld [vmem:[%s274 + $0x990] sm:$0xff]
        %v671 = vld [vmem:[%s274 + $0x998] sm:$0xff]
        %v672 = vld [vmem:[%s274 + $0x9a0] sm:$0xff]
        %v673 = vld [vmem:[%s274 + $0x9a8] sm:$0xff]
        %v674 = vld [vmem:[%s274 + $0x9b0] sm:$0xff]
        %v675 = vld [vmem:[%s274 + $0x9b8] sm:$0xff]
        %v676 = vld [vmem:[%s274 + $0x9c0] sm:$0xff]
        %v677 = vld [vmem:[%s274 + $0x9c8] sm:$0xff]
        %v678 = vld [vmem:[%s274 + $0x9d0] sm:$0xff]
        %v679 = vld [vmem:[%s274 + $0x9d8] sm:$0xff]
        %v680 = vld [vmem:[%s274 + $0x9e0] sm:$0xff]
        %v681 = vld [vmem:[%s274 + $0x9e8] sm:$0xff]
        %v682 = vld [vmem:[%s274 + $0x9f0] sm:$0xff]
        %v683 = vld [vmem:[%s274 + $0x9f8] sm:$0xff]
        %v684 = vld [vmem:[%s274 + $0xa00] sm:$0xff]
        %v685 = vld [vmem:[%s274 + $0xa08] sm:$0xff]
        %v686 = vld [vmem:[%s274 + $0xa10] sm:$0xff]
        %v687 = vld [vmem:[%s274 + $0xa18] sm:$0xff]
        %v688 = vld [vmem:[%s274 + $0xa20] sm:$0xff]
        %v689 = vld [vmem:[%s274 + $0xa28] sm:$0xff]
        %v690 = vld [vmem:[%s274 + $0xa30] sm:$0xff]
        %v691 = vld [vmem:[%s274 + $0xa38] sm:$0xff]
        %v692 = vld [vmem:[%s274 + $0xa40] sm:$0xff]
        %v693 = vld [vmem:[%s274 + $0xa48] sm:$0xff]
        %v694 = vld [vmem:[%s274 + $0xa50] sm:$0xff]
        %v695 = vld [vmem:[%s274 + $0xa58] sm:$0xff]
        %v696 = vld [vmem:[%s274 + $0xa60] sm:$0xff]
        %v697 = vld [vmem:[%s274 + $0xa68] sm:$0xff]
        %v698 = vld [vmem:[%s274 + $0xa70] sm:$0xff]
        %v699 = vld [vmem:[%s274 + $0xa78] sm:$0xff]
        %v700 = vld [vmem:[%s274 + $0xa80] sm:$0xff]
        %v701 = vld [vmem:[%s274 + $0xa88] sm:$0xff]
        %v702 = vld [vmem:[%s274 + $0xa90] sm:$0xff]
        %v703 = vld [vmem:[%s274 + $0xa98] sm:$0xff]
        %v704 = vld [vmem:[%s274 + $0xaa0] sm:$0xff]
        %v705 = vld [vmem:[%s274 + $0xaa8] sm:$0xff]
        %v706 = vld [vmem:[%s274 + $0xab0] sm:$0xff]
        %v707 = vld [vmem:[%s274 + $0xab8] sm:$0xff]
        %v708 = vld [vmem:[%s274 + $0xac0] sm:$0xff]
        %v709 = vld [vmem:[%s274 + $0xac8] sm:$0xff]
        %v710 = vld [vmem:[%s274 + $0xad0] sm:$0xff]
        %v711 = vld [vmem:[%s274 + $0xad8] sm:$0xff]
        %v712 = vld [vmem:[%s274 + $0xae0] sm:$0xff]
        %v713 = vld [vmem:[%s274 + $0xae8] sm:$0xff]
        %v714 = vld [vmem:[%s274 + $0xaf0] sm:$0xff]
        %v715 = vld [vmem:[%s274 + $0xaf8] sm:$0xff]
        %v716 = vld [vmem:[%s274 + $0xb00] sm:$0xff]
        %v717 = vld [vmem:[%s274 + $0xb08] sm:$0xff]
        %v718 = vld [vmem:[%s274 + $0xb10] sm:$0xff]
        %v719 = vld [vmem:[%s274 + $0xb18] sm:$0xff]
        %v720 = vld [vmem:[%s274 + $0xb20] sm:$0xff]
        %v721 = vld [vmem:[%s274 + $0xb28] sm:$0xff]
        %v722 = vld [vmem:[%s274 + $0xb30] sm:$0xff]
        %v723 = vld [vmem:[%s274 + $0xb38] sm:$0xff]
        %v724 = vld [vmem:[%s274 + $0xb40] sm:$0xff]
        %v725 = vld [vmem:[%s274 + $0xb48] sm:$0xff]
        %v726 = vld [vmem:[%s274 + $0xb50] sm:$0xff]
        %v727 = vld [vmem:[%s274 + $0xb58] sm:$0xff]
        %v728 = vld [vmem:[%s274 + $0xb60] sm:$0xff]
        %v729 = vld [vmem:[%s274 + $0xb68] sm:$0xff]
        %v730 = vld [vmem:[%s274 + $0xb70] sm:$0xff]
        %v731 = vld [vmem:[%s274 + $0xb78] sm:$0xff]
        %v732 = vld [vmem:[%s274 + $0xb80] sm:$0xff]
        %v733 = vld [vmem:[%s274 + $0xb88] sm:$0xff]
        %v734 = vld [vmem:[%s274 + $0xb90] sm:$0xff]
        %v735 = vld [vmem:[%s274 + $0xb98] sm:$0xff]
        %v736 = vld [vmem:[%s274 + $0xba0] sm:$0xff]
        %v737 = vld [vmem:[%s274 + $0xba8] sm:$0xff]
        %v738 = vld [vmem:[%s274 + $0xbb0] sm:$0xff]
        %v739 = vld [vmem:[%s274 + $0xbb8] sm:$0xff]
        %v740 = vld [vmem:[%s274 + $0xbc0] sm:$0xff]
        %v741 = vld [vmem:[%s274 + $0xbc8] sm:$0xff]
        %v742 = vld [vmem:[%s274 + $0xbd0] sm:$0xff]
        %v743 = vld [vmem:[%s274 + $0xbd8] sm:$0xff]
        %v744 = vld [vmem:[%s274 + $0xbe0] sm:$0xff]
        %v745 = vld [vmem:[%s274 + $0xbe8] sm:$0xff]
        %v746 = vld [vmem:[%s274 + $0xbf0] sm:$0xff]
        %v747 = vld [vmem:[%s274 + $0xbf8] sm:$0xff]
        %v748 = vld [vmem:[%s274 + $0xc00] sm:$0xff]
        %v749 = vld [vmem:[%s274 + $0xc08] sm:$0xff]
        %v750 = vld [vmem:[%s274 + $0xc10] sm:$0xff]
        %v751 = vld [vmem:[%s274 + $0xc18] sm:$0xff]
        %v752 = vld [vmem:[%s274 + $0xc20] sm:$0xff]
        %v753 = vld [vmem:[%s274 + $0xc28] sm:$0xff]
        %v754 = vld [vmem:[%s274 + $0xc30] sm:$0xff]
        %v755 = vld [vmem:[%s274 + $0xc38] sm:$0xff]
        %v756 = vld [vmem:[%s274 + $0xc40] sm:$0xff]
        %v757 = vld [vmem:[%s274 + $0xc48] sm:$0xff]
        %v758 = vld [vmem:[%s274 + $0xc50] sm:$0xff]
        %v759 = vld [vmem:[%s274 + $0xc58] sm:$0xff]
        %v760 = vld [vmem:[%s274 + $0xc60] sm:$0xff]
        %v761 = vld [vmem:[%s274 + $0xc68] sm:$0xff]
        %v762 = vld [vmem:[%s274 + $0xc70] sm:$0xff]
        %v763 = vld [vmem:[%s274 + $0xc78] sm:$0xff]
        %v764 = vld [vmem:[%s274 + $0xc80] sm:$0xff]
        %v765 = vld [vmem:[%s274 + $0xc88] sm:$0xff]
        %v766 = vld [vmem:[%s274 + $0xc90] sm:$0xff]
        %v767 = vld [vmem:[%s274 + $0xc98] sm:$0xff]
        %v768 = vld [vmem:[%s274 + $0xca0] sm:$0xff]
        %v769 = vld [vmem:[%s274 + $0xca8] sm:$0xff]
        %v770 = vld [vmem:[%s274 + $0xcb0] sm:$0xff]
        %v771 = vld [vmem:[%s274 + $0xcb8] sm:$0xff]
        %v772 = vld [vmem:[%s274 + $0xcc0] sm:$0xff]
        %v773 = vld [vmem:[%s274 + $0xcc8] sm:$0xff]
        %v774 = vld [vmem:[%s274 + $0xcd0] sm:$0xff]
        %v775 = vld [vmem:[%s274 + $0xcd8] sm:$0xff]
        %v776 = vld [vmem:[%s274 + $0xce0] sm:$0xff]
        %v777 = vld [vmem:[%s274 + $0xce8] sm:$0xff]
        %v778 = vld [vmem:[%s274 + $0xcf0] sm:$0xff]
        %v779 = vld [vmem:[%s274 + $0xcf8] sm:$0xff]
        %v780 = vld [vmem:[%s274 + $0xd00] sm:$0xff]
        %v781 = vld [vmem:[%s274 + $0xd08] sm:$0xff]
        %v782 = vld [vmem:[%s274 + $0xd10] sm:$0xff]
        %v783 = vld [vmem:[%s274 + $0xd18] sm:$0xff]
        %v784 = vld [vmem:[%s274 + $0xd20] sm:$0xff]
        %v785 = vld [vmem:[%s274 + $0xd28] sm:$0xff]
        %v786 = vld [vmem:[%s274 + $0xd30] sm:$0xff]
        %v787 = vld [vmem:[%s274 + $0xd38] sm:$0xff]
        %v788 = vld [vmem:[%s274 + $0xd40] sm:$0xff]
        %v789 = vld [vmem:[%s274 + $0xd48] sm:$0xff]
        %v790 = vld [vmem:[%s274 + $0xd50] sm:$0xff]
        %v791 = vld [vmem:[%s274 + $0xd58] sm:$0xff]
        %v792 = vld [vmem:[%s274 + $0xd60] sm:$0xff]
        %v793 = vld [vmem:[%s274 + $0xd68] sm:$0xff]
        %v794 = vld [vmem:[%s274 + $0xd70] sm:$0xff]
        %v795 = vld [vmem:[%s274 + $0xd78] sm:$0xff]
        %v796 = vld [vmem:[%s274 + $0xd80] sm:$0xff]
        %v797 = vld [vmem:[%s274 + $0xd88] sm:$0xff]
        %v798 = vld [vmem:[%s274 + $0xd90] sm:$0xff]
        %v799 = vld [vmem:[%s274 + $0xd98] sm:$0xff]
        %v800 = vld [vmem:[%s274 + $0xda0] sm:$0xff]
        %v801 = vld [vmem:[%s274 + $0xda8] sm:$0xff]
        %v802 = vld [vmem:[%s274 + $0xdb0] sm:$0xff]
        %v803 = vld [vmem:[%s274 + $0xdb8] sm:$0xff]
        %v804 = vld [vmem:[%s274 + $0xdc0] sm:$0xff]
        %v805 = vld [vmem:[%s274 + $0xdc8] sm:$0xff]
        %v806 = vld [vmem:[%s274 + $0xdd0] sm:$0xff]
        %v807 = vld [vmem:[%s274 + $0xdd8] sm:$0xff]
        %v808 = vld [vmem:[%s274 + $0xde0] sm:$0xff]
        %v809 = vld [vmem:[%s274 + $0xde8] sm:$0xff]
        %v810 = vld [vmem:[%s274 + $0xdf0] sm:$0xff]
        %v811 = vld [vmem:[%s274 + $0xdf8] sm:$0xff]
        %v812 = vld [vmem:[%s274 + $0xe00] sm:$0xff]
        %v813 = vld [vmem:[%s274 + $0xe08] sm:$0xff]
        %v814 = vld [vmem:[%s274 + $0xe10] sm:$0xff]
        %v815 = vld [vmem:[%s274 + $0xe18] sm:$0xff]
        %v816 = vld [vmem:[%s274 + $0xe20] sm:$0xff]
        %v817 = vld [vmem:[%s274 + $0xe28] sm:$0xff]
        %v818 = vld [vmem:[%s274 + $0xe30] sm:$0xff]
        %v819 = vld [vmem:[%s274 + $0xe38] sm:$0xff]
        %v820 = vld [vmem:[%s274 + $0xe40] sm:$0xff]
        %v821 = vld [vmem:[%s274 + $0xe48] sm:$0xff]
        %v822 = vld [vmem:[%s274 + $0xe50] sm:$0xff]
        %v823 = vld [vmem:[%s274 + $0xe58] sm:$0xff]
        %v824 = vld [vmem:[%s274 + $0xe60] sm:$0xff]
        %v825 = vld [vmem:[%s274 + $0xe68] sm:$0xff]
        %v826 = vld [vmem:[%s274 + $0xe70] sm:$0xff]
        %v827 = vld [vmem:[%s274 + $0xe78] sm:$0xff]
        %v828 = vld [vmem:[%s274 + $0xe80] sm:$0xff]
        %v829 = vld [vmem:[%s274 + $0xe88] sm:$0xff]
        %v830 = vld [vmem:[%s274 + $0xe90] sm:$0xff]
        %v831 = vld [vmem:[%s274 + $0xe98] sm:$0xff]
        %v832 = vld [vmem:[%s274 + $0xea0] sm:$0xff]
        %v833 = vld [vmem:[%s274 + $0xea8] sm:$0xff]
        %v834 = vld [vmem:[%s274 + $0xeb0] sm:$0xff]
        %v835 = vld [vmem:[%s274 + $0xeb8] sm:$0xff]
        %v836 = vld [vmem:[%s274 + $0xec0] sm:$0xff]
        %v837 = vld [vmem:[%s274 + $0xec8] sm:$0xff]
        %v838 = vld [vmem:[%s274 + $0xed0] sm:$0xff]
        %v839 = vld [vmem:[%s274 + $0xed8] sm:$0xff]
        %v840 = vld [vmem:[%s274 + $0xee0] sm:$0xff]
        %v841 = vld [vmem:[%s274 + $0xee8] sm:$0xff]
        %v842 = vld [vmem:[%s274 + $0xef0] sm:$0xff]
        %v843 = vld [vmem:[%s274 + $0xef8] sm:$0xff]
        %v844 = vld [vmem:[%s274 + $0xf00] sm:$0xff]
        %v845 = vld [vmem:[%s274 + $0xf08] sm:$0xff]
        %v846 = vld [vmem:[%s274 + $0xf10] sm:$0xff]
        %v847 = vld [vmem:[%s274 + $0xf18] sm:$0xff]
        %v848 = vld [vmem:[%s274 + $0xf20] sm:$0xff]
        %v849 = vld [vmem:[%s274 + $0xf28] sm:$0xff]
        %v850 = vld [vmem:[%s274 + $0xf30] sm:$0xff]
        %v851 = vld [vmem:[%s274 + $0xf38] sm:$0xff]
        %v852 = vld [vmem:[%s274 + $0xf40] sm:$0xff]
        %v853 = vld [vmem:[%s274 + $0xf48] sm:$0xff]
        %v854 = vld [vmem:[%s274 + $0xf50] sm:$0xff]
        %v855 = vld [vmem:[%s274 + $0xf58] sm:$0xff]
        %v856 = vld [vmem:[%s274 + $0xf60] sm:$0xff]
        %v857 = vld [vmem:[%s274 + $0xf68] sm:$0xff]
        %v858 = vld [vmem:[%s274 + $0xf70] sm:$0xff]
        %v859 = vld [vmem:[%s274 + $0xf78] sm:$0xff]
        %v860 = vld [vmem:[%s274 + $0xf80] sm:$0xff]
        %v861 = vld [vmem:[%s274 + $0xf88] sm:$0xff]
        %v862 = vld [vmem:[%s274 + $0xf90] sm:$0xff]
        %v863 = vld [vmem:[%s274 + $0xf98] sm:$0xff]
        %v864 = vld [vmem:[%s274 + $0xfa0] sm:$0xff]
        %v865 = vld [vmem:[%s274 + $0xfa8] sm:$0xff]
        %v866 = vld [vmem:[%s274 + $0xfb0] sm:$0xff]
        %v867 = vld [vmem:[%s274 + $0xfb8] sm:$0xff]
        %v868 = vld [vmem:[%s274 + $0xfc0] sm:$0xff]
        %v869 = vld [vmem:[%s274 + $0xfc8] sm:$0xff]
        %v870 = vld [vmem:[%s274 + $0xfd0] sm:$0xff]
        %v871 = vld [vmem:[%s274 + $0xfd8] sm:$0xff]
        %v872 = vld [vmem:[%s274 + $0xfe0] sm:$0xff]
        %v873 = vld [vmem:[%s274 + $0xfe8] sm:$0xff]
        %v874 = vld [vmem:[%s274 + $0xff0] sm:$0xff]
        %v875 = vld [vmem:[%s274 + $0xff8] sm:$0xff]
        %v876 = vld [vmem:[%s274 + $0x1000] sm:$0xff]
        %v877 = vld [vmem:[%s274 + $0x1008] sm:$0xff]
        %v878 = vld [vmem:[%s274 + $0x1010] sm:$0xff]
        %v879 = vld [vmem:[%s274 + $0x1018] sm:$0xff]
        %v880 = vld [vmem:[%s274 + $0x1020] sm:$0xff]
        %v881 = vld [vmem:[%s274 + $0x1028] sm:$0xff]
        %v882 = vld [vmem:[%s274 + $0x1030] sm:$0xff]
        %v883 = vld [vmem:[%s274 + $0x1038] sm:$0xff]
        %v884 = vld [vmem:[%s274 + $0x1040] sm:$0xff]
        %v885 = vld [vmem:[%s274 + $0x1048] sm:$0xff]
        %v886 = vld [vmem:[%s274 + $0x1050] sm:$0xff]
        %v887 = vld [vmem:[%s274 + $0x1058] sm:$0xff]
        %v888 = vld [vmem:[%s274 + $0x1060] sm:$0xff]
        %v889 = vld [vmem:[%s274 + $0x1068] sm:$0xff]
        %v890 = vld [vmem:[%s274 + $0x1070] sm:$0xff]
        %v891 = vld [vmem:[%s274 + $0x1078] sm:$0xff]
        %v892 = vld [vmem:[%s274 + $0x1080] sm:$0xff]
        %v893 = vld [vmem:[%s274 + $0x1088] sm:$0xff]
        %v894 = vld [vmem:[%s274 + $0x1090] sm:$0xff]
        %v895 = vld [vmem:[%s274 + $0x1098] sm:$0xff]
        %v896 = vld [vmem:[%s274 + $0x10a0] sm:$0xff]
        %v897 = vld [vmem:[%s274 + $0x10a8] sm:$0xff]
        %v898 = vld [vmem:[%s274 + $0x10b0] sm:$0xff]
        %v899 = vld [vmem:[%s274 + $0x10b8] sm:$0xff]
        %v900 = vld [vmem:[%s274 + $0x10c0] sm:$0xff]
        %v901 = vld [vmem:[%s274 + $0x10c8] sm:$0xff]
        %v902 = vld [vmem:[%s274 + $0x10d0] sm:$0xff]
        %v903 = vld [vmem:[%s274 + $0x10d8] sm:$0xff]
        %v904 = vld [vmem:[%s274 + $0x10e0] sm:$0xff]
        %v905 = vld [vmem:[%s274 + $0x10e8] sm:$0xff]
        %v906 = vld [vmem:[%s274 + $0x10f0] sm:$0xff]
        %v907 = vld [vmem:[%s274 + $0x10f8] sm:$0xff]
        %v908 = vld [vmem:[%s274 + $0x1100] sm:$0xff]
        %v909 = vld [vmem:[%s274 + $0x1108] sm:$0xff]
        %v910 = vld [vmem:[%s274 + $0x1110] sm:$0xff]
        %v911 = vld [vmem:[%s274 + $0x1118] sm:$0xff]
        %v912 = vld [vmem:[%s274 + $0x1120] sm:$0xff]
        %v913 = vld [vmem:[%s274 + $0x1128] sm:$0xff]
        %v914 = vld [vmem:[%s274 + $0x1130] sm:$0xff]
        %v915 = vld [vmem:[%s274 + $0x1138] sm:$0xff]
        %v916 = vld [vmem:[%s274 + $0x1140] sm:$0xff]
        %v917 = vld [vmem:[%s274 + $0x1148] sm:$0xff]
        %v918 = vld [vmem:[%s274 + $0x1150] sm:$0xff]
        %v919 = vld [vmem:[%s274 + $0x1158] sm:$0xff]
        %v920 = vld [vmem:[%s274 + $0x1160] sm:$0xff]
        %v921 = vld [vmem:[%s274 + $0x1168] sm:$0xff]
        %v922 = vld [vmem:[%s274 + $0x1170] sm:$0xff]
        %v923 = vld [vmem:[%s274 + $0x1178] sm:$0xff]
        %v924 = vld [vmem:[%s274 + $0x1180] sm:$0xff]
        %v925 = vld [vmem:[%s274 + $0x1188] sm:$0xff]
        %v926 = vld [vmem:[%s274 + $0x1190] sm:$0xff]
        %v927 = vld [vmem:[%s274 + $0x1198] sm:$0xff]
        %v928 = vld [vmem:[%s274 + $0x11a0] sm:$0xff]
        %v929 = vld [vmem:[%s274 + $0x11a8] sm:$0xff]
        %v930 = vld [vmem:[%s274 + $0x11b0] sm:$0xff]
        %v931 = vld [vmem:[%s274 + $0x11b8] sm:$0xff]
        %v932 = vld [vmem:[%s274 + $0x11c0] sm:$0xff]
        %v933 = vld [vmem:[%s274 + $0x11c8] sm:$0xff]
        %v934 = vld [vmem:[%s274 + $0x11d0] sm:$0xff]
        %v935 = vld [vmem:[%s274 + $0x11d8] sm:$0xff]
        %v936 = vld [vmem:[%s274 + $0x11e0] sm:$0xff]
        %v937 = vld [vmem:[%s274 + $0x11e8] sm:$0xff]
        %v938 = vld [vmem:[%s274 + $0x11f0] sm:$0xff]
        %v939 = vld [vmem:[%s274 + $0x11f8] sm:$0xff]
        %v940 = vld [vmem:[%s274 + $0x1200] sm:$0xff]
        %v941 = vld [vmem:[%s274 + $0x1208] sm:$0xff]
        %v942 = vld [vmem:[%s274 + $0x1210] sm:$0xff]
        %v943 = vld [vmem:[%s274 + $0x1218] sm:$0xff]
        %v944 = vld [vmem:[%s274 + $0x1220] sm:$0xff]
        %v945 = vld [vmem:[%s274 + $0x1228] sm:$0xff]
        %v946 = vld [vmem:[%s274 + $0x1230] sm:$0xff]
        %v947 = vld [vmem:[%s274 + $0x1238] sm:$0xff]
        %v948 = vld [vmem:[%s274 + $0x1240] sm:$0xff]
        %v949 = vld [vmem:[%s274 + $0x1248] sm:$0xff]
        %v950 = vld [vmem:[%s274 + $0x1250] sm:$0xff]
        %v951 = vld [vmem:[%s274 + $0x1258] sm:$0xff]
        %v952 = vld [vmem:[%s274 + $0x1260] sm:$0xff]
        %v953 = vld [vmem:[%s274 + $0x1268] sm:$0xff]
        %v954 = vld [vmem:[%s274 + $0x1270] sm:$0xff]
        %v955 = vld [vmem:[%s274 + $0x1278] sm:$0xff]
        %v956 = vld [vmem:[%s274 + $0x1280] sm:$0xff]
        %v957 = vld [vmem:[%s274 + $0x1288] sm:$0xff]
        %v958 = vld [vmem:[%s274 + $0x1290] sm:$0xff]
        %v959 = vld [vmem:[%s274 + $0x1298] sm:$0xff]
        %v960 = vld [vmem:[%s274 + $0x12a0] sm:$0xff]
        %v961 = vld [vmem:[%s274 + $0x12a8] sm:$0xff]
        %v962 = vld [vmem:[%s274 + $0x12b0] sm:$0xff]
        %v963 = vld [vmem:[%s274 + $0x12b8] sm:$0xff]
        %v964 = vld [vmem:[%s274 + $0x12c0] sm:$0xff]
        %v965 = vld [vmem:[%s274 + $0x12c8] sm:$0xff]
        %v966 = vld [vmem:[%s274 + $0x12d0] sm:$0xff]
        %v967 = vld [vmem:[%s274 + $0x12d8] sm:$0xff]
        %v968 = vld [vmem:[%s274 + $0x12e0] sm:$0xff]
        %v969 = vld [vmem:[%s274 + $0x12e8] sm:$0xff]
        %v970 = vld [vmem:[%s274 + $0x12f0] sm:$0xff]
        %v971 = vld [vmem:[%s274 + $0x12f8] sm:$0xff]
        %v972 = vld [vmem:[%s274 + $0x1300] sm:$0xff]
        %v973 = vld [vmem:[%s274 + $0x1308] sm:$0xff]
        %v974 = vld [vmem:[%s274 + $0x1310] sm:$0xff]
        %v975 = vld [vmem:[%s274 + $0x1318] sm:$0xff]
        %v976 = vld [vmem:[%s274 + $0x1320] sm:$0xff]
        %v977 = vld [vmem:[%s274 + $0x1328] sm:$0xff]
        %v978 = vld [vmem:[%s274 + $0x1330] sm:$0xff]
        %v979 = vld [vmem:[%s274 + $0x1338] sm:$0xff]
        %v980 = vld [vmem:[%s274 + $0x1340] sm:$0xff]
        %v981 = vld [vmem:[%s274 + $0x1348] sm:$0xff]
        %v982 = vld [vmem:[%s274 + $0x1350] sm:$0xff]
        %v983 = vld [vmem:[%s274 + $0x1358] sm:$0xff]
        %v984 = vld [vmem:[%s274 + $0x1360] sm:$0xff]
        %v985 = vld [vmem:[%s274 + $0x1368] sm:$0xff]
        %v986 = vld [vmem:[%s274 + $0x1370] sm:$0xff]
        %v987 = vld [vmem:[%s274 + $0x1378] sm:$0xff]
        %v988 = vld [vmem:[%s274 + $0x1380] sm:$0xff]
        %v989 = vld [vmem:[%s274 + $0x1388] sm:$0xff]
        %v990 = vld [vmem:[%s274 + $0x1390] sm:$0xff]
        %v991 = vld [vmem:[%s274 + $0x1398] sm:$0xff]
        %v992 = vld [vmem:[%s274 + $0x13a0] sm:$0xff]
        %v993 = vld [vmem:[%s274 + $0x13a8] sm:$0xff]
        %v994 = vld [vmem:[%s274 + $0x13b0] sm:$0xff]
        %v995 = vld [vmem:[%s274 + $0x13b8] sm:$0xff]
        %v996 = vld [vmem:[%s274 + $0x13c0] sm:$0xff]
        %v997 = vld [vmem:[%s274 + $0x13c8] sm:$0xff]
        %v998 = vld [vmem:[%s274 + $0x13d0] sm:$0xff]
        %v999 = vld [vmem:[%s274 + $0x13d8] sm:$0xff]
        %v1000 = vld [vmem:[%s274 + $0x13e0] sm:$0xff]
        %v1001 = vld [vmem:[%s274 + $0x13e8] sm:$0xff]
        %v1002 = vld [vmem:[%s274 + $0x13f0] sm:$0xff]
        %v1003 = vld [vmem:[%s274 + $0x13f8] sm:$0xff]
        %v1004 = vld [vmem:[%s274 + $0x1400] sm:$0xff]
        %v1005 = vld [vmem:[%s274 + $0x1408] sm:$0xff]
        %v1006 = vld [vmem:[%s274 + $0x1410] sm:$0xff]
        %v1007 = vld [vmem:[%s274 + $0x1418] sm:$0xff]
        %v1008 = vld [vmem:[%s274 + $0x1420] sm:$0xff]
        %v1009 = vld [vmem:[%s274 + $0x1428] sm:$0xff]
        %v1010 = vld [vmem:[%s274 + $0x1430] sm:$0xff]
        %v1011 = vld [vmem:[%s274 + $0x1438] sm:$0xff]
        %v1012 = vld [vmem:[%s274 + $0x1440] sm:$0xff]
        %v1013 = vld [vmem:[%s274 + $0x1448] sm:$0xff]
        %v1014 = vld [vmem:[%s274 + $0x1450] sm:$0xff]
        %v1015 = vld [vmem:[%s274 + $0x1458] sm:$0xff]
        %v1016 = vld [vmem:[%s274 + $0x1460] sm:$0xff]
        %v1017 = vld [vmem:[%s274 + $0x1468] sm:$0xff]
        %v1018 = vld [vmem:[%s274 + $0x1470] sm:$0xff]
        %v1019 = vld [vmem:[%s274 + $0x1478] sm:$0xff]
        %v1020 = vld [vmem:[%s274 + $0x1480] sm:$0xff]
        %v1021 = vld [vmem:[%s274 + $0x1488] sm:$0xff]
        %v1022 = vld [vmem:[%s274 + $0x1490] sm:$0xff]
        %v1023 = vld [vmem:[%s274 + $0x1498] sm:$0xff]
        %v1024 = vld [vmem:[%s274 + $0x14a0] sm:$0xff]
        %v1025 = vld [vmem:[%s274 + $0x14a8] sm:$0xff]
        %v1026 = vld [vmem:[%s274 + $0x14b0] sm:$0xff]
        %v1027 = vld [vmem:[%s274 + $0x14b8] sm:$0xff]
        %v1028 = vld [vmem:[%s274 + $0x14c0] sm:$0xff]
        %v1029 = vld [vmem:[%s274 + $0x14c8] sm:$0xff]
        %v1030 = vld [vmem:[%s274 + $0x14d0] sm:$0xff]
        %v1031 = vld [vmem:[%s274 + $0x14d8] sm:$0xff]
        %v1032 = vld [vmem:[%s274 + $0x14e0] sm:$0xff]
        %v1033 = vld [vmem:[%s274 + $0x14e8] sm:$0xff]
        %v1034 = vld [vmem:[%s274 + $0x14f0] sm:$0xff]
        %v1035 = vld [vmem:[%s274 + $0x14f8] sm:$0xff]
        %v1036 = vld [vmem:[%s274 + $0x1500] sm:$0xff]
        %v1037 = vld [vmem:[%s274 + $0x1508] sm:$0xff]
        %v1038 = vld [vmem:[%s274 + $0x1510] sm:$0xff]
        %v1039 = vld [vmem:[%s274 + $0x1518] sm:$0xff]
        %v1040 = vld [vmem:[%s274 + $0x1520] sm:$0xff]
        %v1041 = vld [vmem:[%s274 + $0x1528] sm:$0xff]
        %v1042 = vld [vmem:[%s274 + $0x1530] sm:$0xff]
        %v1043 = vld [vmem:[%s274 + $0x1538] sm:$0xff]
        %v1044 = vld [vmem:[%s274 + $0x1540] sm:$0xff]
        %v1045 = vld [vmem:[%s274 + $0x1548] sm:$0xff]
        %v1046 = vld [vmem:[%s274 + $0x1550] sm:$0xff]
        %v1047 = vld [vmem:[%s274 + $0x1558] sm:$0xff]
        %v1048 = vld [vmem:[%s274 + $0x1560] sm:$0xff]
        %v1049 = vld [vmem:[%s274 + $0x1568] sm:$0xff]
        %v1050 = vld [vmem:[%s274 + $0x1570] sm:$0xff]
        %v1051 = vld [vmem:[%s274 + $0x1578] sm:$0xff]
        %v1052 = vld [vmem:[%s274 + $0x1580] sm:$0xff]
        %v1053 = vld [vmem:[%s274 + $0x1588] sm:$0xff]
        %v1054 = vld [vmem:[%s274 + $0x1590] sm:$0xff]
        %v1055 = vld [vmem:[%s274 + $0x1598] sm:$0xff]
        %v1056 = vld [vmem:[%s274 + $0x15a0] sm:$0xff]
        %v1057 = vld [vmem:[%s274 + $0x15a8] sm:$0xff]
        %v1058 = vld [vmem:[%s274 + $0x15b0] sm:$0xff]
        %v1059 = vld [vmem:[%s274 + $0x15b8] sm:$0xff]
        %v1060 = vld [vmem:[%s274 + $0x15c0] sm:$0xff]
        %v1061 = vld [vmem:[%s274 + $0x15c8] sm:$0xff]
        %v1062 = vld [vmem:[%s274 + $0x15d0] sm:$0xff]
        %v1063 = vld [vmem:[%s274 + $0x15d8] sm:$0xff]
        %v1064 = vld [vmem:[%s274 + $0x15e0] sm:$0xff]
        %v1065 = vld [vmem:[%s274 + $0x15e8] sm:$0xff]
        %v1066 = vld [vmem:[%s274 + $0x15f0] sm:$0xff]
        %v1067 = vld [vmem:[%s274 + $0x15f8] sm:$0xff]
        %v1068 = vld [vmem:[%s274 + $0x1600] sm:$0xff]
        %v1069 = vld [vmem:[%s274 + $0x1608] sm:$0xff]
        %v1070 = vld [vmem:[%s274 + $0x1610] sm:$0xff]
        %v1071 = vld [vmem:[%s274 + $0x1618] sm:$0xff]
        %v1072 = vld [vmem:[%s274 + $0x1620] sm:$0xff]
        %v1073 = vld [vmem:[%s274 + $0x1628] sm:$0xff]
        %v1074 = vld [vmem:[%s274 + $0x1630] sm:$0xff]
        %v1075 = vld [vmem:[%s274 + $0x1638] sm:$0xff]
        %v1076 = vld [vmem:[%s274 + $0x1640] sm:$0xff]
        %v1077 = vld [vmem:[%s274 + $0x1648] sm:$0xff]
        %v1078 = vld [vmem:[%s274 + $0x1650] sm:$0xff]
        %v1079 = vld [vmem:[%s274 + $0x1658] sm:$0xff]
        %v1080 = vld [vmem:[%s274 + $0x1660] sm:$0xff]
        %v1081 = vld [vmem:[%s274 + $0x1668] sm:$0xff]
        %v1082 = vld [vmem:[%s274 + $0x1670] sm:$0xff]
        %v1083 = vld [vmem:[%s274 + $0x1678] sm:$0xff]
        %v1084 = vld [vmem:[%s274 + $0x1680] sm:$0xff]
        %v1085 = vld [vmem:[%s274 + $0x1688] sm:$0xff]
        %v1086 = vld [vmem:[%s274 + $0x1690] sm:$0xff]
        %v1087 = vld [vmem:[%s274 + $0x1698] sm:$0xff]
        %v1088 = vld [vmem:[%s274 + $0x16a0] sm:$0xff]
        %v1089 = vld [vmem:[%s274 + $0x16a8] sm:$0xff]
        %v1090 = vld [vmem:[%s274 + $0x16b0] sm:$0xff]
        %v1091 = vld [vmem:[%s274 + $0x16b8] sm:$0xff]
        %v1092 = vld [vmem:[%s274 + $0x16c0] sm:$0xff]
        %v1093 = vld [vmem:[%s274 + $0x16c8] sm:$0xff]
        %v1094 = vld [vmem:[%s274 + $0x16d0] sm:$0xff]
        %v1095 = vld [vmem:[%s274 + $0x16d8] sm:$0xff]
        %v1096 = vld [vmem:[%s274 + $0x16e0] sm:$0xff]
        %v1097 = vld [vmem:[%s274 + $0x16e8] sm:$0xff]
        %v1098 = vld [vmem:[%s274 + $0x16f0] sm:$0xff]
        %v1099 = vld [vmem:[%s274 + $0x16f8] sm:$0xff]
        %v1100 = vld [vmem:[%s274 + $0x1700] sm:$0xff]
        %v1101 = vld [vmem:[%s274 + $0x1708] sm:$0xff]
        %v1102 = vld [vmem:[%s274 + $0x1710] sm:$0xff]
        %v1103 = vld [vmem:[%s274 + $0x1718] sm:$0xff]
        %v1104 = vld [vmem:[%s274 + $0x1720] sm:$0xff]
        %v1105 = vld [vmem:[%s274 + $0x1728] sm:$0xff]
        %v1106 = vld [vmem:[%s274 + $0x1730] sm:$0xff]
        %v1107 = vld [vmem:[%s274 + $0x1738] sm:$0xff]
        %v1108 = vld [vmem:[%s274 + $0x1740] sm:$0xff]
        %v1109 = vld [vmem:[%s274 + $0x1748] sm:$0xff]
        %v1110 = vld [vmem:[%s274 + $0x1750] sm:$0xff]
        %v1111 = vld [vmem:[%s274 + $0x1758] sm:$0xff]
        %v1112 = vld [vmem:[%s274 + $0x1760] sm:$0xff]
        %v1113 = vld [vmem:[%s274 + $0x1768] sm:$0xff]
        %v1114 = vld [vmem:[%s274 + $0x1770] sm:$0xff]
        %v1115 = vld [vmem:[%s274 + $0x1778] sm:$0xff]
        %v1116 = vld [vmem:[%s274 + $0x1780] sm:$0xff]
        %v1117 = vld [vmem:[%s274 + $0x1788] sm:$0xff]
        %v1118 = vld [vmem:[%s274 + $0x1790] sm:$0xff]
        %v1119 = vld [vmem:[%s274 + $0x1798] sm:$0xff]
        %v1120 = vld [vmem:[%s274 + $0x17a0] sm:$0xff]
        %v1121 = vld [vmem:[%s274 + $0x17a8] sm:$0xff]
        %v1122 = vld [vmem:[%s274 + $0x17b0] sm:$0xff]
        %v1123 = vld [vmem:[%s274 + $0x17b8] sm:$0xff]
        %v1124 = vld [vmem:[%s274 + $0x17c0] sm:$0xff]
        %v1125 = vld [vmem:[%s274 + $0x17c8] sm:$0xff]
        %v1126 = vld [vmem:[%s274 + $0x17d0] sm:$0xff]
        %v1127 = vld [vmem:[%s274 + $0x17d8] sm:$0xff]
        %v1128 = vld [vmem:[%s274 + $0x17e0] sm:$0xff]
        %v1129 = vld [vmem:[%s274 + $0x17e8] sm:$0xff]
        %v1130 = vld [vmem:[%s274 + $0x17f0] sm:$0xff]
        %v1131 = vld [vmem:[%s274 + $0x17f8] sm:$0xff]
        %v1132 = vld [vmem:[%s274 + $0x1800] sm:$0xff]
        %v1133 = vld [vmem:[%s274 + $0x1808] sm:$0xff]
        %v1134 = vld [vmem:[%s274 + $0x1810] sm:$0xff]
        %v1135 = vld [vmem:[%s274 + $0x1818] sm:$0xff]
        %v1136 = vld [vmem:[%s274 + $0x1820] sm:$0xff]
        %v1137 = vld [vmem:[%s274 + $0x1828] sm:$0xff]
        %v1138 = vld [vmem:[%s274 + $0x1830] sm:$0xff]
        %v1139 = vld [vmem:[%s274 + $0x1838] sm:$0xff]
        %v1140 = vld [vmem:[%s274 + $0x1840] sm:$0xff]
        %v1141 = vld [vmem:[%s274 + $0x1848] sm:$0xff]
        %v1142 = vld [vmem:[%s274 + $0x1850] sm:$0xff]
        %v1143 = vld [vmem:[%s274 + $0x1858] sm:$0xff]
        %v1144 = vld [vmem:[%s274 + $0x1860] sm:$0xff]
        %v1145 = vld [vmem:[%s274 + $0x1868] sm:$0xff]
        %v1146 = vld [vmem:[%s274 + $0x1870] sm:$0xff]
        %v1147 = vld [vmem:[%s274 + $0x1878] sm:$0xff]
        %v1148 = vld [vmem:[%s274 + $0x1880] sm:$0xff]
        %v1149 = vld [vmem:[%s274 + $0x1888] sm:$0xff]
        %v1150 = vld [vmem:[%s274 + $0x1890] sm:$0xff]
        %v1151 = vld [vmem:[%s274 + $0x1898] sm:$0xff]
        %v1152 = vld [vmem:[%s274 + $0x18a0] sm:$0xff]
        %v1153 = vld [vmem:[%s274 + $0x18a8] sm:$0xff]
        %v1154 = vld [vmem:[%s274 + $0x18b0] sm:$0xff]
        %v1155 = vld [vmem:[%s274 + $0x18b8] sm:$0xff]
        %v1156 = vld [vmem:[%s274 + $0x18c0] sm:$0xff]
        %v1157 = vld [vmem:[%s274 + $0x18c8] sm:$0xff]
        %v1158 = vld [vmem:[%s274 + $0x18d0] sm:$0xff]
        %v1159 = vld [vmem:[%s274 + $0x18d8] sm:$0xff]
        %v1160 = vld [vmem:[%s274 + $0x18e0] sm:$0xff]
        %v1161 = vld [vmem:[%s274 + $0x18e8] sm:$0xff]
        %v1162 = vld [vmem:[%s274 + $0x18f0] sm:$0xff]
        %v1163 = vld [vmem:[%s274 + $0x18f8] sm:$0xff]
        %v1164 = vld [vmem:[%s274 + $0x1900] sm:$0xff]
        %v1165 = vld [vmem:[%s274 + $0x1908] sm:$0xff]
        %v1166 = vld [vmem:[%s274 + $0x1910] sm:$0xff]
        %v1167 = vld [vmem:[%s274 + $0x1918] sm:$0xff]
        %v1168 = vld [vmem:[%s274 + $0x1920] sm:$0xff]
        %v1169 = vld [vmem:[%s274 + $0x1928] sm:$0xff]
        %v1170 = vld [vmem:[%s274 + $0x1930] sm:$0xff]
        %v1171 = vld [vmem:[%s274 + $0x1938] sm:$0xff]
        %v1172 = vld [vmem:[%s274 + $0x1940] sm:$0xff]
        %v1173 = vld [vmem:[%s274 + $0x1948] sm:$0xff]
        %v1174 = vld [vmem:[%s274 + $0x1950] sm:$0xff]
        %v1175 = vld [vmem:[%s274 + $0x1958] sm:$0xff]
        %v1176 = vld [vmem:[%s274 + $0x1960] sm:$0xff]
        %v1177 = vld [vmem:[%s274 + $0x1968] sm:$0xff]
        %v1178 = vld [vmem:[%s274 + $0x1970] sm:$0xff]
        %v1179 = vld [vmem:[%s274 + $0x1978] sm:$0xff]
        %v1180 = vld [vmem:[%s274 + $0x1980] sm:$0xff]
        %v1181 = vld [vmem:[%s274 + $0x1988] sm:$0xff]
        %v1182 = vld [vmem:[%s274 + $0x1990] sm:$0xff]
        %v1183 = vld [vmem:[%s274 + $0x1998] sm:$0xff]
        %v1184 = vld [vmem:[%s274 + $0x19a0] sm:$0xff]
        %v1185 = vld [vmem:[%s274 + $0x19a8] sm:$0xff]
        %v1186 = vld [vmem:[%s274 + $0x19b0] sm:$0xff]
        %v1187 = vld [vmem:[%s274 + $0x19b8] sm:$0xff]
        %v1188 = vld [vmem:[%s274 + $0x19c0] sm:$0xff]
        %v1189 = vld [vmem:[%s274 + $0x19c8] sm:$0xff]
        %v1190 = vld [vmem:[%s274 + $0x19d0] sm:$0xff]
        %v1191 = vld [vmem:[%s274 + $0x19d8] sm:$0xff]
        %v1192 = vld [vmem:[%s274 + $0x19e0] sm:$0xff]
        %v1193 = vld [vmem:[%s274 + $0x19e8] sm:$0xff]
        %v1194 = vld [vmem:[%s274 + $0x19f0] sm:$0xff]
        %v1195 = vld [vmem:[%s274 + $0x19f8] sm:$0xff]
        %v1196 = vld [vmem:[%s274 + $0x1a00] sm:$0xff]
        %v1197 = vld [vmem:[%s274 + $0x1a08] sm:$0xff]
        %v1198 = vld [vmem:[%s274 + $0x1a10] sm:$0xff]
        %v1199 = vld [vmem:[%s274 + $0x1a18] sm:$0xff]
        %v1200 = vld [vmem:[%s274 + $0x1a20] sm:$0xff]
        %v1201 = vld [vmem:[%s274 + $0x1a28] sm:$0xff]
        %v1202 = vld [vmem:[%s274 + $0x1a30] sm:$0xff]
        %v1203 = vld [vmem:[%s274 + $0x1a38] sm:$0xff]
        %v1204 = vld [vmem:[%s274 + $0x1a40] sm:$0xff]
        %v1205 = vld [vmem:[%s274 + $0x1a48] sm:$0xff]
        %v1206 = vld [vmem:[%s274 + $0x1a50] sm:$0xff]
        %v1207 = vld [vmem:[%s274 + $0x1a58] sm:$0xff]
        %v1208 = vld [vmem:[%s274 + $0x1a60] sm:$0xff]
        %v1209 = vld [vmem:[%s274 + $0x1a68] sm:$0xff]
        %v1210 = vld [vmem:[%s274 + $0x1a70] sm:$0xff]
        %v1211 = vld [vmem:[%s274 + $0x1a78] sm:$0xff]
        %v1212 = vld [vmem:[%s274 + $0x1a80] sm:$0xff]
        %v1213 = vld [vmem:[%s274 + $0x1a88] sm:$0xff]
        %v1214 = vld [vmem:[%s274 + $0x1a90] sm:$0xff]
        %v1215 = vld [vmem:[%s274 + $0x1a98] sm:$0xff]
        %v1216 = vld [vmem:[%s274 + $0x1aa0] sm:$0xff]
        %v1217 = vld [vmem:[%s274 + $0x1aa8] sm:$0xff]
        %v1218 = vld [vmem:[%s274 + $0x1ab0] sm:$0xff]
        %v1219 = vld [vmem:[%s274 + $0x1ab8] sm:$0xff]
        %v1220 = vld [vmem:[%s274 + $0x1ac0] sm:$0xff]
        %v1221 = vld [vmem:[%s274 + $0x1ac8] sm:$0xff]
        %v1222 = vld [vmem:[%s274 + $0x1ad0] sm:$0xff]
        %v1223 = vld [vmem:[%s274 + $0x1ad8] sm:$0xff]
        %v1224 = vld [vmem:[%s274 + $0x1ae0] sm:$0xff]
        %v1225 = vld [vmem:[%s274 + $0x1ae8] sm:$0xff]
        %v1226 = vld [vmem:[%s274 + $0x1af0] sm:$0xff]
        %v1227 = vld [vmem:[%s274 + $0x1af8] sm:$0xff]
        %v1228 = vld [vmem:[%s274 + $0x1b00] sm:$0xff]
        %v1229 = vld [vmem:[%s274 + $0x1b08] sm:$0xff]
        %v1230 = vld [vmem:[%s274 + $0x1b10] sm:$0xff]
        %v1231 = vld [vmem:[%s274 + $0x1b18] sm:$0xff]
        %v1232 = vld [vmem:[%s274 + $0x1b20] sm:$0xff]
        %v1233 = vld [vmem:[%s274 + $0x1b28] sm:$0xff]
        %v1234 = vld [vmem:[%s274 + $0x1b30] sm:$0xff]
        %v1235 = vld [vmem:[%s274 + $0x1b38] sm:$0xff]
        %v1236 = vld [vmem:[%s274 + $0x1b40] sm:$0xff]
        %v1237 = vld [vmem:[%s274 + $0x1b48] sm:$0xff]
        %v1238 = vld [vmem:[%s274 + $0x1b50] sm:$0xff]
        %v1239 = vld [vmem:[%s274 + $0x1b58] sm:$0xff]
        %v1240 = vld [vmem:[%s274 + $0x1b60] sm:$0xff]
        %v1241 = vld [vmem:[%s274 + $0x1b68] sm:$0xff]
        %v1242 = vld [vmem:[%s274 + $0x1b70] sm:$0xff]
        %v1243 = vld [vmem:[%s274 + $0x1b78] sm:$0xff]
        %v1244 = vld [vmem:[%s274 + $0x1b80] sm:$0xff]
        %v1245 = vld [vmem:[%s274 + $0x1b88] sm:$0xff]
        %v1246 = vld [vmem:[%s274 + $0x1b90] sm:$0xff]
        %v1247 = vld [vmem:[%s274 + $0x1b98] sm:$0xff]
        %v1248 = vld [vmem:[%s274 + $0x1ba0] sm:$0xff]
        %v1249 = vld [vmem:[%s274 + $0x1ba8] sm:$0xff]
        %v1250 = vld [vmem:[%s274 + $0x1bb0] sm:$0xff]
        %v1251 = vld [vmem:[%s274 + $0x1bb8] sm:$0xff]
        %v1252 = vld [vmem:[%s274 + $0x1bc0] sm:$0xff]
        %v1253 = vld [vmem:[%s274 + $0x1bc8] sm:$0xff]
        %v1254 = vld [vmem:[%s274 + $0x1bd0] sm:$0xff]
        %v1255 = vld [vmem:[%s274 + $0x1bd8] sm:$0xff]
        %v1256 = vld [vmem:[%s274 + $0x1be0] sm:$0xff]
        %v1257 = vld [vmem:[%s274 + $0x1be8] sm:$0xff]
        %v1258 = vld [vmem:[%s274 + $0x1bf0] sm:$0xff]
        %v1259 = vld [vmem:[%s274 + $0x1bf8] sm:$0xff]
        %v1260 = vld [vmem:[%s274 + $0x1c00] sm:$0xff]
        %v1261 = vld [vmem:[%s274 + $0x1c08] sm:$0xff]
        %v1262 = vld [vmem:[%s274 + $0x1c10] sm:$0xff]
        %v1263 = vld [vmem:[%s274 + $0x1c18] sm:$0xff]
        %v1264 = vld [vmem:[%s274 + $0x1c20] sm:$0xff]
        %v1265 = vld [vmem:[%s274 + $0x1c28] sm:$0xff]
        %v1266 = vld [vmem:[%s274 + $0x1c30] sm:$0xff]
        %v1267 = vld [vmem:[%s274 + $0x1c38] sm:$0xff]
        %v1268 = vld [vmem:[%s274 + $0x1c40] sm:$0xff]
        %v1269 = vld [vmem:[%s274 + $0x1c48] sm:$0xff]
        %v1270 = vld [vmem:[%s274 + $0x1c50] sm:$0xff]
        %v1271 = vld [vmem:[%s274 + $0x1c58] sm:$0xff]
        %v1272 = vld [vmem:[%s274 + $0x1c60] sm:$0xff]
        %v1273 = vld [vmem:[%s274 + $0x1c68] sm:$0xff]
        %v1274 = vld [vmem:[%s274 + $0x1c70] sm:$0xff]
        %v1275 = vld [vmem:[%s274 + $0x1c78] sm:$0xff]
        %v1276 = vld [vmem:[%s274 + $0x1c80] sm:$0xff]
        %v1277 = vld [vmem:[%s274 + $0x1c88] sm:$0xff]
        %v1278 = vld [vmem:[%s274 + $0x1c90] sm:$0xff]
        %v1279 = vld [vmem:[%s274 + $0x1c98] sm:$0xff]
        %v1280 = vld [vmem:[%s274 + $0x1ca0] sm:$0xff]
        %v1281 = vld [vmem:[%s274 + $0x1ca8] sm:$0xff]
        %v1282 = vld [vmem:[%s274 + $0x1cb0] sm:$0xff]
        %v1283 = vld [vmem:[%s274 + $0x1cb8] sm:$0xff]
        %v1284 = vld [vmem:[%s274 + $0x1cc0] sm:$0xff]
        %v1285 = vld [vmem:[%s274 + $0x1cc8] sm:$0xff]
        %v1286 = vld [vmem:[%s274 + $0x1cd0] sm:$0xff]
        %v1287 = vld [vmem:[%s274 + $0x1cd8] sm:$0xff]
        %v1288 = vld [vmem:[%s274 + $0x1ce0] sm:$0xff]
        %v1289 = vld [vmem:[%s274 + $0x1ce8] sm:$0xff]
        %v1290 = vld [vmem:[%s274 + $0x1cf0] sm:$0xff]
        %v1291 = vld [vmem:[%s274 + $0x1cf8] sm:$0xff]
        %v1292 = vld [vmem:[%s274 + $0x1d00] sm:$0xff]
        %v1293 = vld [vmem:[%s274 + $0x1d08] sm:$0xff]
        %v1294 = vld [vmem:[%s274 + $0x1d10] sm:$0xff]
        %v1295 = vld [vmem:[%s274 + $0x1d18] sm:$0xff]
        %v1296 = vld [vmem:[%s274 + $0x1d20] sm:$0xff]
        %v1297 = vld [vmem:[%s274 + $0x1d28] sm:$0xff]
        %v1298 = vld [vmem:[%s274 + $0x1d30] sm:$0xff]
        %v1299 = vld [vmem:[%s274 + $0x1d38] sm:$0xff]
        %v1300 = vld [vmem:[%s274 + $0x1d40] sm:$0xff]
        %v1301 = vld [vmem:[%s274 + $0x1d48] sm:$0xff]
        %v1302 = vld [vmem:[%s274 + $0x1d50] sm:$0xff]
        %v1303 = vld [vmem:[%s274 + $0x1d58] sm:$0xff]
        %v1304 = vld [vmem:[%s274 + $0x1d60] sm:$0xff]
        %v1305 = vld [vmem:[%s274 + $0x1d68] sm:$0xff]
        %v1306 = vld [vmem:[%s274 + $0x1d70] sm:$0xff]
        %v1307 = vld [vmem:[%s274 + $0x1d78] sm:$0xff]
        %v1308 = vld [vmem:[%s274 + $0x1d80] sm:$0xff]
        %v1309 = vld [vmem:[%s274 + $0x1d88] sm:$0xff]
        %v1310 = vld [vmem:[%s274 + $0x1d90] sm:$0xff]
        %v1311 = vld [vmem:[%s274 + $0x1d98] sm:$0xff]
        %v1312 = vld [vmem:[%s274 + $0x1da0] sm:$0xff]
        %v1313 = vld [vmem:[%s274 + $0x1da8] sm:$0xff]
        %v1314 = vld [vmem:[%s274 + $0x1db0] sm:$0xff]
        %v1315 = vld [vmem:[%s274 + $0x1db8] sm:$0xff]
        %v1316 = vld [vmem:[%s274 + $0x1dc0] sm:$0xff]
        %v1317 = vld [vmem:[%s274 + $0x1dc8] sm:$0xff]
        %v1318 = vld [vmem:[%s274 + $0x1dd0] sm:$0xff]
        %v1319 = vld [vmem:[%s274 + $0x1dd8] sm:$0xff]
        %v1320 = vld [vmem:[%s274 + $0x1de0] sm:$0xff]
        %v1321 = vld [vmem:[%s274 + $0x1de8] sm:$0xff]
        %v1322 = vld [vmem:[%s274 + $0x1df0] sm:$0xff]
        %v1323 = vld [vmem:[%s274 + $0x1df8] sm:$0xff]
        %v1324 = vld [vmem:[%s274 + $0x1e00] sm:$0xff]
        %v1325 = vld [vmem:[%s274 + $0x1e08] sm:$0xff]
        %v1326 = vld [vmem:[%s274 + $0x1e10] sm:$0xff]
        %v1327 = vld [vmem:[%s274 + $0x1e18] sm:$0xff]
        %v1328 = vld [vmem:[%s274 + $0x1e20] sm:$0xff]
        %v1329 = vld [vmem:[%s274 + $0x1e28] sm:$0xff]
        %v1330 = vld [vmem:[%s274 + $0x1e30] sm:$0xff]
        %v1331 = vld [vmem:[%s274 + $0x1e38] sm:$0xff]
        %v1332 = vld [vmem:[%s274 + $0x1e40] sm:$0xff]
        %v1333 = vld [vmem:[%s274 + $0x1e48] sm:$0xff]
        %v1334 = vld [vmem:[%s274 + $0x1e50] sm:$0xff]
        %v1335 = vld [vmem:[%s274 + $0x1e58] sm:$0xff]
        %v1336 = vld [vmem:[%s274 + $0x1e60] sm:$0xff]
        %v1337 = vld [vmem:[%s274 + $0x1e68] sm:$0xff]
        %v1338 = vld [vmem:[%s274 + $0x1e70] sm:$0xff]
        %v1339 = vld [vmem:[%s274 + $0x1e78] sm:$0xff]
        %v1340 = vld [vmem:[%s274 + $0x1e80] sm:$0xff]
        %v1341 = vld [vmem:[%s274 + $0x1e88] sm:$0xff]
        %v1342 = vld [vmem:[%s274 + $0x1e90] sm:$0xff]
        %v1343 = vld [vmem:[%s274 + $0x1e98] sm:$0xff]
        %v1344 = vld [vmem:[%s274 + $0x1ea0] sm:$0xff]
        %v1345 = vld [vmem:[%s274 + $0x1ea8] sm:$0xff]
        %v1346 = vld [vmem:[%s274 + $0x1eb0] sm:$0xff]
        %v1347 = vld [vmem:[%s274 + $0x1eb8] sm:$0xff]
        %v1348 = vld [vmem:[%s274 + $0x1ec0] sm:$0xff]
        %v1349 = vld [vmem:[%s274 + $0x1ec8] sm:$0xff]
        %v1350 = vld [vmem:[%s274 + $0x1ed0] sm:$0xff]
        %v1351 = vld [vmem:[%s274 + $0x1ed8] sm:$0xff]
        %v1352 = vld [vmem:[%s274 + $0x1ee0] sm:$0xff]
        %v1353 = vld [vmem:[%s274 + $0x1ee8] sm:$0xff]
        %v1354 = vld [vmem:[%s274 + $0x1ef0] sm:$0xff]
        %v1355 = vld [vmem:[%s274 + $0x1ef8] sm:$0xff]
        %v1356 = vld [vmem:[%s274 + $0x1f00] sm:$0xff]
        %v1357 = vld [vmem:[%s274 + $0x1f08] sm:$0xff]
        %v1358 = vld [vmem:[%s274 + $0x1f10] sm:$0xff]
        %v1359 = vld [vmem:[%s274 + $0x1f18] sm:$0xff]
        %v1360 = vld [vmem:[%s274 + $0x1f20] sm:$0xff]
        %v1361 = vld [vmem:[%s274 + $0x1f28] sm:$0xff]
        %v1362 = vld [vmem:[%s274 + $0x1f30] sm:$0xff]
        %v1363 = vld [vmem:[%s274 + $0x1f38] sm:$0xff]
        %v1364 = vld [vmem:[%s274 + $0x1f40] sm:$0xff]
        %v1365 = vld [vmem:[%s274 + $0x1f48] sm:$0xff]
        %v1366 = vld [vmem:[%s274 + $0x1f50] sm:$0xff]
        %v1367 = vld [vmem:[%s274 + $0x1f58] sm:$0xff]
        %v1368 = vld [vmem:[%s274 + $0x1f60] sm:$0xff]
        %v1369 = vld [vmem:[%s274 + $0x1f68] sm:$0xff]
        %v1370 = vld [vmem:[%s274 + $0x1f70] sm:$0xff]
        %v1371 = vld [vmem:[%s274 + $0x1f78] sm:$0xff]
        %v1372 = vld [vmem:[%s274 + $0x1f80] sm:$0xff]
        %v1373 = vld [vmem:[%s274 + $0x1f88] sm:$0xff]
        %v1374 = vld [vmem:[%s274 + $0x1f90] sm:$0xff]
        %v1375 = vld [vmem:[%s274 + $0x1f98] sm:$0xff]
        %v1376 = vld [vmem:[%s274 + $0x1fa0] sm:$0xff]
        %v1377 = vld [vmem:[%s274 + $0x1fa8] sm:$0xff]
        %v1378 = vld [vmem:[%s274 + $0x1fb0] sm:$0xff]
        %v1379 = vld [vmem:[%s274 + $0x1fb8] sm:$0xff]
        %v1380 = vld [vmem:[%s274 + $0x1fc0] sm:$0xff]
        %v1381 = vld [vmem:[%s274 + $0x1fc8] sm:$0xff]
        %v1382 = vld [vmem:[%s274 + $0x1fd0] sm:$0xff]
        %v1383 = vld [vmem:[%s274 + $0x1fd8] sm:$0xff]
        %v1384 = vld [vmem:[%s274 + $0x1fe0] sm:$0xff]
        %v1385 = vld [vmem:[%s274 + $0x1fe8] sm:$0xff]
        %v1386 = vld [vmem:[%s274 + $0x1ff0] sm:$0xff]
        %v1387 = vld [vmem:[%s274 + $0x1ff8] sm:$0xff]
        %1388 = vmatprep.subr.mxu0 %v365
        %1389 = vmatpush1.msra.mxu0 %v364
        %1390 = vmatprep.subr.mxu0 %v369
        %1391 = vmatpush1.msra.mxu0 %v368
        %1392 = vmatprep.subr.mxu0 %v373
        %1393 = vmatpush1.msra.mxu0 %v372
        %1394 = vmatprep.subr.mxu0 %v377
        %1395 = vmatpush1.msra.mxu0 %v376
        %1396 = vmatprep.subr.mxu0 %v381
        %1397 = vmatpush1.msra.mxu0 %v380
        %1398 = vmatprep.subr.mxu0 %v385
        %1399 = vmatpush1.msra.mxu0 %v384
        %1400 = vmatprep.subr.mxu0 %v389
        %1401 = vmatpush1.msra.mxu0 %v388
        %1402 = vmatprep.subr.mxu0 %v393
        %1403 = vmatpush1.msra.mxu0 %v392
        %1404 = vmatprep.subr.mxu0 %v397
        %1405 = vmatpush1.msra.mxu0 %v396
        %1406 = vmatprep.subr.mxu0 %v401
        %1407 = vmatpush1.msra.mxu0 %v400
        %1408 = vmatprep.subr.mxu0 %v405
        %1409 = vmatpush1.msra.mxu0 %v404
        %1410 = vmatprep.subr.mxu0 %v409
        %1411 = vmatpush1.msra.mxu0 %v408
        %1412 = vmatprep.subr.mxu0 %v413
        %1413 = vmatpush1.msra.mxu0 %v412
        %1414 = vmatprep.subr.mxu0 %v417
        %1415 = vmatpush1.msra.mxu0 %v416
        %1416 = vmatprep.subr.mxu0 %v421
        %1417 = vmatpush1.msra.mxu0 %v420
        %1418 = vmatprep.subr.mxu0 %v425
        %1419 = vmatpush1.msra.mxu0 %v424
        %1420 = vmatprep.subr.mxu0 %v429
        %1421 = vmatpush1.msra.mxu0 %v428
        %1422 = vmatprep.subr.mxu0 %v433
        %1423 = vmatpush1.msra.mxu0 %v432
        %1424 = vmatprep.subr.mxu0 %v437
        %1425 = vmatpush1.msra.mxu0 %v436
        %1426 = vmatprep.subr.mxu0 %v441
        %1427 = vmatpush1.msra.mxu0 %v440
        %1428 = vmatprep.subr.mxu0 %v445
        %1429 = vmatpush1.msra.mxu0 %v444
        %1430 = vmatprep.subr.mxu0 %v449
        %1431 = vmatpush1.msra.mxu0 %v448
        %1432 = vmatprep.subr.mxu0 %v453
        %1433 = vmatpush1.msra.mxu0 %v452
        %1434 = vmatprep.subr.mxu0 %v457
        %1435 = vmatpush1.msra.mxu0 %v456
        %1436 = vmatprep.subr.mxu0 %v461
        %1437 = vmatpush1.msra.mxu0 %v460
        %1438 = vmatprep.subr.mxu0 %v465
        %1439 = vmatpush1.msra.mxu0 %v464
        %1440 = vmatprep.subr.mxu0 %v469
        %1441 = vmatpush1.msra.mxu0 %v468
        %1442 = vmatprep.subr.mxu0 %v473
        %1443 = vmatpush1.msra.mxu0 %v472
        %1444 = vmatprep.subr.mxu0 %v477
        %1445 = vmatpush1.msra.mxu0 %v476
        %1446 = vmatprep.subr.mxu0 %v481
        %1447 = vmatpush1.msra.mxu0 %v480
        %1448 = vmatprep.subr.mxu0 %v485
        %1449 = vmatpush1.msra.mxu0 %v484
        %1450 = vmatprep.subr.mxu0 %v489
        %1451 = vmatpush1.msra.mxu0 %v488
        %1452 = vmatprep.mubr.f32.mxu0 %v349
        %1453 = vmatmul.mubr.f32.gmra.mrb[0].mxu0 %v348
        %v1454 = vpop.f32.mrb[0].mxu0
        %v1455 = vadd.f32 0.0, %v1454
        %v1456 = vpop.f32.mrb[0].mxu0
        %v1457 = vadd.f32 0.0, %v1456
        %1458 = vdwg.mxu0
        %1459 = vmatprep.subr.mxu0 %v493
        %1460 = vmatpush1.msra.mxu0 %v492
        %1461 = vmatprep.subr.mxu0 %v497
        %1462 = vmatpush1.msra.mxu0 %v496
        %1463 = vmatprep.subr.mxu0 %v501
        %1464 = vmatpush1.msra.mxu0 %v500
        %1465 = vmatprep.subr.mxu0 %v505
        %1466 = vmatpush1.msra.mxu0 %v504
        %1467 = vmatprep.subr.mxu0 %v509
        %1468 = vmatpush1.msra.mxu0 %v508
        %1469 = vmatprep.subr.mxu0 %v513
        %1470 = vmatpush1.msra.mxu0 %v512
        %1471 = vmatprep.subr.mxu0 %v517
        %1472 = vmatpush1.msra.mxu0 %v516
        %1473 = vmatprep.subr.mxu0 %v521
        %1474 = vmatpush1.msra.mxu0 %v520
        %1475 = vmatprep.subr.mxu0 %v525
        %1476 = vmatpush1.msra.mxu0 %v524
        %1477 = vmatprep.subr.mxu0 %v529
        %1478 = vmatpush1.msra.mxu0 %v528
        %1479 = vmatprep.subr.mxu0 %v533
        %1480 = vmatpush1.msra.mxu0 %v532
        %1481 = vmatprep.subr.mxu0 %v537
        %1482 = vmatpush1.msra.mxu0 %v536
        %1483 = vmatprep.subr.mxu0 %v541
        %1484 = vmatpush1.msra.mxu0 %v540
        %1485 = vmatprep.subr.mxu0 %v545
        %1486 = vmatpush1.msra.mxu0 %v544
        %1487 = vmatprep.subr.mxu0 %v549
        %1488 = vmatpush1.msra.mxu0 %v548
        %1489 = vmatprep.subr.mxu0 %v553
        %1490 = vmatpush1.msra.mxu0 %v552
        %1491 = vmatprep.subr.mxu0 %v557
        %1492 = vmatpush1.msra.mxu0 %v556
        %1493 = vmatprep.subr.mxu0 %v561
        %1494 = vmatpush1.msra.mxu0 %v560
        %1495 = vmatprep.subr.mxu0 %v565
        %1496 = vmatpush1.msra.mxu0 %v564
        %1497 = vmatprep.subr.mxu0 %v569
        %1498 = vmatpush1.msra.mxu0 %v568
        %1499 = vmatprep.subr.mxu0 %v573
        %1500 = vmatpush1.msra.mxu0 %v572
        %1501 = vmatprep.subr.mxu0 %v577
        %1502 = vmatpush1.msra.mxu0 %v576
        %1503 = vmatprep.subr.mxu0 %v581
        %1504 = vmatpush1.msra.mxu0 %v580
        %1505 = vmatprep.subr.mxu0 %v585
        %1506 = vmatpush1.msra.mxu0 %v584
        %1507 = vmatprep.subr.mxu0 %v589
        %1508 = vmatpush1.msra.mxu0 %v588
        %1509 = vmatprep.subr.mxu0 %v593
        %1510 = vmatpush1.msra.mxu0 %v592
        %1511 = vmatprep.subr.mxu0 %v597
        %1512 = vmatpush1.msra.mxu0 %v596
        %1513 = vmatprep.subr.mxu0 %v601
        %1514 = vmatpush1.msra.mxu0 %v600
        %1515 = vmatprep.subr.mxu0 %v605
        %1516 = vmatpush1.msra.mxu0 %v604
        %1517 = vmatprep.subr.mxu0 %v609
        %1518 = vmatpush1.msra.mxu0 %v608
        %1519 = vmatprep.subr.mxu0 %v613
        %1520 = vmatpush1.msra.mxu0 %v612
        %1521 = vmatprep.subr.mxu0 %v617
        %1522 = vmatpush1.msra.mxu0 %v616
        %1523 = vmatprep.mubr.f32.mxu0 %v351
        %1524 = vmatmul.mubr.f32.gmra.mrb[0].mxu0 %v350
        %v1525 = vpop.f32.mrb[0].mxu0
        %v1526 = vadd.f32 %v1455, %v1525
        %v1527 = vpop.f32.mrb[0].mxu0
        %v1528 = vadd.f32 %v1457, %v1527
        %1529 = vdwg.mxu0
        %1530 = vmatprep.subr.mxu0 %v621
        %1531 = vmatpush1.msra.mxu0 %v620
        %1532 = vmatprep.subr.mxu0 %v625
        %1533 = vmatpush1.msra.mxu0 %v624
        %1534 = vmatprep.subr.mxu0 %v629
        %1535 = vmatpush1.msra.mxu0 %v628
        %1536 = vmatprep.subr.mxu0 %v633
        %1537 = vmatpush1.msra.mxu0 %v632
        %1538 = vmatprep.subr.mxu0 %v637
        %1539 = vmatpush1.msra.mxu0 %v636
        %1540 = vmatprep.subr.mxu0 %v641
        %1541 = vmatpush1.msra.mxu0 %v640
        %1542 = vmatprep.subr.mxu0 %v645
        %1543 = vmatpush1.msra.mxu0 %v644
        %1544 = vmatprep.subr.mxu0 %v649
        %1545 = vmatpush1.msra.mxu0 %v648
        %1546 = vmatprep.subr.mxu0 %v653
        %1547 = vmatpush1.msra.mxu0 %v652
        %1548 = vmatprep.subr.mxu0 %v657
        %1549 = vmatpush1.msra.mxu0 %v656
        %1550 = vmatprep.subr.mxu0 %v661
        %1551 = vmatpush1.msra.mxu0 %v660
        %1552 = vmatprep.subr.mxu0 %v665
        %1553 = vmatpush1.msra.mxu0 %v664
        %1554 = vmatprep.subr.mxu0 %v669
        %1555 = vmatpush1.msra.mxu0 %v668
        %1556 = vmatprep.subr.mxu0 %v673
        %1557 = vmatpush1.msra.mxu0 %v672
        %1558 = vmatprep.subr.mxu0 %v677
        %1559 = vmatpush1.msra.mxu0 %v676
        %1560 = vmatprep.subr.mxu0 %v681
        %1561 = vmatpush1.msra.mxu0 %v680
        %1562 = vmatprep.subr.mxu0 %v685
        %1563 = vmatpush1.msra.mxu0 %v684
        %1564 = vmatprep.subr.mxu0 %v689
        %1565 = vmatpush1.msra.mxu0 %v688
        %1566 = vmatprep.subr.mxu0 %v693
        %1567 = vmatpush1.msra.mxu0 %v692
        %1568 = vmatprep.subr.mxu0 %v697
        %1569 = vmatpush1.msra.mxu0 %v696
        %1570 = vmatprep.subr.mxu0 %v701
        %1571 = vmatpush1.msra.mxu0 %v700
        %1572 = vmatprep.subr.mxu0 %v705
        %1573 = vmatpush1.msra.mxu0 %v704
        %1574 = vmatprep.subr.mxu0 %v709
        %1575 = vmatpush1.msra.mxu0 %v708
        %1576 = vmatprep.subr.mxu0 %v713
        %1577 = vmatpush1.msra.mxu0 %v712
        %1578 = vmatprep.subr.mxu0 %v717
        %1579 = vmatpush1.msra.mxu0 %v716
        %1580 = vmatprep.subr.mxu0 %v721
        %1581 = vmatpush1.msra.mxu0 %v720
        %1582 = vmatprep.subr.mxu0 %v725
        %1583 = vmatpush1.msra.mxu0 %v724
        %1584 = vmatprep.subr.mxu0 %v729
        %1585 = vmatpush1.msra.mxu0 %v728
        %1586 = vmatprep.subr.mxu0 %v733
        %1587 = vmatpush1.msra.mxu0 %v732
        %1588 = vmatprep.subr.mxu0 %v737
        %1589 = vmatpush1.msra.mxu0 %v736
        %1590 = vmatprep.subr.mxu0 %v741
        %1591 = vmatpush1.msra.mxu0 %v740
        %1592 = vmatprep.subr.mxu0 %v745
        %1593 = vmatpush1.msra.mxu0 %v744
        %1594 = vmatprep.mubr.f32.mxu0 %v353
        %1595 = vmatmul.mubr.f32.gmra.mrb[0].mxu0 %v352
        %v1596 = vpop.f32.mrb[0].mxu0
        %v1597 = vadd.f32 %v1526, %v1596
        %v1598 = vpop.f32.mrb[0].mxu0
        %v1599 = vadd.f32 %v1528, %v1598
        %1600 = vdwg.mxu0
        %1601 = vmatprep.subr.mxu0 %v749
        %1602 = vmatpush1.msra.mxu0 %v748
        %1603 = vmatprep.subr.mxu0 %v753
        %1604 = vmatpush1.msra.mxu0 %v752
        %1605 = vmatprep.subr.mxu0 %v757
        %1606 = vmatpush1.msra.mxu0 %v756
        %1607 = vmatprep.subr.mxu0 %v761
        %1608 = vmatpush1.msra.mxu0 %v760
        %1609 = vmatprep.subr.mxu0 %v765
        %1610 = vmatpush1.msra.mxu0 %v764
        %1611 = vmatprep.subr.mxu0 %v769
        %1612 = vmatpush1.msra.mxu0 %v768
        %1613 = vmatprep.subr.mxu0 %v773
        %1614 = vmatpush1.msra.mxu0 %v772
        %1615 = vmatprep.subr.mxu0 %v777
        %1616 = vmatpush1.msra.mxu0 %v776
        %1617 = vmatprep.subr.mxu0 %v781
        %1618 = vmatpush1.msra.mxu0 %v780
        %1619 = vmatprep.subr.mxu0 %v785
        %1620 = vmatpush1.msra.mxu0 %v784
        %1621 = vmatprep.subr.mxu0 %v789
        %1622 = vmatpush1.msra.mxu0 %v788
        %1623 = vmatprep.subr.mxu0 %v793
        %1624 = vmatpush1.msra.mxu0 %v792
        %1625 = vmatprep.subr.mxu0 %v797
        %1626 = vmatpush1.msra.mxu0 %v796
        %1627 = vmatprep.subr.mxu0 %v801
        %1628 = vmatpush1.msra.mxu0 %v800
        %1629 = vmatprep.subr.mxu0 %v805
        %1630 = vmatpush1.msra.mxu0 %v804
        %1631 = vmatprep.subr.mxu0 %v809
        %1632 = vmatpush1.msra.mxu0 %v808
        %1633 = vmatprep.subr.mxu0 %v813
        %1634 = vmatpush1.msra.mxu0 %v812
        %1635 = vmatprep.subr.mxu0 %v817
        %1636 = vmatpush1.msra.mxu0 %v816
        %1637 = vmatprep.subr.mxu0 %v821
        %1638 = vmatpush1.msra.mxu0 %v820
        %1639 = vmatprep.subr.mxu0 %v825
        %1640 = vmatpush1.msra.mxu0 %v824
        %1641 = vmatprep.subr.mxu0 %v829
        %1642 = vmatpush1.msra.mxu0 %v828
        %1643 = vmatprep.subr.mxu0 %v833
        %1644 = vmatpush1.msra.mxu0 %v832
        %1645 = vmatprep.subr.mxu0 %v837
        %1646 = vmatpush1.msra.mxu0 %v836
        %1647 = vmatprep.subr.mxu0 %v841
        %1648 = vmatpush1.msra.mxu0 %v840
        %1649 = vmatprep.subr.mxu0 %v845
        %1650 = vmatpush1.msra.mxu0 %v844
        %1651 = vmatprep.subr.mxu0 %v849
        %1652 = vmatpush1.msra.mxu0 %v848
        %1653 = vmatprep.subr.mxu0 %v853
        %1654 = vmatpush1.msra.mxu0 %v852
        %1655 = vmatprep.subr.mxu0 %v857
        %1656 = vmatpush1.msra.mxu0 %v856
        %1657 = vmatprep.subr.mxu0 %v861
        %1658 = vmatpush1.msra.mxu0 %v860
        %1659 = vmatprep.subr.mxu0 %v865
        %1660 = vmatpush1.msra.mxu0 %v864
        %1661 = vmatprep.subr.mxu0 %v869
        %1662 = vmatpush1.msra.mxu0 %v868
        %1663 = vmatprep.subr.mxu0 %v873
        %1664 = vmatpush1.msra.mxu0 %v872
        %1665 = vmatprep.mubr.f32.mxu0 %v355
        %1666 = vmatmul.mubr.f32.gmra.mrb[0].mxu0 %v354
        %v1667 = vpop.f32.mrb[0].mxu0
        %v1668 = vadd.f32 %v1597, %v1667
        %v1669 = vpop.f32.mrb[0].mxu0
        %v1670 = vadd.f32 %v1599, %v1669
        %1671 = vdwg.mxu0
        %1672 = vmatprep.subr.mxu0 %v877
        %1673 = vmatpush1.msra.mxu0 %v876
        %1674 = vmatprep.subr.mxu0 %v881
        %1675 = vmatpush1.msra.mxu0 %v880
        %1676 = vmatprep.subr.mxu0 %v885
        %1677 = vmatpush1.msra.mxu0 %v884
        %1678 = vmatprep.subr.mxu0 %v889
        %1679 = vmatpush1.msra.mxu0 %v888
        %1680 = vmatprep.subr.mxu0 %v893
        %1681 = vmatpush1.msra.mxu0 %v892
        %1682 = vmatprep.subr.mxu0 %v897
        %1683 = vmatpush1.msra.mxu0 %v896
        %1684 = vmatprep.subr.mxu0 %v901
        %1685 = vmatpush1.msra.mxu0 %v900
        %1686 = vmatprep.subr.mxu0 %v905
        %1687 = vmatpush1.msra.mxu0 %v904
        %1688 = vmatprep.subr.mxu0 %v909
        %1689 = vmatpush1.msra.mxu0 %v908
        %1690 = vmatprep.subr.mxu0 %v913
        %1691 = vmatpush1.msra.mxu0 %v912
        %1692 = vmatprep.subr.mxu0 %v917
        %1693 = vmatpush1.msra.mxu0 %v916
        %1694 = vmatprep.subr.mxu0 %v921
        %1695 = vmatpush1.msra.mxu0 %v920
        %1696 = vmatprep.subr.mxu0 %v925
        %1697 = vmatpush1.msra.mxu0 %v924
        %1698 = vmatprep.subr.mxu0 %v929
        %1699 = vmatpush1.msra.mxu0 %v928
        %1700 = vmatprep.subr.mxu0 %v933
        %1701 = vmatpush1.msra.mxu0 %v932
        %1702 = vmatprep.subr.mxu0 %v937
        %1703 = vmatpush1.msra.mxu0 %v936
        %1704 = vmatprep.subr.mxu0 %v941
        %1705 = vmatpush1.msra.mxu0 %v940
        %1706 = vmatprep.subr.mxu0 %v945
        %1707 = vmatpush1.msra.mxu0 %v944
        %1708 = vmatprep.subr.mxu0 %v949
        %1709 = vmatpush1.msra.mxu0 %v948
        %1710 = vmatprep.subr.mxu0 %v953
        %1711 = vmatpush1.msra.mxu0 %v952
        %1712 = vmatprep.subr.mxu0 %v957
        %1713 = vmatpush1.msra.mxu0 %v956
        %1714 = vmatprep.subr.mxu0 %v961
        %1715 = vmatpush1.msra.mxu0 %v960
        %1716 = vmatprep.subr.mxu0 %v965
        %1717 = vmatpush1.msra.mxu0 %v964
        %1718 = vmatprep.subr.mxu0 %v969
        %1719 = vmatpush1.msra.mxu0 %v968
        %1720 = vmatprep.subr.mxu0 %v973
        %1721 = vmatpush1.msra.mxu0 %v972
        %1722 = vmatprep.subr.mxu0 %v977
        %1723 = vmatpush1.msra.mxu0 %v976
        %1724 = vmatprep.subr.mxu0 %v981
        %1725 = vmatpush1.msra.mxu0 %v980
        %1726 = vmatprep.subr.mxu0 %v985
        %1727 = vmatpush1.msra.mxu0 %v984
        %1728 = vmatprep.subr.mxu0 %v989
        %1729 = vmatpush1.msra.mxu0 %v988
        %1730 = vmatprep.subr.mxu0 %v993
        %1731 = vmatpush1.msra.mxu0 %v992
        %1732 = vmatprep.subr.mxu0 %v997
        %1733 = vmatpush1.msra.mxu0 %v996
        %1734 = vmatprep.subr.mxu0 %v1001
        %1735 = vmatpush1.msra.mxu0 %v1000
        %1736 = vmatprep.mubr.f32.mxu0 %v357
        %1737 = vmatmul.mubr.f32.gmra.mrb[0].mxu0 %v356
        %v1738 = vpop.f32.mrb[0].mxu0
        %v1739 = vadd.f32 %v1668, %v1738
        %v1740 = vpop.f32.mrb[0].mxu0
        %v1741 = vadd.f32 %v1670, %v1740
        %1742 = vdwg.mxu0
        %1743 = vmatprep.subr.mxu0 %v1005
        %1744 = vmatpush1.msra.mxu0 %v1004
        %1745 = vmatprep.subr.mxu0 %v1009
        %1746 = vmatpush1.msra.mxu0 %v1008
        %1747 = vmatprep.subr.mxu0 %v1013
        %1748 = vmatpush1.msra.mxu0 %v1012
        %1749 = vmatprep.subr.mxu0 %v1017
        %1750 = vmatpush1.msra.mxu0 %v1016
        %1751 = vmatprep.subr.mxu0 %v1021
        %1752 = vmatpush1.msra.mxu0 %v1020
        %1753 = vmatprep.subr.mxu0 %v1025
        %1754 = vmatpush1.msra.mxu0 %v1024
        %1755 = vmatprep.subr.mxu0 %v1029
        %1756 = vmatpush1.msra.mxu0 %v1028
        %1757 = vmatprep.subr.mxu0 %v1033
        %1758 = vmatpush1.msra.mxu0 %v1032
        %1759 = vmatprep.subr.mxu0 %v1037
        %1760 = vmatpush1.msra.mxu0 %v1036
        %1761 = vmatprep.subr.mxu0 %v1041
        %1762 = vmatpush1.msra.mxu0 %v1040
        %1763 = vmatprep.subr.mxu0 %v1045
        %1764 = vmatpush1.msra.mxu0 %v1044
        %1765 = vmatprep.subr.mxu0 %v1049
        %1766 = vmatpush1.msra.mxu0 %v1048
        %1767 = vmatprep.subr.mxu0 %v1053
        %1768 = vmatpush1.msra.mxu0 %v1052
        %1769 = vmatprep.subr.mxu0 %v1057
        %1770 = vmatpush1.msra.mxu0 %v1056
        %1771 = vmatprep.subr.mxu0 %v1061
        %1772 = vmatpush1.msra.mxu0 %v1060
        %1773 = vmatprep.subr.mxu0 %v1065
        %1774 = vmatpush1.msra.mxu0 %v1064
        %1775 = vmatprep.subr.mxu0 %v1069
        %1776 = vmatpush1.msra.mxu0 %v1068
        %1777 = vmatprep.subr.mxu0 %v1073
        %1778 = vmatpush1.msra.mxu0 %v1072
        %1779 = vmatprep.subr.mxu0 %v1077
        %1780 = vmatpush1.msra.mxu0 %v1076
        %1781 = vmatprep.subr.mxu0 %v1081
        %1782 = vmatpush1.msra.mxu0 %v1080
        %1783 = vmatprep.subr.mxu0 %v1085
        %1784 = vmatpush1.msra.mxu0 %v1084
        %1785 = vmatprep.subr.mxu0 %v1089
        %1786 = vmatpush1.msra.mxu0 %v1088
        %1787 = vmatprep.subr.mxu0 %v1093
        %1788 = vmatpush1.msra.mxu0 %v1092
        %1789 = vmatprep.subr.mxu0 %v1097
        %1790 = vmatpush1.msra.mxu0 %v1096
        %1791 = vmatprep.subr.mxu0 %v1101
        %1792 = vmatpush1.msra.mxu0 %v1100
        %1793 = vmatprep.subr.mxu0 %v1105
        %1794 = vmatpush1.msra.mxu0 %v1104
        %1795 = vmatprep.subr.mxu0 %v1109
        %1796 = vmatpush1.msra.mxu0 %v1108
        %1797 = vmatprep.subr.mxu0 %v1113
        %1798 = vmatpush1.msra.mxu0 %v1112
        %1799 = vmatprep.subr.mxu0 %v1117
        %1800 = vmatpush1.msra.mxu0 %v1116
        %1801 = vmatprep.subr.mxu0 %v1121
        %1802 = vmatpush1.msra.mxu0 %v1120
        %1803 = vmatprep.subr.mxu0 %v1125
        %1804 = vmatpush1.msra.mxu0 %v1124
        %1805 = vmatprep.subr.mxu0 %v1129
        %1806 = vmatpush1.msra.mxu0 %v1128
        %1807 = vmatprep.mubr.f32.mxu0 %v359
        %1808 = vmatmul.mubr.f32.gmra.mrb[0].mxu0 %v358
        %v1809 = vpop.f32.mrb[0].mxu0
        %v1810 = vadd.f32 %v1739, %v1809
        %v1811 = vpop.f32.mrb[0].mxu0
        %v1812 = vadd.f32 %v1741, %v1811
        %1813 = vdwg.mxu0
        %1814 = vmatprep.subr.mxu0 %v1133
        %1815 = vmatpush1.msra.mxu0 %v1132
        %1816 = vmatprep.subr.mxu0 %v1137
        %1817 = vmatpush1.msra.mxu0 %v1136
        %1818 = vmatprep.subr.mxu0 %v1141
        %1819 = vmatpush1.msra.mxu0 %v1140
        %1820 = vmatprep.subr.mxu0 %v1145
        %1821 = vmatpush1.msra.mxu0 %v1144
        %1822 = vmatprep.subr.mxu0 %v1149
        %1823 = vmatpush1.msra.mxu0 %v1148
        %1824 = vmatprep.subr.mxu0 %v1153
        %1825 = vmatpush1.msra.mxu0 %v1152
        %1826 = vmatprep.subr.mxu0 %v1157
        %1827 = vmatpush1.msra.mxu0 %v1156
        %1828 = vmatprep.subr.mxu0 %v1161
        %1829 = vmatpush1.msra.mxu0 %v1160
        %1830 = vmatprep.subr.mxu0 %v1165
        %1831 = vmatpush1.msra.mxu0 %v1164
        %1832 = vmatprep.subr.mxu0 %v1169
        %1833 = vmatpush1.msra.mxu0 %v1168
        %1834 = vmatprep.subr.mxu0 %v1173
        %1835 = vmatpush1.msra.mxu0 %v1172
        %1836 = vmatprep.subr.mxu0 %v1177
        %1837 = vmatpush1.msra.mxu0 %v1176
        %1838 = vmatprep.subr.mxu0 %v1181
        %1839 = vmatpush1.msra.mxu0 %v1180
        %1840 = vmatprep.subr.mxu0 %v1185
        %1841 = vmatpush1.msra.mxu0 %v1184
        %1842 = vmatprep.subr.mxu0 %v1189
        %1843 = vmatpush1.msra.mxu0 %v1188
        %1844 = vmatprep.subr.mxu0 %v1193
        %1845 = vmatpush1.msra.mxu0 %v1192
        %1846 = vmatprep.subr.mxu0 %v1197
        %1847 = vmatpush1.msra.mxu0 %v1196
        %1848 = vmatprep.subr.mxu0 %v1201
        %1849 = vmatpush1.msra.mxu0 %v1200
        %1850 = vmatprep.subr.mxu0 %v1205
        %1851 = vmatpush1.msra.mxu0 %v1204
        %1852 = vmatprep.subr.mxu0 %v1209
        %1853 = vmatpush1.msra.mxu0 %v1208
        %1854 = vmatprep.subr.mxu0 %v1213
        %1855 = vmatpush1.msra.mxu0 %v1212
        %1856 = vmatprep.subr.mxu0 %v1217
        %1857 = vmatpush1.msra.mxu0 %v1216
        %1858 = vmatprep.subr.mxu0 %v1221
        %1859 = vmatpush1.msra.mxu0 %v1220
        %1860 = vmatprep.subr.mxu0 %v1225
        %1861 = vmatpush1.msra.mxu0 %v1224
        %1862 = vmatprep.subr.mxu0 %v1229
        %1863 = vmatpush1.msra.mxu0 %v1228
        %1864 = vmatprep.subr.mxu0 %v1233
        %1865 = vmatpush1.msra.mxu0 %v1232
        %1866 = vmatprep.subr.mxu0 %v1237
        %1867 = vmatpush1.msra.mxu0 %v1236
        %1868 = vmatprep.subr.mxu0 %v1241
        %1869 = vmatpush1.msra.mxu0 %v1240
        %1870 = vmatprep.subr.mxu0 %v1245
        %1871 = vmatpush1.msra.mxu0 %v1244
        %1872 = vmatprep.subr.mxu0 %v1249
        %1873 = vmatpush1.msra.mxu0 %v1248
        %1874 = vmatprep.subr.mxu0 %v1253
        %1875 = vmatpush1.msra.mxu0 %v1252
        %1876 = vmatprep.subr.mxu0 %v1257
        %1877 = vmatpush1.msra.mxu0 %v1256
        %1878 = vmatprep.mubr.f32.mxu0 %v361
        %1879 = vmatmul.mubr.f32.gmra.mrb[0].mxu0 %v360
        %v1880 = vpop.f32.mrb[0].mxu0
        %v1881 = vadd.f32 %v1810, %v1880
        %v1882 = vpop.f32.mrb[0].mxu0
        %v1883 = vadd.f32 %v1812, %v1882
        %1884 = vdwg.mxu0
        %1885 = vmatprep.subr.mxu0 %v1261
        %1886 = vmatpush1.msra.mxu0 %v1260
        %1887 = vmatprep.subr.mxu0 %v1265
        %1888 = vmatpush1.msra.mxu0 %v1264
        %1889 = vmatprep.subr.mxu0 %v1269
        %1890 = vmatpush1.msra.mxu0 %v1268
        %1891 = vmatprep.subr.mxu0 %v1273
        %1892 = vmatpush1.msra.mxu0 %v1272
        %1893 = vmatprep.subr.mxu0 %v1277
        %1894 = vmatpush1.msra.mxu0 %v1276
        %1895 = vmatprep.subr.mxu0 %v1281
        %1896 = vmatpush1.msra.mxu0 %v1280
        %1897 = vmatprep.subr.mxu0 %v1285
        %1898 = vmatpush1.msra.mxu0 %v1284
        %1899 = vmatprep.subr.mxu0 %v1289
        %1900 = vmatpush1.msra.mxu0 %v1288
        %1901 = vmatprep.subr.mxu0 %v1293
        %1902 = vmatpush1.msra.mxu0 %v1292
        %1903 = vmatprep.subr.mxu0 %v1297
        %1904 = vmatpush1.msra.mxu0 %v1296
        %1905 = vmatprep.subr.mxu0 %v1301
        %1906 = vmatpush1.msra.mxu0 %v1300
        %1907 = vmatprep.subr.mxu0 %v1305
        %1908 = vmatpush1.msra.mxu0 %v1304
        %1909 = vmatprep.subr.mxu0 %v1309
        %1910 = vmatpush1.msra.mxu0 %v1308
        %1911 = vmatprep.subr.mxu0 %v1313
        %1912 = vmatpush1.msra.mxu0 %v1312
        %1913 = vmatprep.subr.mxu0 %v1317
        %1914 = vmatpush1.msra.mxu0 %v1316
        %1915 = vmatprep.subr.mxu0 %v1321
        %1916 = vmatpush1.msra.mxu0 %v1320
        %1917 = vmatprep.subr.mxu0 %v1325
        %1918 = vmatpush1.msra.mxu0 %v1324
        %1919 = vmatprep.subr.mxu0 %v1329
        %1920 = vmatpush1.msra.mxu0 %v1328
        %1921 = vmatprep.subr.mxu0 %v1333
        %1922 = vmatpush1.msra.mxu0 %v1332
        %1923 = vmatprep.subr.mxu0 %v1337
        %1924 = vmatpush1.msra.mxu0 %v1336
        %1925 = vmatprep.subr.mxu0 %v1341
        %1926 = vmatpush1.msra.mxu0 %v1340
        %1927 = vmatprep.subr.mxu0 %v1345
        %1928 = vmatpush1.msra.mxu0 %v1344
        %1929 = vmatprep.subr.mxu0 %v1349
        %1930 = vmatpush1.msra.mxu0 %v1348
        %1931 = vmatprep.subr.mxu0 %v1353
        %1932 = vmatpush1.msra.mxu0 %v1352
        %1933 = vmatprep.subr.mxu0 %v1357
        %1934 = vmatpush1.msra.mxu0 %v1356
        %1935 = vmatprep.subr.mxu0 %v1361
        %1936 = vmatpush1.msra.mxu0 %v1360
        %1937 = vmatprep.subr.mxu0 %v1365
        %1938 = vmatpush1.msra.mxu0 %v1364
        %1939 = vmatprep.subr.mxu0 %v1369
        %1940 = vmatpush1.msra.mxu0 %v1368
        %1941 = vmatprep.subr.mxu0 %v1373
        %1942 = vmatpush1.msra.mxu0 %v1372
        %1943 = vmatprep.subr.mxu0 %v1377
        %1944 = vmatpush1.msra.mxu0 %v1376
        %1945 = vmatprep.subr.mxu0 %v1381
        %1946 = vmatpush1.msra.mxu0 %v1380
        %1947 = vmatprep.subr.mxu0 %v1385
        %1948 = vmatpush1.msra.mxu0 %v1384
        %1949 = vmatprep.mubr.f32.mxu0 %v363
        %1950 = vmatmul.mubr.f32.gmra.mrb[0].mxu0 %v362
        %v1951 = vpop.f32.mrb[0].mxu0
        %v1952 = vadd.f32 %v1881, %v1951
        %v1953 = vpop.f32.mrb[0].mxu0
        %v1954 = vadd.f32 %v1883, %v1953
        %1955 = vdwg.mxu0
        %1956 = vmatprep.subr.mxu0 %v367
        %1957 = vmatpush1.msra.mxu0 %v366
        %1958 = vmatprep.subr.mxu0 %v371
        %1959 = vmatpush1.msra.mxu0 %v370
        %1960 = vmatprep.subr.mxu0 %v375
        %1961 = vmatpush1.msra.mxu0 %v374
        %1962 = vmatprep.subr.mxu0 %v379
        %1963 = vmatpush1.msra.mxu0 %v378
        %1964 = vmatprep.subr.mxu0 %v383
        %1965 = vmatpush1.msra.mxu0 %v382
        %1966 = vmatprep.subr.mxu0 %v387
        %1967 = vmatpush1.msra.mxu0 %v386
        %1968 = vmatprep.subr.mxu0 %v391
        %1969 = vmatpush1.msra.mxu0 %v390
        %1970 = vmatprep.subr.mxu0 %v395
        %1971 = vmatpush1.msra.mxu0 %v394
        %1972 = vmatprep.subr.mxu0 %v399
        %1973 = vmatpush1.msra.mxu0 %v398
        %1974 = vmatprep.subr.mxu0 %v403
        %1975 = vmatpush1.msra.mxu0 %v402
        %1976 = vmatprep.subr.mxu0 %v407
        %1977 = vmatpush1.msra.mxu0 %v406
        %1978 = vmatprep.subr.mxu0 %v411
        %1979 = vmatpush1.msra.mxu0 %v410
        %1980 = vmatprep.subr.mxu0 %v415
        %1981 = vmatpush1.msra.mxu0 %v414
        %1982 = vmatprep.subr.mxu0 %v419
        %1983 = vmatpush1.msra.mxu0 %v418
        %1984 = vmatprep.subr.mxu0 %v423
        %1985 = vmatpush1.msra.mxu0 %v422
        %1986 = vmatprep.subr.mxu0 %v427
        %1987 = vmatpush1.msra.mxu0 %v426
        %1988 = vmatprep.subr.mxu0 %v431
        %1989 = vmatpush1.msra.mxu0 %v430
        %1990 = vmatprep.subr.mxu0 %v435
        %1991 = vmatpush1.msra.mxu0 %v434
        %1992 = vmatprep.subr.mxu0 %v439
        %1993 = vmatpush1.msra.mxu0 %v438
        %1994 = vmatprep.subr.mxu0 %v443
        %1995 = vmatpush1.msra.mxu0 %v442
        %1996 = vmatprep.subr.mxu0 %v447
        %1997 = vmatpush1.msra.mxu0 %v446
        %1998 = vmatprep.subr.mxu0 %v451
        %1999 = vmatpush1.msra.mxu0 %v450
        %2000 = vmatprep.subr.mxu0 %v455
        %2001 = vmatpush1.msra.mxu0 %v454
        %2002 = vmatprep.subr.mxu0 %v459
        %2003 = vmatpush1.msra.mxu0 %v458
        %2004 = vmatprep.subr.mxu0 %v463
        %2005 = vmatpush1.msra.mxu0 %v462
        %2006 = vmatprep.subr.mxu0 %v467
        %2007 = vmatpush1.msra.mxu0 %v466
        %2008 = vmatprep.subr.mxu0 %v471
        %2009 = vmatpush1.msra.mxu0 %v470
        %2010 = vmatprep.subr.mxu0 %v475
        %2011 = vmatpush1.msra.mxu0 %v474
        %2012 = vmatprep.subr.mxu0 %v479
        %2013 = vmatpush1.msra.mxu0 %v478
        %2014 = vmatprep.subr.mxu0 %v483
        %2015 = vmatpush1.msra.mxu0 %v482
        %2016 = vmatprep.subr.mxu0 %v487
        %2017 = vmatpush1.msra.mxu0 %v486
        %2018 = vmatprep.subr.mxu0 %v491
        %2019 = vmatpush1.msra.mxu0 %v490
        %2020 = vmatprep.mubr.f32.mxu0 %v349
        %2021 = vmatmul.mubr.f32.gmra.mrb[0].mxu0 %v348
        %v2022 = vpop.f32.mrb[0].mxu0
        %v2023 = vadd.f32 0.0, %v2022
        %v2024 = vpop.f32.mrb[0].mxu0
        %v2025 = vadd.f32 0.0, %v2024
        %2026 = vdwg.mxu0
        %2027 = vmatprep.subr.mxu0 %v495
        %2028 = vmatpush1.msra.mxu0 %v494
        %2029 = vmatprep.subr.mxu0 %v499
        %2030 = vmatpush1.msra.mxu0 %v498
        %2031 = vmatprep.subr.mxu0 %v503
        %2032 = vmatpush1.msra.mxu0 %v502
        %2033 = vmatprep.subr.mxu0 %v507
        %2034 = vmatpush1.msra.mxu0 %v506
        %2035 = vmatprep.subr.mxu0 %v511
        %2036 = vmatpush1.msra.mxu0 %v510
        %2037 = vmatprep.subr.mxu0 %v515
        %2038 = vmatpush1.msra.mxu0 %v514
        %2039 = vmatprep.subr.mxu0 %v519
        %2040 = vmatpush1.msra.mxu0 %v518
        %2041 = vmatprep.subr.mxu0 %v523
        %2042 = vmatpush1.msra.mxu0 %v522
        %2043 = vmatprep.subr.mxu0 %v527
        %2044 = vmatpush1.msra.mxu0 %v526
        %2045 = vmatprep.subr.mxu0 %v531
        %2046 = vmatpush1.msra.mxu0 %v530
        %2047 = vmatprep.subr.mxu0 %v535
        %2048 = vmatpush1.msra.mxu0 %v534
        %2049 = vmatprep.subr.mxu0 %v539
        %2050 = vmatpush1.msra.mxu0 %v538
        %2051 = vmatprep.subr.mxu0 %v543
        %2052 = vmatpush1.msra.mxu0 %v542
        %2053 = vmatprep.subr.mxu0 %v547
        %2054 = vmatpush1.msra.mxu0 %v546
        %2055 = vmatprep.subr.mxu0 %v551
        %2056 = vmatpush1.msra.mxu0 %v550
        %2057 = vmatprep.subr.mxu0 %v555
        %2058 = vmatpush1.msra.mxu0 %v554
        %2059 = vmatprep.subr.mxu0 %v559
        %2060 = vmatpush1.msra.mxu0 %v558
        %2061 = vmatprep.subr.mxu0 %v563
        %2062 = vmatpush1.msra.mxu0 %v562
        %2063 = vmatprep.subr.mxu0 %v567
        %2064 = vmatpush1.msra.mxu0 %v566
        %2065 = vmatprep.subr.mxu0 %v571
        %2066 = vmatpush1.msra.mxu0 %v570
        %2067 = vmatprep.subr.mxu0 %v575
        %2068 = vmatpush1.msra.mxu0 %v574
        %2069 = vmatprep.subr.mxu0 %v579
        %2070 = vmatpush1.msra.mxu0 %v578
        %2071 = vmatprep.subr.mxu0 %v583
        %2072 = vmatpush1.msra.mxu0 %v582
        %2073 = vmatprep.subr.mxu0 %v587
        %2074 = vmatpush1.msra.mxu0 %v586
        %2075 = vmatprep.subr.mxu0 %v591
        %2076 = vmatpush1.msra.mxu0 %v590
        %2077 = vmatprep.subr.mxu0 %v595
        %2078 = vmatpush1.msra.mxu0 %v594
        %2079 = vmatprep.subr.mxu0 %v599
        %2080 = vmatpush1.msra.mxu0 %v598
        %2081 = vmatprep.subr.mxu0 %v603
        %2082 = vmatpush1.msra.mxu0 %v602
        %2083 = vmatprep.subr.mxu0 %v607
        %2084 = vmatpush1.msra.mxu0 %v606
        %2085 = vmatprep.subr.mxu0 %v611
        %2086 = vmatpush1.msra.mxu0 %v610
        %2087 = vmatprep.subr.mxu0 %v615
        %2088 = vmatpush1.msra.mxu0 %v614
        %2089 = vmatprep.subr.mxu0 %v619
        %2090 = vmatpush1.msra.mxu0 %v618
        %2091 = vmatprep.mubr.f32.mxu0 %v351
        %2092 = vmatmul.mubr.f32.gmra.mrb[0].mxu0 %v350
        %v2093 = vpop.f32.mrb[0].mxu0
        %v2094 = vadd.f32 %v2023, %v2093
        %v2095 = vpop.f32.mrb[0].mxu0
        %v2096 = vadd.f32 %v2025, %v2095
        %2097 = vdwg.mxu0
        %2098 = vmatprep.subr.mxu0 %v623
        %2099 = vmatpush1.msra.mxu0 %v622
        %2100 = vmatprep.subr.mxu0 %v627
        %2101 = vmatpush1.msra.mxu0 %v626
        %2102 = vmatprep.subr.mxu0 %v631
        %2103 = vmatpush1.msra.mxu0 %v630
        %2104 = vmatprep.subr.mxu0 %v635
        %2105 = vmatpush1.msra.mxu0 %v634
        %2106 = vmatprep.subr.mxu0 %v639
        %2107 = vmatpush1.msra.mxu0 %v638
        %2108 = vmatprep.subr.mxu0 %v643
        %2109 = vmatpush1.msra.mxu0 %v642
        %2110 = vmatprep.subr.mxu0 %v647
        %2111 = vmatpush1.msra.mxu0 %v646
        %2112 = vmatprep.subr.mxu0 %v651
        %2113 = vmatpush1.msra.mxu0 %v650
        %2114 = vmatprep.subr.mxu0 %v655
        %2115 = vmatpush1.msra.mxu0 %v654
        %2116 = vmatprep.subr.mxu0 %v659
        %2117 = vmatpush1.msra.mxu0 %v658
        %2118 = vmatprep.subr.mxu0 %v663
        %2119 = vmatpush1.msra.mxu0 %v662
        %2120 = vmatprep.subr.mxu0 %v667
        %2121 = vmatpush1.msra.mxu0 %v666
        %2122 = vmatprep.subr.mxu0 %v671
        %2123 = vmatpush1.msra.mxu0 %v670
        %2124 = vmatprep.subr.mxu0 %v675
        %2125 = vmatpush1.msra.mxu0 %v674
        %2126 = vmatprep.subr.mxu0 %v679
        %2127 = vmatpush1.msra.mxu0 %v678
        %2128 = vmatprep.subr.mxu0 %v683
        %2129 = vmatpush1.msra.mxu0 %v682
        %2130 = vmatprep.subr.mxu0 %v687
        %2131 = vmatpush1.msra.mxu0 %v686
        %2132 = vmatprep.subr.mxu0 %v691
        %2133 = vmatpush1.msra.mxu0 %v690
        %2134 = vmatprep.subr.mxu0 %v695
        %2135 = vmatpush1.msra.mxu0 %v694
        %2136 = vmatprep.subr.mxu0 %v699
        %2137 = vmatpush1.msra.mxu0 %v698
        %2138 = vmatprep.subr.mxu0 %v703
        %2139 = vmatpush1.msra.mxu0 %v702
        %2140 = vmatprep.subr.mxu0 %v707
        %2141 = vmatpush1.msra.mxu0 %v706
        %2142 = vmatprep.subr.mxu0 %v711
        %2143 = vmatpush1.msra.mxu0 %v710
        %2144 = vmatprep.subr.mxu0 %v715
        %2145 = vmatpush1.msra.mxu0 %v714
        %2146 = vmatprep.subr.mxu0 %v719
        %2147 = vmatpush1.msra.mxu0 %v718
        %2148 = vmatprep.subr.mxu0 %v723
        %2149 = vmatpush1.msra.mxu0 %v722
        %2150 = vmatprep.subr.mxu0 %v727
        %2151 = vmatpush1.msra.mxu0 %v726
        %2152 = vmatprep.subr.mxu0 %v731
        %2153 = vmatpush1.msra.mxu0 %v730
        %2154 = vmatprep.subr.mxu0 %v735
        %2155 = vmatpush1.msra.mxu0 %v734
        %2156 = vmatprep.subr.mxu0 %v739
        %2157 = vmatpush1.msra.mxu0 %v738
        %2158 = vmatprep.subr.mxu0 %v743
        %2159 = vmatpush1.msra.mxu0 %v742
        %2160 = vmatprep.subr.mxu0 %v747
        %2161 = vmatpush1.msra.mxu0 %v746
        %2162 = vmatprep.mubr.f32.mxu0 %v353
        %2163 = vmatmul.mubr.f32.gmra.mrb[0].mxu0 %v352
        %v2164 = vpop.f32.mrb[0].mxu0
        %v2165 = vadd.f32 %v2094, %v2164
        %v2166 = vpop.f32.mrb[0].mxu0
        %v2167 = vadd.f32 %v2096, %v2166
        %2168 = vdwg.mxu0
        %2169 = vmatprep.subr.mxu0 %v751
        %2170 = vmatpush1.msra.mxu0 %v750
        %2171 = vmatprep.subr.mxu0 %v755
        %2172 = vmatpush1.msra.mxu0 %v754
        %2173 = vmatprep.subr.mxu0 %v759
        %2174 = vmatpush1.msra.mxu0 %v758
        %2175 = vmatprep.subr.mxu0 %v763
        %2176 = vmatpush1.msra.mxu0 %v762
        %2177 = vmatprep.subr.mxu0 %v767
        %2178 = vmatpush1.msra.mxu0 %v766
        %2179 = vmatprep.subr.mxu0 %v771
        %2180 = vmatpush1.msra.mxu0 %v770
        %2181 = vmatprep.subr.mxu0 %v775
        %2182 = vmatpush1.msra.mxu0 %v774
        %2183 = vmatprep.subr.mxu0 %v779
        %2184 = vmatpush1.msra.mxu0 %v778
        %2185 = vmatprep.subr.mxu0 %v783
        %2186 = vmatpush1.msra.mxu0 %v782
        %2187 = vmatprep.subr.mxu0 %v787
        %2188 = vmatpush1.msra.mxu0 %v786
        %2189 = vmatprep.subr.mxu0 %v791
        %2190 = vmatpush1.msra.mxu0 %v790
        %2191 = vmatprep.subr.mxu0 %v795
        %2192 = vmatpush1.msra.mxu0 %v794
        %2193 = vmatprep.subr.mxu0 %v799
        %2194 = vmatpush1.msra.mxu0 %v798
        %2195 = vmatprep.subr.mxu0 %v803
        %2196 = vmatpush1.msra.mxu0 %v802
        %2197 = vmatprep.subr.mxu0 %v807
        %2198 = vmatpush1.msra.mxu0 %v806
        %2199 = vmatprep.subr.mxu0 %v811
        %2200 = vmatpush1.msra.mxu0 %v810
        %2201 = vmatprep.subr.mxu0 %v815
        %2202 = vmatpush1.msra.mxu0 %v814
        %2203 = vmatprep.subr.mxu0 %v819
        %2204 = vmatpush1.msra.mxu0 %v818
        %2205 = vmatprep.subr.mxu0 %v823
        %2206 = vmatpush1.msra.mxu0 %v822
        %2207 = vmatprep.subr.mxu0 %v827
        %2208 = vmatpush1.msra.mxu0 %v826
        %2209 = vmatprep.subr.mxu0 %v831
        %2210 = vmatpush1.msra.mxu0 %v830
        %2211 = vmatprep.subr.mxu0 %v835
        %2212 = vmatpush1.msra.mxu0 %v834
        %2213 = vmatprep.subr.mxu0 %v839
        %2214 = vmatpush1.msra.mxu0 %v838
        %2215 = vmatprep.subr.mxu0 %v843
        %2216 = vmatpush1.msra.mxu0 %v842
        %2217 = vmatprep.subr.mxu0 %v847
        %2218 = vmatpush1.msra.mxu0 %v846
        %2219 = vmatprep.subr.mxu0 %v851
        %2220 = vmatpush1.msra.mxu0 %v850
        %2221 = vmatprep.subr.mxu0 %v855
        %2222 = vmatpush1.msra.mxu0 %v854
        %2223 = vmatprep.subr.mxu0 %v859
        %2224 = vmatpush1.msra.mxu0 %v858
        %2225 = vmatprep.subr.mxu0 %v863
        %2226 = vmatpush1.msra.mxu0 %v862
        %2227 = vmatprep.subr.mxu0 %v867
        %2228 = vmatpush1.msra.mxu0 %v866
        %2229 = vmatprep.subr.mxu0 %v871
        %2230 = vmatpush1.msra.mxu0 %v870
        %2231 = vmatprep.subr.mxu0 %v875
        %2232 = vmatpush1.msra.mxu0 %v874
        %2233 = vmatprep.mubr.f32.mxu0 %v355
        %2234 = vmatmul.mubr.f32.gmra.mrb[0].mxu0 %v354
        %v2235 = vpop.f32.mrb[0].mxu0
        %v2236 = vadd.f32 %v2165, %v2235
        %v2237 = vpop.f32.mrb[0].mxu0
        %v2238 = vadd.f32 %v2167, %v2237
        %2239 = vdwg.mxu0
        %2240 = vmatprep.subr.mxu0 %v879
        %2241 = vmatpush1.msra.mxu0 %v878
        %2242 = vmatprep.subr.mxu0 %v883
        %2243 = vmatpush1.msra.mxu0 %v882
        %2244 = vmatprep.subr.mxu0 %v887
        %2245 = vmatpush1.msra.mxu0 %v886
        %2246 = vmatprep.subr.mxu0 %v891
        %2247 = vmatpush1.msra.mxu0 %v890
        %2248 = vmatprep.subr.mxu0 %v895
        %2249 = vmatpush1.msra.mxu0 %v894
        %2250 = vmatprep.subr.mxu0 %v899
        %2251 = vmatpush1.msra.mxu0 %v898
        %2252 = vmatprep.subr.mxu0 %v903
        %2253 = vmatpush1.msra.mxu0 %v902
        %2254 = vmatprep.subr.mxu0 %v907
        %2255 = vmatpush1.msra.mxu0 %v906
        %2256 = vmatprep.subr.mxu0 %v911
        %2257 = vmatpush1.msra.mxu0 %v910
        %2258 = vmatprep.subr.mxu0 %v915
        %2259 = vmatpush1.msra.mxu0 %v914
        %2260 = vmatprep.subr.mxu0 %v919
        %2261 = vmatpush1.msra.mxu0 %v918
        %2262 = vmatprep.subr.mxu0 %v923
        %2263 = vmatpush1.msra.mxu0 %v922
        %2264 = vmatprep.subr.mxu0 %v927
        %2265 = vmatpush1.msra.mxu0 %v926
        %2266 = vmatprep.subr.mxu0 %v931
        %2267 = vmatpush1.msra.mxu0 %v930
        %2268 = vmatprep.subr.mxu0 %v935
        %2269 = vmatpush1.msra.mxu0 %v934
        %2270 = vmatprep.subr.mxu0 %v939
        %2271 = vmatpush1.msra.mxu0 %v938
        %2272 = vmatprep.subr.mxu0 %v943
        %2273 = vmatpush1.msra.mxu0 %v942
        %2274 = vmatprep.subr.mxu0 %v947
        %2275 = vmatpush1.msra.mxu0 %v946
        %2276 = vmatprep.subr.mxu0 %v951
        %2277 = vmatpush1.msra.mxu0 %v950
        %2278 = vmatprep.subr.mxu0 %v955
        %2279 = vmatpush1.msra.mxu0 %v954
        %2280 = vmatprep.subr.mxu0 %v959
        %2281 = vmatpush1.msra.mxu0 %v958
        %2282 = vmatprep.subr.mxu0 %v963
        %2283 = vmatpush1.msra.mxu0 %v962
        %2284 = vmatprep.subr.mxu0 %v967
        %2285 = vmatpush1.msra.mxu0 %v966
        %2286 = vmatprep.subr.mxu0 %v971
        %2287 = vmatpush1.msra.mxu0 %v970
        %2288 = vmatprep.subr.mxu0 %v975
        %2289 = vmatpush1.msra.mxu0 %v974
        %2290 = vmatprep.subr.mxu0 %v979
        %2291 = vmatpush1.msra.mxu0 %v978
        %2292 = vmatprep.subr.mxu0 %v983
        %2293 = vmatpush1.msra.mxu0 %v982
        %2294 = vmatprep.subr.mxu0 %v987
        %2295 = vmatpush1.msra.mxu0 %v986
        %2296 = vmatprep.subr.mxu0 %v991
        %2297 = vmatpush1.msra.mxu0 %v990
        %2298 = vmatprep.subr.mxu0 %v995
        %2299 = vmatpush1.msra.mxu0 %v994
        %2300 = vmatprep.subr.mxu0 %v999
        %2301 = vmatpush1.msra.mxu0 %v998
        %2302 = vmatprep.subr.mxu0 %v1003
        %2303 = vmatpush1.msra.mxu0 %v1002
        %2304 = vmatprep.mubr.f32.mxu0 %v357
        %2305 = vmatmul.mubr.f32.gmra.mrb[0].mxu0 %v356
        %v2306 = vpop.f32.mrb[0].mxu0
        %v2307 = vadd.f32 %v2236, %v2306
        %v2308 = vpop.f32.mrb[0].mxu0
        %v2309 = vadd.f32 %v2238, %v2308
        %2310 = vdwg.mxu0
        %2311 = vmatprep.subr.mxu0 %v1007
        %2312 = vmatpush1.msra.mxu0 %v1006
        %2313 = vmatprep.subr.mxu0 %v1011
        %2314 = vmatpush1.msra.mxu0 %v1010
        %2315 = vmatprep.subr.mxu0 %v1015
        %2316 = vmatpush1.msra.mxu0 %v1014
        %2317 = vmatprep.subr.mxu0 %v1019
        %2318 = vmatpush1.msra.mxu0 %v1018
        %2319 = vmatprep.subr.mxu0 %v1023
        %2320 = vmatpush1.msra.mxu0 %v1022
        %2321 = vmatprep.subr.mxu0 %v1027
        %2322 = vmatpush1.msra.mxu0 %v1026
        %2323 = vmatprep.subr.mxu0 %v1031
        %2324 = vmatpush1.msra.mxu0 %v1030
        %2325 = vmatprep.subr.mxu0 %v1035
        %2326 = vmatpush1.msra.mxu0 %v1034
        %2327 = vmatprep.subr.mxu0 %v1039
        %2328 = vmatpush1.msra.mxu0 %v1038
        %2329 = vmatprep.subr.mxu0 %v1043
        %2330 = vmatpush1.msra.mxu0 %v1042
        %2331 = vmatprep.subr.mxu0 %v1047
        %2332 = vmatpush1.msra.mxu0 %v1046
        %2333 = vmatprep.subr.mxu0 %v1051
        %2334 = vmatpush1.msra.mxu0 %v1050
        %2335 = vmatprep.subr.mxu0 %v1055
        %2336 = vmatpush1.msra.mxu0 %v1054
        %2337 = vmatprep.subr.mxu0 %v1059
        %2338 = vmatpush1.msra.mxu0 %v1058
        %2339 = vmatprep.subr.mxu0 %v1063
        %2340 = vmatpush1.msra.mxu0 %v1062
        %2341 = vmatprep.subr.mxu0 %v1067
        %2342 = vmatpush1.msra.mxu0 %v1066
        %2343 = vmatprep.subr.mxu0 %v1071
        %2344 = vmatpush1.msra.mxu0 %v1070
        %2345 = vmatprep.subr.mxu0 %v1075
        %2346 = vmatpush1.msra.mxu0 %v1074
        %2347 = vmatprep.subr.mxu0 %v1079
        %2348 = vmatpush1.msra.mxu0 %v1078
        %2349 = vmatprep.subr.mxu0 %v1083
        %2350 = vmatpush1.msra.mxu0 %v1082
        %2351 = vmatprep.subr.mxu0 %v1087
        %2352 = vmatpush1.msra.mxu0 %v1086
        %2353 = vmatprep.subr.mxu0 %v1091
        %2354 = vmatpush1.msra.mxu0 %v1090
        %2355 = vmatprep.subr.mxu0 %v1095
        %2356 = vmatpush1.msra.mxu0 %v1094
        %2357 = vmatprep.subr.mxu0 %v1099
        %2358 = vmatpush1.msra.mxu0 %v1098
        %2359 = vmatprep.subr.mxu0 %v1103
        %2360 = vmatpush1.msra.mxu0 %v1102
        %2361 = vmatprep.subr.mxu0 %v1107
        %2362 = vmatpush1.msra.mxu0 %v1106
        %2363 = vmatprep.subr.mxu0 %v1111
        %2364 = vmatpush1.msra.mxu0 %v1110
        %2365 = vmatprep.subr.mxu0 %v1115
        %2366 = vmatpush1.msra.mxu0 %v1114
        %2367 = vmatprep.subr.mxu0 %v1119
        %2368 = vmatpush1.msra.mxu0 %v1118
        %2369 = vmatprep.subr.mxu0 %v1123
        %2370 = vmatpush1.msra.mxu0 %v1122
        %2371 = vmatprep.subr.mxu0 %v1127
        %2372 = vmatpush1.msra.mxu0 %v1126
        %2373 = vmatprep.subr.mxu0 %v1131
        %2374 = vmatpush1.msra.mxu0 %v1130
        %2375 = vmatprep.mubr.f32.mxu0 %v359
        %2376 = vmatmul.mubr.f32.gmra.mrb[0].mxu0 %v358
        %v2377 = vpop.f32.mrb[0].mxu0
        %v2378 = vadd.f32 %v2307, %v2377
        %v2379 = vpop.f32.mrb[0].mxu0
        %v2380 = vadd.f32 %v2309, %v2379
        %2381 = vdwg.mxu0
        %2382 = vmatprep.subr.mxu0 %v1135
        %2383 = vmatpush1.msra.mxu0 %v1134
        %2384 = vmatprep.subr.mxu0 %v1139
        %2385 = vmatpush1.msra.mxu0 %v1138
        %2386 = vmatprep.subr.mxu0 %v1143
        %2387 = vmatpush1.msra.mxu0 %v1142
        %2388 = vmatprep.subr.mxu0 %v1147
        %2389 = vmatpush1.msra.mxu0 %v1146
        %2390 = vmatprep.subr.mxu0 %v1151
        %2391 = vmatpush1.msra.mxu0 %v1150
        %2392 = vmatprep.subr.mxu0 %v1155
        %2393 = vmatpush1.msra.mxu0 %v1154
        %2394 = vmatprep.subr.mxu0 %v1159
        %2395 = vmatpush1.msra.mxu0 %v1158
        %2396 = vmatprep.subr.mxu0 %v1163
        %2397 = vmatpush1.msra.mxu0 %v1162
        %2398 = vmatprep.subr.mxu0 %v1167
        %2399 = vmatpush1.msra.mxu0 %v1166
        %2400 = vmatprep.subr.mxu0 %v1171
        %2401 = vmatpush1.msra.mxu0 %v1170
        %2402 = vmatprep.subr.mxu0 %v1175
        %2403 = vmatpush1.msra.mxu0 %v1174
        %2404 = vmatprep.subr.mxu0 %v1179
        %2405 = vmatpush1.msra.mxu0 %v1178
        %2406 = vmatprep.subr.mxu0 %v1183
        %2407 = vmatpush1.msra.mxu0 %v1182
        %2408 = vmatprep.subr.mxu0 %v1187
        %2409 = vmatpush1.msra.mxu0 %v1186
        %2410 = vmatprep.subr.mxu0 %v1191
        %2411 = vmatpush1.msra.mxu0 %v1190
        %2412 = vmatprep.subr.mxu0 %v1195
        %2413 = vmatpush1.msra.mxu0 %v1194
        %2414 = vmatprep.subr.mxu0 %v1199
        %2415 = vmatpush1.msra.mxu0 %v1198
        %2416 = vmatprep.subr.mxu0 %v1203
        %2417 = vmatpush1.msra.mxu0 %v1202
        %2418 = vmatprep.subr.mxu0 %v1207
        %2419 = vmatpush1.msra.mxu0 %v1206
        %2420 = vmatprep.subr.mxu0 %v1211
        %2421 = vmatpush1.msra.mxu0 %v1210
        %2422 = vmatprep.subr.mxu0 %v1215
        %2423 = vmatpush1.msra.mxu0 %v1214
        %2424 = vmatprep.subr.mxu0 %v1219
        %2425 = vmatpush1.msra.mxu0 %v1218
        %2426 = vmatprep.subr.mxu0 %v1223
        %2427 = vmatpush1.msra.mxu0 %v1222
        %2428 = vmatprep.subr.mxu0 %v1227
        %2429 = vmatpush1.msra.mxu0 %v1226
        %2430 = vmatprep.subr.mxu0 %v1231
        %2431 = vmatpush1.msra.mxu0 %v1230
        %2432 = vmatprep.subr.mxu0 %v1235
        %2433 = vmatpush1.msra.mxu0 %v1234
        %2434 = vmatprep.subr.mxu0 %v1239
        %2435 = vmatpush1.msra.mxu0 %v1238
        %2436 = vmatprep.subr.mxu0 %v1243
        %2437 = vmatpush1.msra.mxu0 %v1242
        %2438 = vmatprep.subr.mxu0 %v1247
        %2439 = vmatpush1.msra.mxu0 %v1246
        %2440 = vmatprep.subr.mxu0 %v1251
        %2441 = vmatpush1.msra.mxu0 %v1250
        %2442 = vmatprep.subr.mxu0 %v1255
        %2443 = vmatpush1.msra.mxu0 %v1254
        %2444 = vmatprep.subr.mxu0 %v1259
        %2445 = vmatpush1.msra.mxu0 %v1258
        %2446 = vmatprep.mubr.f32.mxu0 %v361
        %2447 = vmatmul.mubr.f32.gmra.mrb[0].mxu0 %v360
        %v2448 = vpop.f32.mrb[0].mxu0
        %v2449 = vadd.f32 %v2378, %v2448
        %v2450 = vpop.f32.mrb[0].mxu0
        %v2451 = vadd.f32 %v2380, %v2450
        %2452 = vdwg.mxu0
        %2453 = vmatprep.subr.mxu0 %v1263
        %2454 = vmatpush1.msra.mxu0 %v1262
        %2455 = vmatprep.subr.mxu0 %v1267
        %2456 = vmatpush1.msra.mxu0 %v1266
        %2457 = vmatprep.subr.mxu0 %v1271
        %2458 = vmatpush1.msra.mxu0 %v1270
        %2459 = vmatprep.subr.mxu0 %v1275
        %2460 = vmatpush1.msra.mxu0 %v1274
        %2461 = vmatprep.subr.mxu0 %v1279
        %2462 = vmatpush1.msra.mxu0 %v1278
        %2463 = vmatprep.subr.mxu0 %v1283
        %2464 = vmatpush1.msra.mxu0 %v1282
        %2465 = vmatprep.subr.mxu0 %v1287
        %2466 = vmatpush1.msra.mxu0 %v1286
        %2467 = vmatprep.subr.mxu0 %v1291
        %2468 = vmatpush1.msra.mxu0 %v1290
        %2469 = vmatprep.subr.mxu0 %v1295
        %2470 = vmatpush1.msra.mxu0 %v1294
        %2471 = vmatprep.subr.mxu0 %v1299
        %2472 = vmatpush1.msra.mxu0 %v1298
        %2473 = vmatprep.subr.mxu0 %v1303
        %2474 = vmatpush1.msra.mxu0 %v1302
        %2475 = vmatprep.subr.mxu0 %v1307
        %2476 = vmatpush1.msra.mxu0 %v1306
        %2477 = vmatprep.subr.mxu0 %v1311
        %2478 = vmatpush1.msra.mxu0 %v1310
        %2479 = vmatprep.subr.mxu0 %v1315
        %2480 = vmatpush1.msra.mxu0 %v1314
        %2481 = vmatprep.subr.mxu0 %v1319
        %2482 = vmatpush1.msra.mxu0 %v1318
        %2483 = vmatprep.subr.mxu0 %v1323
        %2484 = vmatpush1.msra.mxu0 %v1322
        %2485 = vmatprep.subr.mxu0 %v1327
        %2486 = vmatpush1.msra.mxu0 %v1326
        %2487 = vmatprep.subr.mxu0 %v1331
        %2488 = vmatpush1.msra.mxu0 %v1330
        %2489 = vmatprep.subr.mxu0 %v1335
        %2490 = vmatpush1.msra.mxu0 %v1334
        %2491 = vmatprep.subr.mxu0 %v1339
        %2492 = vmatpush1.msra.mxu0 %v1338
        %2493 = vmatprep.subr.mxu0 %v1343
        %2494 = vmatpush1.msra.mxu0 %v1342
        %2495 = vmatprep.subr.mxu0 %v1347
        %2496 = vmatpush1.msra.mxu0 %v1346
        %2497 = vmatprep.subr.mxu0 %v1351
        %2498 = vmatpush1.msra.mxu0 %v1350
        %2499 = vmatprep.subr.mxu0 %v1355
        %2500 = vmatpush1.msra.mxu0 %v1354
        %2501 = vmatprep.subr.mxu0 %v1359
        %2502 = vmatpush1.msra.mxu0 %v1358
        %2503 = vmatprep.subr.mxu0 %v1363
        %2504 = vmatpush1.msra.mxu0 %v1362
        %2505 = vmatprep.subr.mxu0 %v1367
        %2506 = vmatpush1.msra.mxu0 %v1366
        %2507 = vmatprep.subr.mxu0 %v1371
        %2508 = vmatpush1.msra.mxu0 %v1370
        %2509 = vmatprep.subr.mxu0 %v1375
        %2510 = vmatpush1.msra.mxu0 %v1374
        %2511 = vmatprep.subr.mxu0 %v1379
        %2512 = vmatpush1.msra.mxu0 %v1378
        %2513 = vmatprep.subr.mxu0 %v1383
        %2514 = vmatpush1.msra.mxu0 %v1382
        %2515 = vmatprep.subr.mxu0 %v1387
        %2516 = vmatpush1.msra.mxu0 %v1386
        %2517 = vmatprep.mubr.f32.mxu0 %v363
        %2518 = vmatmul.mubr.f32.gmra.mrb[0].mxu0 %v362
        %v2519 = vpop.f32.mrb[0].mxu0
        %v2520 = vadd.f32 %v2449, %v2519
        %v2521 = vpop.f32.mrb[0].mxu0
        %v2522 = vadd.f32 %v2451, %v2521
        %2523 = vdwg.mxu0
        %v2524 = vrot.slane %v1952, 4
        %v2525 = vadd.f32 %v1952, %v2524
        %v2526 = vrot.slane %v2525, 2
        %v2527 = vadd.f32 %v2525, %v2526
        %v2528 = vrot.slane %v2527, 1
        %v2529 = vadd.f32 %v2527, %v2528
        %v2530 = vrot.slane %v1954, 4
        %v2531 = vadd.f32 %v1954, %v2530
        %v2532 = vrot.slane %v2531, 2
        %v2533 = vadd.f32 %v2531, %v2532
        %v2534 = vrot.slane %v2533, 1
        %v2535 = vadd.f32 %v2533, %v2534
        %v2536 = vrot.slane %v2520, 4
        %v2537 = vadd.f32 %v2520, %v2536
        %v2538 = vrot.slane %v2537, 2
        %v2539 = vadd.f32 %v2537, %v2538
        %v2540 = vrot.slane %v2539, 1
        %v2541 = vadd.f32 %v2539, %v2540
        %v2542 = vrot.slane %v2522, 4
        %v2543 = vadd.f32 %v2522, %v2542
        %v2544 = vrot.slane %v2543, 2
        %v2545 = vadd.f32 %v2543, %v2544
        %v2546 = vrot.slane %v2545, 1
        %v2547 = vadd.f32 %v2545, %v2546
        %v2548 = vrcp.pop 8.0
        %v2549 = vmul.f32 %v2529, %v2548
        %v2550 = vmul.f32 %v2535, %v2548
        %v2551 = vmul.f32 %v2541, %v2548
        %v2552 = vmul.f32 %v2547, %v2548
        %v2553 = vsub.f32 %v1952, %v2549
        %v2554 = vsub.f32 %v1954, %v2550
        %v2555 = vsub.f32 %v2520, %v2551
        %v2556 = vsub.f32 %v2522, %v2552
        %v2557 = vmul.f32 %v2553, %v2553
        %v2558 = vmul.f32 %v2554, %v2554
        %v2559 = vmul.f32 %v2555, %v2555
        %v2560 = vmul.f32 %v2556, %v2556
        %v2561 = vrot.slane %v2557, 4
        %v2562 = vadd.f32 %v2557, %v2561
        %v2563 = vrot.slane %v2562, 2
        %v2564 = vadd.f32 %v2562, %v2563
        %v2565 = vrot.slane %v2564, 1
        %v2566 = vadd.f32 %v2564, %v2565
        %v2567 = vrot.slane %v2558, 4
        %v2568 = vadd.f32 %v2558, %v2567
        %v2569 = vrot.slane %v2568, 2
        %v2570 = vadd.f32 %v2568, %v2569
        %v2571 = vrot.slane %v2570, 1
        %v2572 = vadd.f32 %v2570, %v2571
        %v2573 = vrot.slane %v2559, 4
        %v2574 = vadd.f32 %v2559, %v2573
        %v2575 = vrot.slane %v2574, 2
        %v2576 = vadd.f32 %v2574, %v2575
        %v2577 = vrot.slane %v2576, 1
        %v2578 = vadd.f32 %v2576, %v2577
        %v2579 = vrot.slane %v2560, 4
        %v2580 = vadd.f32 %v2560, %v2579
        %v2581 = vrot.slane %v2580, 2
        %v2582 = vadd.f32 %v2580, %v2581
        %v2583 = vrot.slane %v2582, 1
        %v2584 = vadd.f32 %v2582, %v2583
        %v2585 = vmul.f32 %v2566, %v2548
        %v2586 = vmul.f32 %v2572, %v2548
        %v2587 = vmul.f32 %v2578, %v2548
        %v2588 = vmul.f32 %v2584, %v2548
        %s2589 = sshra.s32 %s327, 2
        %s2590 = sand.u32 %s327, 3
        %s2591 = sshra.s32 %s327, 2
        %s2592 = sand.u32 %s327, 3
        %s2593 = smul.u32 %s2589, 4
        %s2594 = smul.u32 %s2593, 4
        %s2595 = sadd.s32 %s2594, %s2592
        %s2596 = scalar_lea.vmem %s2, %s2595
        %v2597 = vld [vmem:[%s2596] ss:$4 sm:$0xf]
        %s2598 = scalar_lea.vmem %s3, %s2595
        %v2599 = vld [vmem:[%s2598] ss:$4 sm:$0xf]
        %v2600 = vadd.f32 %v2585, 1e-05
        %v2601 = vadd.f32 %v2586, 1e-05
        %v2602 = vadd.f32 %v2587, 1e-05
        %v2603 = vadd.f32 %v2588, 1e-05
        %v2604 = vrsqrt.pop %v2600
        %v2605 = vrsqrt.pop %v2601
        %v2606 = vrsqrt.pop %v2602
        %v2607 = vrsqrt.pop %v2603
        %v2612 = vcombine.low %v2604, %v2605
        %v2613 = vcombine.low %v2606, %v2607
        %v2615 = vunpack.c.l.s4 1966171168
        %v2616 = vunpack.c.0.s8 %v2615
        %v2617 = vlaneseq
        %v2618 = vshrl.u32 %v2617, 7
        %v2619 = vsub.s32 %v2616, %v2618
        %v2620 = vrot.slane %v2612, %v2619
        %v2622 = vunpack.c.l.s4 1966171168
        %v2623 = vunpack.c.0.s8 %v2622
        %v2624 = vlaneseq
        %v2625 = vshrl.u32 %v2624, 7
        %v2626 = vsub.s32 %v2623, %v2625
        %v2627 = vrot.slane %v2613, %v2626
        %v2628 = vcombine.low %v2620, %v2627
        %v2630 = vunpack.c.l.s4 1966171168
        %v2631 = vunpack.c.0.s8 %v2630
        %v2632 = vlaneseq
        %v2633 = vshrl.u32 %v2632, 7
        %v2634 = vsub.s32 %v2631, %v2633
        %v2635 = vrot.slane %v2628, %v2634
        %v2637 = vmul.f32 %v2597, %v2635
        %v2639 = vlaneseq
        %v2640 = vshrl.u32 %v2639, 7
        %v2641 = vsub.s32 0, %v2640
        %v2642 = vrot.slane %v2637, %v2641
        %v2643 = vlaneseq
        %v2644 = vshrl.u32 %v2643, 7
        %v2645 = vsub.s32 1, %v2644
        %v2646 = vrot.slane %v2637, %v2645
        %v2647 = vlaneseq
        %v2648 = vshrl.u32 %v2647, 7
        %v2649 = vsub.s32 2, %v2648
        %v2650 = vrot.slane %v2637, %v2649
        %v2651 = vlaneseq
        %v2652 = vshrl.u32 %v2651, 7
        %v2653 = vsub.s32 3, %v2652
        %v2654 = vrot.slane %v2637, %v2653
        %v2659 = vmul.f32 %v2553, %v2642
        %v2660 = vmul.f32 %v2554, %v2646
        %v2661 = vmul.f32 %v2555, %v2650
        %v2662 = vmul.f32 %v2556, %v2654
        %v2664 = vlaneseq
        %v2665 = vshrl.u32 %v2664, 7
        %v2666 = vsub.s32 0, %v2665
        %v2667 = vrot.slane %v2599, %v2666
        %v2668 = vlaneseq
        %v2669 = vshrl.u32 %v2668, 7
        %v2670 = vsub.s32 1, %v2669
        %v2671 = vrot.slane %v2599, %v2670
        %v2672 = vlaneseq
        %v2673 = vshrl.u32 %v2672, 7
        %v2674 = vsub.s32 2, %v2673
        %v2675 = vrot.slane %v2599, %v2674
        %v2676 = vlaneseq
        %v2677 = vshrl.u32 %v2676, 7
        %v2678 = vsub.s32 3, %v2677
        %v2679 = vrot.slane %v2599, %v2678
        %v2684 = vadd.f32 %v2659, %v2667
        %v2685 = vadd.f32 %v2660, %v2671
        %v2686 = vadd.f32 %v2661, %v2675
        %v2687 = vadd.f32 %v2662, %v2679
        %v2688 = vmax.f32 %v2684, 0.0
        %v2689 = vmax.f32 %v2685, 0.0
        %v2690 = vmax.f32 %v2686, 0.0
        %v2691 = vmax.f32 %v2687, 0.0
        %v2692 = vld [vmem:[%s325] sm:$0xff]
        %v2693 = vld [vmem:[%s325 + $0x8] sm:$0xff]
        %v2694 = vld [vmem:[%s325 + $0x10] sm:$0xff]
        %v2695 = vld [vmem:[%s325 + $0x18] sm:$0xff]
        %v2696 = vld [vmem:[%s325 + $0x20] sm:$0xff]
        %v2697 = vld [vmem:[%s325 + $0x28] sm:$0xff]
        %v2698 = vld [vmem:[%s325 + $0x30] sm:$0xff]
        %v2699 = vld [vmem:[%s325 + $0x38] sm:$0xff]
        %v2700 = vld [vmem:[%s325 + $0x40] sm:$0xff]
        %v2701 = vld [vmem:[%s325 + $0x48] sm:$0xff]
        %v2702 = vld [vmem:[%s325 + $0x50] sm:$0xff]
        %v2703 = vld [vmem:[%s325 + $0x58] sm:$0xff]
        %v2704 = vld [vmem:[%s325 + $0x60] sm:$0xff]
        %v2705 = vld [vmem:[%s325 + $0x68] sm:$0xff]
        %v2706 = vld [vmem:[%s325 + $0x70] sm:$0xff]
        %v2707 = vld [vmem:[%s325 + $0x78] sm:$0xff]
        %v2708 = vld [vmem:[%s283] sm:$0xff]
        %v2709 = vld [vmem:[%s283 + $0x8] sm:$0xff]
        %v2710 = vld [vmem:[%s283 + $0x10] sm:$0xff]
        %v2711 = vld [vmem:[%s283 + $0x18] sm:$0xff]
        %v2712 = vld [vmem:[%s283 + $0x20] sm:$0xff]
        %v2713 = vld [vmem:[%s283 + $0x28] sm:$0xff]
        %v2714 = vld [vmem:[%s283 + $0x30] sm:$0xff]
        %v2715 = vld [vmem:[%s283 + $0x38] sm:$0xff]
        %v2716 = vld [vmem:[%s283 + $0x40] sm:$0xff]
        %v2717 = vld [vmem:[%s283 + $0x48] sm:$0xff]
        %v2718 = vld [vmem:[%s283 + $0x50] sm:$0xff]
        %v2719 = vld [vmem:[%s283 + $0x58] sm:$0xff]
        %v2720 = vld [vmem:[%s283 + $0x60] sm:$0xff]
        %v2721 = vld [vmem:[%s283 + $0x68] sm:$0xff]
        %v2722 = vld [vmem:[%s283 + $0x70] sm:$0xff]
        %v2723 = vld [vmem:[%s283 + $0x78] sm:$0xff]
        %v2724 = vld [vmem:[%s283 + $0x80] sm:$0xff]
        %v2725 = vld [vmem:[%s283 + $0x88] sm:$0xff]
        %v2726 = vld [vmem:[%s283 + $0x90] sm:$0xff]
        %v2727 = vld [vmem:[%s283 + $0x98] sm:$0xff]
        %v2728 = vld [vmem:[%s283 + $0xa0] sm:$0xff]
        %v2729 = vld [vmem:[%s283 + $0xa8] sm:$0xff]
        %v2730 = vld [vmem:[%s283 + $0xb0] sm:$0xff]
        %v2731 = vld [vmem:[%s283 + $0xb8] sm:$0xff]
        %v2732 = vld [vmem:[%s283 + $0xc0] sm:$0xff]
        %v2733 = vld [vmem:[%s283 + $0xc8] sm:$0xff]
        %v2734 = vld [vmem:[%s283 + $0xd0] sm:$0xff]
        %v2735 = vld [vmem:[%s283 + $0xd8] sm:$0xff]
        %v2736 = vld [vmem:[%s283 + $0xe0] sm:$0xff]
        %v2737 = vld [vmem:[%s283 + $0xe8] sm:$0xff]
        %v2738 = vld [vmem:[%s283 + $0xf0] sm:$0xff]
        %v2739 = vld [vmem:[%s283 + $0xf8] sm:$0xff]
        %v2740 = vld [vmem:[%s283 + $0x100] sm:$0xff]
        %v2741 = vld [vmem:[%s283 + $0x108] sm:$0xff]
        %v2742 = vld [vmem:[%s283 + $0x110] sm:$0xff]
        %v2743 = vld [vmem:[%s283 + $0x118] sm:$0xff]
        %v2744 = vld [vmem:[%s283 + $0x120] sm:$0xff]
        %v2745 = vld [vmem:[%s283 + $0x128] sm:$0xff]
        %v2746 = vld [vmem:[%s283 + $0x130] sm:$0xff]
        %v2747 = vld [vmem:[%s283 + $0x138] sm:$0xff]
        %v2748 = vld [vmem:[%s283 + $0x140] sm:$0xff]
        %v2749 = vld [vmem:[%s283 + $0x148] sm:$0xff]
        %v2750 = vld [vmem:[%s283 + $0x150] sm:$0xff]
        %v2751 = vld [vmem:[%s283 + $0x158] sm:$0xff]
        %v2752 = vld [vmem:[%s283 + $0x160] sm:$0xff]
        %v2753 = vld [vmem:[%s283 + $0x168] sm:$0xff]
        %v2754 = vld [vmem:[%s283 + $0x170] sm:$0xff]
        %v2755 = vld [vmem:[%s283 + $0x178] sm:$0xff]
        %v2756 = vld [vmem:[%s283 + $0x180] sm:$0xff]
        %v2757 = vld [vmem:[%s283 + $0x188] sm:$0xff]
        %v2758 = vld [vmem:[%s283 + $0x190] sm:$0xff]
        %v2759 = vld [vmem:[%s283 + $0x198] sm:$0xff]
        %v2760 = vld [vmem:[%s283 + $0x1a0] sm:$0xff]
        %v2761 = vld [vmem:[%s283 + $0x1a8] sm:$0xff]
        %v2762 = vld [vmem:[%s283 + $0x1b0] sm:$0xff]
        %v2763 = vld [vmem:[%s283 + $0x1b8] sm:$0xff]
        %v2764 = vld [vmem:[%s283 + $0x1c0] sm:$0xff]
        %v2765 = vld [vmem:[%s283 + $0x1c8] sm:$0xff]
        %v2766 = vld [vmem:[%s283 + $0x1d0] sm:$0xff]
        %v2767 = vld [vmem:[%s283 + $0x1d8] sm:$0xff]
        %v2768 = vld [vmem:[%s283 + $0x1e0] sm:$0xff]
        %v2769 = vld [vmem:[%s283 + $0x1e8] sm:$0xff]
        %v2770 = vld [vmem:[%s283 + $0x1f0] sm:$0xff]
        %v2771 = vld [vmem:[%s283 + $0x1f8] sm:$0xff]
        %v2772 = vld [vmem:[%s283 + $0x200] sm:$0xff]
        %v2773 = vld [vmem:[%s283 + $0x208] sm:$0xff]
        %v2774 = vld [vmem:[%s283 + $0x210] sm:$0xff]
        %v2775 = vld [vmem:[%s283 + $0x218] sm:$0xff]
        %v2776 = vld [vmem:[%s283 + $0x220] sm:$0xff]
        %v2777 = vld [vmem:[%s283 + $0x228] sm:$0xff]
        %v2778 = vld [vmem:[%s283 + $0x230] sm:$0xff]
        %v2779 = vld [vmem:[%s283 + $0x238] sm:$0xff]
        %v2780 = vld [vmem:[%s283 + $0x240] sm:$0xff]
        %v2781 = vld [vmem:[%s283 + $0x248] sm:$0xff]
        %v2782 = vld [vmem:[%s283 + $0x250] sm:$0xff]
        %v2783 = vld [vmem:[%s283 + $0x258] sm:$0xff]
        %v2784 = vld [vmem:[%s283 + $0x260] sm:$0xff]
        %v2785 = vld [vmem:[%s283 + $0x268] sm:$0xff]
        %v2786 = vld [vmem:[%s283 + $0x270] sm:$0xff]
        %v2787 = vld [vmem:[%s283 + $0x278] sm:$0xff]
        %v2788 = vld [vmem:[%s283 + $0x280] sm:$0xff]
        %v2789 = vld [vmem:[%s283 + $0x288] sm:$0xff]
        %v2790 = vld [vmem:[%s283 + $0x290] sm:$0xff]
        %v2791 = vld [vmem:[%s283 + $0x298] sm:$0xff]
        %v2792 = vld [vmem:[%s283 + $0x2a0] sm:$0xff]
        %v2793 = vld [vmem:[%s283 + $0x2a8] sm:$0xff]
        %v2794 = vld [vmem:[%s283 + $0x2b0] sm:$0xff]
        %v2795 = vld [vmem:[%s283 + $0x2b8] sm:$0xff]
        %v2796 = vld [vmem:[%s283 + $0x2c0] sm:$0xff]
        %v2797 = vld [vmem:[%s283 + $0x2c8] sm:$0xff]
        %v2798 = vld [vmem:[%s283 + $0x2d0] sm:$0xff]
        %v2799 = vld [vmem:[%s283 + $0x2d8] sm:$0xff]
        %v2800 = vld [vmem:[%s283 + $0x2e0] sm:$0xff]
        %v2801 = vld [vmem:[%s283 + $0x2e8] sm:$0xff]
        %v2802 = vld [vmem:[%s283 + $0x2f0] sm:$0xff]
        %v2803 = vld [vmem:[%s283 + $0x2f8] sm:$0xff]
        %v2804 = vld [vmem:[%s283 + $0x300] sm:$0xff]
        %v2805 = vld [vmem:[%s283 + $0x308] sm:$0xff]
        %v2806 = vld [vmem:[%s283 + $0x310] sm:$0xff]
        %v2807 = vld [vmem:[%s283 + $0x318] sm:$0xff]
        %v2808 = vld [vmem:[%s283 + $0x320] sm:$0xff]
        %v2809 = vld [vmem:[%s283 + $0x328] sm:$0xff]
        %v2810 = vld [vmem:[%s283 + $0x330] sm:$0xff]
        %v2811 = vld [vmem:[%s283 + $0x338] sm:$0xff]
        %v2812 = vld [vmem:[%s283 + $0x340] sm:$0xff]
        %v2813 = vld [vmem:[%s283 + $0x348] sm:$0xff]
        %v2814 = vld [vmem:[%s283 + $0x350] sm:$0xff]
        %v2815 = vld [vmem:[%s283 + $0x358] sm:$0xff]
        %v2816 = vld [vmem:[%s283 + $0x360] sm:$0xff]
        %v2817 = vld [vmem:[%s283 + $0x368] sm:$0xff]
        %v2818 = vld [vmem:[%s283 + $0x370] sm:$0xff]
        %v2819 = vld [vmem:[%s283 + $0x378] sm:$0xff]
        %v2820 = vld [vmem:[%s283 + $0x380] sm:$0xff]
        %v2821 = vld [vmem:[%s283 + $0x388] sm:$0xff]
        %v2822 = vld [vmem:[%s283 + $0x390] sm:$0xff]
        %v2823 = vld [vmem:[%s283 + $0x398] sm:$0xff]
        %v2824 = vld [vmem:[%s283 + $0x3a0] sm:$0xff]
        %v2825 = vld [vmem:[%s283 + $0x3a8] sm:$0xff]
        %v2826 = vld [vmem:[%s283 + $0x3b0] sm:$0xff]
        %v2827 = vld [vmem:[%s283 + $0x3b8] sm:$0xff]
        %v2828 = vld [vmem:[%s283 + $0x3c0] sm:$0xff]
        %v2829 = vld [vmem:[%s283 + $0x3c8] sm:$0xff]
        %v2830 = vld [vmem:[%s283 + $0x3d0] sm:$0xff]
        %v2831 = vld [vmem:[%s283 + $0x3d8] sm:$0xff]
        %v2832 = vld [vmem:[%s283 + $0x3e0] sm:$0xff]
        %v2833 = vld [vmem:[%s283 + $0x3e8] sm:$0xff]
        %v2834 = vld [vmem:[%s283 + $0x3f0] sm:$0xff]
        %v2835 = vld [vmem:[%s283 + $0x3f8] sm:$0xff]
        %v2836 = vld [vmem:[%s283 + $0x400] sm:$0xff]
        %v2837 = vld [vmem:[%s283 + $0x408] sm:$0xff]
        %v2838 = vld [vmem:[%s283 + $0x410] sm:$0xff]
        %v2839 = vld [vmem:[%s283 + $0x418] sm:$0xff]
        %v2840 = vld [vmem:[%s283 + $0x420] sm:$0xff]
        %v2841 = vld [vmem:[%s283 + $0x428] sm:$0xff]
        %v2842 = vld [vmem:[%s283 + $0x430] sm:$0xff]
        %v2843 = vld [vmem:[%s283 + $0x438] sm:$0xff]
        %v2844 = vld [vmem:[%s283 + $0x440] sm:$0xff]
        %v2845 = vld [vmem:[%s283 + $0x448] sm:$0xff]
        %v2846 = vld [vmem:[%s283 + $0x450] sm:$0xff]
        %v2847 = vld [vmem:[%s283 + $0x458] sm:$0xff]
        %v2848 = vld [vmem:[%s283 + $0x460] sm:$0xff]
        %v2849 = vld [vmem:[%s283 + $0x468] sm:$0xff]
        %v2850 = vld [vmem:[%s283 + $0x470] sm:$0xff]
        %v2851 = vld [vmem:[%s283 + $0x478] sm:$0xff]
        %v2852 = vld [vmem:[%s283 + $0x480] sm:$0xff]
        %v2853 = vld [vmem:[%s283 + $0x488] sm:$0xff]
        %v2854 = vld [vmem:[%s283 + $0x490] sm:$0xff]
        %v2855 = vld [vmem:[%s283 + $0x498] sm:$0xff]
        %v2856 = vld [vmem:[%s283 + $0x4a0] sm:$0xff]
        %v2857 = vld [vmem:[%s283 + $0x4a8] sm:$0xff]
        %v2858 = vld [vmem:[%s283 + $0x4b0] sm:$0xff]
        %v2859 = vld [vmem:[%s283 + $0x4b8] sm:$0xff]
        %v2860 = vld [vmem:[%s283 + $0x4c0] sm:$0xff]
        %v2861 = vld [vmem:[%s283 + $0x4c8] sm:$0xff]
        %v2862 = vld [vmem:[%s283 + $0x4d0] sm:$0xff]
        %v2863 = vld [vmem:[%s283 + $0x4d8] sm:$0xff]
        %v2864 = vld [vmem:[%s283 + $0x4e0] sm:$0xff]
        %v2865 = vld [vmem:[%s283 + $0x4e8] sm:$0xff]
        %v2866 = vld [vmem:[%s283 + $0x4f0] sm:$0xff]
        %v2867 = vld [vmem:[%s283 + $0x4f8] sm:$0xff]
        %v2868 = vld [vmem:[%s283 + $0x500] sm:$0xff]
        %v2869 = vld [vmem:[%s283 + $0x508] sm:$0xff]
        %v2870 = vld [vmem:[%s283 + $0x510] sm:$0xff]
        %v2871 = vld [vmem:[%s283 + $0x518] sm:$0xff]
        %v2872 = vld [vmem:[%s283 + $0x520] sm:$0xff]
        %v2873 = vld [vmem:[%s283 + $0x528] sm:$0xff]
        %v2874 = vld [vmem:[%s283 + $0x530] sm:$0xff]
        %v2875 = vld [vmem:[%s283 + $0x538] sm:$0xff]
        %v2876 = vld [vmem:[%s283 + $0x540] sm:$0xff]
        %v2877 = vld [vmem:[%s283 + $0x548] sm:$0xff]
        %v2878 = vld [vmem:[%s283 + $0x550] sm:$0xff]
        %v2879 = vld [vmem:[%s283 + $0x558] sm:$0xff]
        %v2880 = vld [vmem:[%s283 + $0x560] sm:$0xff]
        %v2881 = vld [vmem:[%s283 + $0x568] sm:$0xff]
        %v2882 = vld [vmem:[%s283 + $0x570] sm:$0xff]
        %v2883 = vld [vmem:[%s283 + $0x578] sm:$0xff]
        %v2884 = vld [vmem:[%s283 + $0x580] sm:$0xff]
        %v2885 = vld [vmem:[%s283 + $0x588] sm:$0xff]
        %v2886 = vld [vmem:[%s283 + $0x590] sm:$0xff]
        %v2887 = vld [vmem:[%s283 + $0x598] sm:$0xff]
        %v2888 = vld [vmem:[%s283 + $0x5a0] sm:$0xff]
        %v2889 = vld [vmem:[%s283 + $0x5a8] sm:$0xff]
        %v2890 = vld [vmem:[%s283 + $0x5b0] sm:$0xff]
        %v2891 = vld [vmem:[%s283 + $0x5b8] sm:$0xff]
        %v2892 = vld [vmem:[%s283 + $0x5c0] sm:$0xff]
        %v2893 = vld [vmem:[%s283 + $0x5c8] sm:$0xff]
        %v2894 = vld [vmem:[%s283 + $0x5d0] sm:$0xff]
        %v2895 = vld [vmem:[%s283 + $0x5d8] sm:$0xff]
        %v2896 = vld [vmem:[%s283 + $0x5e0] sm:$0xff]
        %v2897 = vld [vmem:[%s283 + $0x5e8] sm:$0xff]
        %v2898 = vld [vmem:[%s283 + $0x5f0] sm:$0xff]
        %v2899 = vld [vmem:[%s283 + $0x5f8] sm:$0xff]
        %v2900 = vld [vmem:[%s283 + $0x600] sm:$0xff]
        %v2901 = vld [vmem:[%s283 + $0x608] sm:$0xff]
        %v2902 = vld [vmem:[%s283 + $0x610] sm:$0xff]
        %v2903 = vld [vmem:[%s283 + $0x618] sm:$0xff]
        %v2904 = vld [vmem:[%s283 + $0x620] sm:$0xff]
        %v2905 = vld [vmem:[%s283 + $0x628] sm:$0xff]
        %v2906 = vld [vmem:[%s283 + $0x630] sm:$0xff]
        %v2907 = vld [vmem:[%s283 + $0x638] sm:$0xff]
        %v2908 = vld [vmem:[%s283 + $0x640] sm:$0xff]
        %v2909 = vld [vmem:[%s283 + $0x648] sm:$0xff]
        %v2910 = vld [vmem:[%s283 + $0x650] sm:$0xff]
        %v2911 = vld [vmem:[%s283 + $0x658] sm:$0xff]
        %v2912 = vld [vmem:[%s283 + $0x660] sm:$0xff]
        %v2913 = vld [vmem:[%s283 + $0x668] sm:$0xff]
        %v2914 = vld [vmem:[%s283 + $0x670] sm:$0xff]
        %v2915 = vld [vmem:[%s283 + $0x678] sm:$0xff]
        %v2916 = vld [vmem:[%s283 + $0x680] sm:$0xff]
        %v2917 = vld [vmem:[%s283 + $0x688] sm:$0xff]
        %v2918 = vld [vmem:[%s283 + $0x690] sm:$0xff]
        %v2919 = vld [vmem:[%s283 + $0x698] sm:$0xff]
        %v2920 = vld [vmem:[%s283 + $0x6a0] sm:$0xff]
        %v2921 = vld [vmem:[%s283 + $0x6a8] sm:$0xff]
        %v2922 = vld [vmem:[%s283 + $0x6b0] sm:$0xff]
        %v2923 = vld [vmem:[%s283 + $0x6b8] sm:$0xff]
        %v2924 = vld [vmem:[%s283 + $0x6c0] sm:$0xff]
        %v2925 = vld [vmem:[%s283 + $0x6c8] sm:$0xff]
        %v2926 = vld [vmem:[%s283 + $0x6d0] sm:$0xff]
        %v2927 = vld [vmem:[%s283 + $0x6d8] sm:$0xff]
        %v2928 = vld [vmem:[%s283 + $0x6e0] sm:$0xff]
        %v2929 = vld [vmem:[%s283 + $0x6e8] sm:$0xff]
        %v2930 = vld [vmem:[%s283 + $0x6f0] sm:$0xff]
        %v2931 = vld [vmem:[%s283 + $0x6f8] sm:$0xff]
        %v2932 = vld [vmem:[%s283 + $0x700] sm:$0xff]
        %v2933 = vld [vmem:[%s283 + $0x708] sm:$0xff]
        %v2934 = vld [vmem:[%s283 + $0x710] sm:$0xff]
        %v2935 = vld [vmem:[%s283 + $0x718] sm:$0xff]
        %v2936 = vld [vmem:[%s283 + $0x720] sm:$0xff]
        %v2937 = vld [vmem:[%s283 + $0x728] sm:$0xff]
        %v2938 = vld [vmem:[%s283 + $0x730] sm:$0xff]
        %v2939 = vld [vmem:[%s283 + $0x738] sm:$0xff]
        %v2940 = vld [vmem:[%s283 + $0x740] sm:$0xff]
        %v2941 = vld [vmem:[%s283 + $0x748] sm:$0xff]
        %v2942 = vld [vmem:[%s283 + $0x750] sm:$0xff]
        %v2943 = vld [vmem:[%s283 + $0x758] sm:$0xff]
        %v2944 = vld [vmem:[%s283 + $0x760] sm:$0xff]
        %v2945 = vld [vmem:[%s283 + $0x768] sm:$0xff]
        %v2946 = vld [vmem:[%s283 + $0x770] sm:$0xff]
        %v2947 = vld [vmem:[%s283 + $0x778] sm:$0xff]
        %v2948 = vld [vmem:[%s283 + $0x780] sm:$0xff]
        %v2949 = vld [vmem:[%s283 + $0x788] sm:$0xff]
        %v2950 = vld [vmem:[%s283 + $0x790] sm:$0xff]
        %v2951 = vld [vmem:[%s283 + $0x798] sm:$0xff]
        %v2952 = vld [vmem:[%s283 + $0x7a0] sm:$0xff]
        %v2953 = vld [vmem:[%s283 + $0x7a8] sm:$0xff]
        %v2954 = vld [vmem:[%s283 + $0x7b0] sm:$0xff]
        %v2955 = vld [vmem:[%s283 + $0x7b8] sm:$0xff]
        %v2956 = vld [vmem:[%s283 + $0x7c0] sm:$0xff]
        %v2957 = vld [vmem:[%s283 + $0x7c8] sm:$0xff]
        %v2958 = vld [vmem:[%s283 + $0x7d0] sm:$0xff]
        %v2959 = vld [vmem:[%s283 + $0x7d8] sm:$0xff]
        %v2960 = vld [vmem:[%s283 + $0x7e0] sm:$0xff]
        %v2961 = vld [vmem:[%s283 + $0x7e8] sm:$0xff]
        %v2962 = vld [vmem:[%s283 + $0x7f0] sm:$0xff]
        %v2963 = vld [vmem:[%s283 + $0x7f8] sm:$0xff]
        %v2964 = vld [vmem:[%s283 + $0x800] sm:$0xff]
        %v2965 = vld [vmem:[%s283 + $0x808] sm:$0xff]
        %v2966 = vld [vmem:[%s283 + $0x810] sm:$0xff]
        %v2967 = vld [vmem:[%s283 + $0x818] sm:$0xff]
        %v2968 = vld [vmem:[%s283 + $0x820] sm:$0xff]
        %v2969 = vld [vmem:[%s283 + $0x828] sm:$0xff]
        %v2970 = vld [vmem:[%s283 + $0x830] sm:$0xff]
        %v2971 = vld [vmem:[%s283 + $0x838] sm:$0xff]
        %v2972 = vld [vmem:[%s283 + $0x840] sm:$0xff]
        %v2973 = vld [vmem:[%s283 + $0x848] sm:$0xff]
        %v2974 = vld [vmem:[%s283 + $0x850] sm:$0xff]
        %v2975 = vld [vmem:[%s283 + $0x858] sm:$0xff]
        %v2976 = vld [vmem:[%s283 + $0x860] sm:$0xff]
        %v2977 = vld [vmem:[%s283 + $0x868] sm:$0xff]
        %v2978 = vld [vmem:[%s283 + $0x870] sm:$0xff]
        %v2979 = vld [vmem:[%s283 + $0x878] sm:$0xff]
        %v2980 = vld [vmem:[%s283 + $0x880] sm:$0xff]
        %v2981 = vld [vmem:[%s283 + $0x888] sm:$0xff]
        %v2982 = vld [vmem:[%s283 + $0x890] sm:$0xff]
        %v2983 = vld [vmem:[%s283 + $0x898] sm:$0xff]
        %v2984 = vld [vmem:[%s283 + $0x8a0] sm:$0xff]
        %v2985 = vld [vmem:[%s283 + $0x8a8] sm:$0xff]
        %v2986 = vld [vmem:[%s283 + $0x8b0] sm:$0xff]
        %v2987 = vld [vmem:[%s283 + $0x8b8] sm:$0xff]
        %v2988 = vld [vmem:[%s283 + $0x8c0] sm:$0xff]
        %v2989 = vld [vmem:[%s283 + $0x8c8] sm:$0xff]
        %v2990 = vld [vmem:[%s283 + $0x8d0] sm:$0xff]
        %v2991 = vld [vmem:[%s283 + $0x8d8] sm:$0xff]
        %v2992 = vld [vmem:[%s283 + $0x8e0] sm:$0xff]
        %v2993 = vld [vmem:[%s283 + $0x8e8] sm:$0xff]
        %v2994 = vld [vmem:[%s283 + $0x8f0] sm:$0xff]
        %v2995 = vld [vmem:[%s283 + $0x8f8] sm:$0xff]
        %v2996 = vld [vmem:[%s283 + $0x900] sm:$0xff]
        %v2997 = vld [vmem:[%s283 + $0x908] sm:$0xff]
        %v2998 = vld [vmem:[%s283 + $0x910] sm:$0xff]
        %v2999 = vld [vmem:[%s283 + $0x918] sm:$0xff]
        %v3000 = vld [vmem:[%s283 + $0x920] sm:$0xff]
        %v3001 = vld [vmem:[%s283 + $0x928] sm:$0xff]
        %v3002 = vld [vmem:[%s283 + $0x930] sm:$0xff]
        %v3003 = vld [vmem:[%s283 + $0x938] sm:$0xff]
        %v3004 = vld [vmem:[%s283 + $0x940] sm:$0xff]
        %v3005 = vld [vmem:[%s283 + $0x948] sm:$0xff]
        %v3006 = vld [vmem:[%s283 + $0x950] sm:$0xff]
        %v3007 = vld [vmem:[%s283 + $0x958] sm:$0xff]
        %v3008 = vld [vmem:[%s283 + $0x960] sm:$0xff]
        %v3009 = vld [vmem:[%s283 + $0x968] sm:$0xff]
        %v3010 = vld [vmem:[%s283 + $0x970] sm:$0xff]
        %v3011 = vld [vmem:[%s283 + $0x978] sm:$0xff]
        %v3012 = vld [vmem:[%s283 + $0x980] sm:$0xff]
        %v3013 = vld [vmem:[%s283 + $0x988] sm:$0xff]
        %v3014 = vld [vmem:[%s283 + $0x990] sm:$0xff]
        %v3015 = vld [vmem:[%s283 + $0x998] sm:$0xff]
        %v3016 = vld [vmem:[%s283 + $0x9a0] sm:$0xff]
        %v3017 = vld [vmem:[%s283 + $0x9a8] sm:$0xff]
        %v3018 = vld [vmem:[%s283 + $0x9b0] sm:$0xff]
        %v3019 = vld [vmem:[%s283 + $0x9b8] sm:$0xff]
        %v3020 = vld [vmem:[%s283 + $0x9c0] sm:$0xff]
        %v3021 = vld [vmem:[%s283 + $0x9c8] sm:$0xff]
        %v3022 = vld [vmem:[%s283 + $0x9d0] sm:$0xff]
        %v3023 = vld [vmem:[%s283 + $0x9d8] sm:$0xff]
        %v3024 = vld [vmem:[%s283 + $0x9e0] sm:$0xff]
        %v3025 = vld [vmem:[%s283 + $0x9e8] sm:$0xff]
        %v3026 = vld [vmem:[%s283 + $0x9f0] sm:$0xff]
        %v3027 = vld [vmem:[%s283 + $0x9f8] sm:$0xff]
        %v3028 = vld [vmem:[%s283 + $0xa00] sm:$0xff]
        %v3029 = vld [vmem:[%s283 + $0xa08] sm:$0xff]
        %v3030 = vld [vmem:[%s283 + $0xa10] sm:$0xff]
        %v3031 = vld [vmem:[%s283 + $0xa18] sm:$0xff]
        %v3032 = vld [vmem:[%s283 + $0xa20] sm:$0xff]
        %v3033 = vld [vmem:[%s283 + $0xa28] sm:$0xff]
        %v3034 = vld [vmem:[%s283 + $0xa30] sm:$0xff]
        %v3035 = vld [vmem:[%s283 + $0xa38] sm:$0xff]
        %v3036 = vld [vmem:[%s283 + $0xa40] sm:$0xff]
        %v3037 = vld [vmem:[%s283 + $0xa48] sm:$0xff]
        %v3038 = vld [vmem:[%s283 + $0xa50] sm:$0xff]
        %v3039 = vld [vmem:[%s283 + $0xa58] sm:$0xff]
        %v3040 = vld [vmem:[%s283 + $0xa60] sm:$0xff]
        %v3041 = vld [vmem:[%s283 + $0xa68] sm:$0xff]
        %v3042 = vld [vmem:[%s283 + $0xa70] sm:$0xff]
        %v3043 = vld [vmem:[%s283 + $0xa78] sm:$0xff]
        %v3044 = vld [vmem:[%s283 + $0xa80] sm:$0xff]
        %v3045 = vld [vmem:[%s283 + $0xa88] sm:$0xff]
        %v3046 = vld [vmem:[%s283 + $0xa90] sm:$0xff]
        %v3047 = vld [vmem:[%s283 + $0xa98] sm:$0xff]
        %v3048 = vld [vmem:[%s283 + $0xaa0] sm:$0xff]
        %v3049 = vld [vmem:[%s283 + $0xaa8] sm:$0xff]
        %v3050 = vld [vmem:[%s283 + $0xab0] sm:$0xff]
        %v3051 = vld [vmem:[%s283 + $0xab8] sm:$0xff]
        %v3052 = vld [vmem:[%s283 + $0xac0] sm:$0xff]
        %v3053 = vld [vmem:[%s283 + $0xac8] sm:$0xff]
        %v3054 = vld [vmem:[%s283 + $0xad0] sm:$0xff]
        %v3055 = vld [vmem:[%s283 + $0xad8] sm:$0xff]
        %v3056 = vld [vmem:[%s283 + $0xae0] sm:$0xff]
        %v3057 = vld [vmem:[%s283 + $0xae8] sm:$0xff]
        %v3058 = vld [vmem:[%s283 + $0xaf0] sm:$0xff]
        %v3059 = vld [vmem:[%s283 + $0xaf8] sm:$0xff]
        %v3060 = vld [vmem:[%s283 + $0xb00] sm:$0xff]
        %v3061 = vld [vmem:[%s283 + $0xb08] sm:$0xff]
        %v3062 = vld [vmem:[%s283 + $0xb10] sm:$0xff]
        %v3063 = vld [vmem:[%s283 + $0xb18] sm:$0xff]
        %v3064 = vld [vmem:[%s283 + $0xb20] sm:$0xff]
        %v3065 = vld [vmem:[%s283 + $0xb28] sm:$0xff]
        %v3066 = vld [vmem:[%s283 + $0xb30] sm:$0xff]
        %v3067 = vld [vmem:[%s283 + $0xb38] sm:$0xff]
        %v3068 = vld [vmem:[%s283 + $0xb40] sm:$0xff]
        %v3069 = vld [vmem:[%s283 + $0xb48] sm:$0xff]
        %v3070 = vld [vmem:[%s283 + $0xb50] sm:$0xff]
        %v3071 = vld [vmem:[%s283 + $0xb58] sm:$0xff]
        %v3072 = vld [vmem:[%s283 + $0xb60] sm:$0xff]
        %v3073 = vld [vmem:[%s283 + $0xb68] sm:$0xff]
        %v3074 = vld [vmem:[%s283 + $0xb70] sm:$0xff]
        %v3075 = vld [vmem:[%s283 + $0xb78] sm:$0xff]
        %v3076 = vld [vmem:[%s283 + $0xb80] sm:$0xff]
        %v3077 = vld [vmem:[%s283 + $0xb88] sm:$0xff]
        %v3078 = vld [vmem:[%s283 + $0xb90] sm:$0xff]
        %v3079 = vld [vmem:[%s283 + $0xb98] sm:$0xff]
        %v3080 = vld [vmem:[%s283 + $0xba0] sm:$0xff]
        %v3081 = vld [vmem:[%s283 + $0xba8] sm:$0xff]
        %v3082 = vld [vmem:[%s283 + $0xbb0] sm:$0xff]
        %v3083 = vld [vmem:[%s283 + $0xbb8] sm:$0xff]
        %v3084 = vld [vmem:[%s283 + $0xbc0] sm:$0xff]
        %v3085 = vld [vmem:[%s283 + $0xbc8] sm:$0xff]
        %v3086 = vld [vmem:[%s283 + $0xbd0] sm:$0xff]
        %v3087 = vld [vmem:[%s283 + $0xbd8] sm:$0xff]
        %v3088 = vld [vmem:[%s283 + $0xbe0] sm:$0xff]
        %v3089 = vld [vmem:[%s283 + $0xbe8] sm:$0xff]
        %v3090 = vld [vmem:[%s283 + $0xbf0] sm:$0xff]
        %v3091 = vld [vmem:[%s283 + $0xbf8] sm:$0xff]
        %v3092 = vld [vmem:[%s283 + $0xc00] sm:$0xff]
        %v3093 = vld [vmem:[%s283 + $0xc08] sm:$0xff]
        %v3094 = vld [vmem:[%s283 + $0xc10] sm:$0xff]
        %v3095 = vld [vmem:[%s283 + $0xc18] sm:$0xff]
        %v3096 = vld [vmem:[%s283 + $0xc20] sm:$0xff]
        %v3097 = vld [vmem:[%s283 + $0xc28] sm:$0xff]
        %v3098 = vld [vmem:[%s283 + $0xc30] sm:$0xff]
        %v3099 = vld [vmem:[%s283 + $0xc38] sm:$0xff]
        %v3100 = vld [vmem:[%s283 + $0xc40] sm:$0xff]
        %v3101 = vld [vmem:[%s283 + $0xc48] sm:$0xff]
        %v3102 = vld [vmem:[%s283 + $0xc50] sm:$0xff]
        %v3103 = vld [vmem:[%s283 + $0xc58] sm:$0xff]
        %v3104 = vld [vmem:[%s283 + $0xc60] sm:$0xff]
        %v3105 = vld [vmem:[%s283 + $0xc68] sm:$0xff]
        %v3106 = vld [vmem:[%s283 + $0xc70] sm:$0xff]
        %v3107 = vld [vmem:[%s283 + $0xc78] sm:$0xff]
        %v3108 = vld [vmem:[%s283 + $0xc80] sm:$0xff]
        %v3109 = vld [vmem:[%s283 + $0xc88] sm:$0xff]
        %v3110 = vld [vmem:[%s283 + $0xc90] sm:$0xff]
        %v3111 = vld [vmem:[%s283 + $0xc98] sm:$0xff]
        %v3112 = vld [vmem:[%s283 + $0xca0] sm:$0xff]
        %v3113 = vld [vmem:[%s283 + $0xca8] sm:$0xff]
        %v3114 = vld [vmem:[%s283 + $0xcb0] sm:$0xff]
        %v3115 = vld [vmem:[%s283 + $0xcb8] sm:$0xff]
        %v3116 = vld [vmem:[%s283 + $0xcc0] sm:$0xff]
        %v3117 = vld [vmem:[%s283 + $0xcc8] sm:$0xff]
        %v3118 = vld [vmem:[%s283 + $0xcd0] sm:$0xff]
        %v3119 = vld [vmem:[%s283 + $0xcd8] sm:$0xff]
        %v3120 = vld [vmem:[%s283 + $0xce0] sm:$0xff]
        %v3121 = vld [vmem:[%s283 + $0xce8] sm:$0xff]
        %v3122 = vld [vmem:[%s283 + $0xcf0] sm:$0xff]
        %v3123 = vld [vmem:[%s283 + $0xcf8] sm:$0xff]
        %v3124 = vld [vmem:[%s283 + $0xd00] sm:$0xff]
        %v3125 = vld [vmem:[%s283 + $0xd08] sm:$0xff]
        %v3126 = vld [vmem:[%s283 + $0xd10] sm:$0xff]
        %v3127 = vld [vmem:[%s283 + $0xd18] sm:$0xff]
        %v3128 = vld [vmem:[%s283 + $0xd20] sm:$0xff]
        %v3129 = vld [vmem:[%s283 + $0xd28] sm:$0xff]
        %v3130 = vld [vmem:[%s283 + $0xd30] sm:$0xff]
        %v3131 = vld [vmem:[%s283 + $0xd38] sm:$0xff]
        %v3132 = vld [vmem:[%s283 + $0xd40] sm:$0xff]
        %v3133 = vld [vmem:[%s283 + $0xd48] sm:$0xff]
        %v3134 = vld [vmem:[%s283 + $0xd50] sm:$0xff]
        %v3135 = vld [vmem:[%s283 + $0xd58] sm:$0xff]
        %v3136 = vld [vmem:[%s283 + $0xd60] sm:$0xff]
        %v3137 = vld [vmem:[%s283 + $0xd68] sm:$0xff]
        %v3138 = vld [vmem:[%s283 + $0xd70] sm:$0xff]
        %v3139 = vld [vmem:[%s283 + $0xd78] sm:$0xff]
        %v3140 = vld [vmem:[%s283 + $0xd80] sm:$0xff]
        %v3141 = vld [vmem:[%s283 + $0xd88] sm:$0xff]
        %v3142 = vld [vmem:[%s283 + $0xd90] sm:$0xff]
        %v3143 = vld [vmem:[%s283 + $0xd98] sm:$0xff]
        %v3144 = vld [vmem:[%s283 + $0xda0] sm:$0xff]
        %v3145 = vld [vmem:[%s283 + $0xda8] sm:$0xff]
        %v3146 = vld [vmem:[%s283 + $0xdb0] sm:$0xff]
        %v3147 = vld [vmem:[%s283 + $0xdb8] sm:$0xff]
        %v3148 = vld [vmem:[%s283 + $0xdc0] sm:$0xff]
        %v3149 = vld [vmem:[%s283 + $0xdc8] sm:$0xff]
        %v3150 = vld [vmem:[%s283 + $0xdd0] sm:$0xff]
        %v3151 = vld [vmem:[%s283 + $0xdd8] sm:$0xff]
        %v3152 = vld [vmem:[%s283 + $0xde0] sm:$0xff]
        %v3153 = vld [vmem:[%s283 + $0xde8] sm:$0xff]
        %v3154 = vld [vmem:[%s283 + $0xdf0] sm:$0xff]
        %v3155 = vld [vmem:[%s283 + $0xdf8] sm:$0xff]
        %v3156 = vld [vmem:[%s283 + $0xe00] sm:$0xff]
        %v3157 = vld [vmem:[%s283 + $0xe08] sm:$0xff]
        %v3158 = vld [vmem:[%s283 + $0xe10] sm:$0xff]
        %v3159 = vld [vmem:[%s283 + $0xe18] sm:$0xff]
        %v3160 = vld [vmem:[%s283 + $0xe20] sm:$0xff]
        %v3161 = vld [vmem:[%s283 + $0xe28] sm:$0xff]
        %v3162 = vld [vmem:[%s283 + $0xe30] sm:$0xff]
        %v3163 = vld [vmem:[%s283 + $0xe38] sm:$0xff]
        %v3164 = vld [vmem:[%s283 + $0xe40] sm:$0xff]
        %v3165 = vld [vmem:[%s283 + $0xe48] sm:$0xff]
        %v3166 = vld [vmem:[%s283 + $0xe50] sm:$0xff]
        %v3167 = vld [vmem:[%s283 + $0xe58] sm:$0xff]
        %v3168 = vld [vmem:[%s283 + $0xe60] sm:$0xff]
        %v3169 = vld [vmem:[%s283 + $0xe68] sm:$0xff]
        %v3170 = vld [vmem:[%s283 + $0xe70] sm:$0xff]
        %v3171 = vld [vmem:[%s283 + $0xe78] sm:$0xff]
        %v3172 = vld [vmem:[%s283 + $0xe80] sm:$0xff]
        %v3173 = vld [vmem:[%s283 + $0xe88] sm:$0xff]
        %v3174 = vld [vmem:[%s283 + $0xe90] sm:$0xff]
        %v3175 = vld [vmem:[%s283 + $0xe98] sm:$0xff]
        %v3176 = vld [vmem:[%s283 + $0xea0] sm:$0xff]
        %v3177 = vld [vmem:[%s283 + $0xea8] sm:$0xff]
        %v3178 = vld [vmem:[%s283 + $0xeb0] sm:$0xff]
        %v3179 = vld [vmem:[%s283 + $0xeb8] sm:$0xff]
        %v3180 = vld [vmem:[%s283 + $0xec0] sm:$0xff]
        %v3181 = vld [vmem:[%s283 + $0xec8] sm:$0xff]
        %v3182 = vld [vmem:[%s283 + $0xed0] sm:$0xff]
        %v3183 = vld [vmem:[%s283 + $0xed8] sm:$0xff]
        %v3184 = vld [vmem:[%s283 + $0xee0] sm:$0xff]
        %v3185 = vld [vmem:[%s283 + $0xee8] sm:$0xff]
        %v3186 = vld [vmem:[%s283 + $0xef0] sm:$0xff]
        %v3187 = vld [vmem:[%s283 + $0xef8] sm:$0xff]
        %v3188 = vld [vmem:[%s283 + $0xf00] sm:$0xff]
        %v3189 = vld [vmem:[%s283 + $0xf08] sm:$0xff]
        %v3190 = vld [vmem:[%s283 + $0xf10] sm:$0xff]
        %v3191 = vld [vmem:[%s283 + $0xf18] sm:$0xff]
        %v3192 = vld [vmem:[%s283 + $0xf20] sm:$0xff]
        %v3193 = vld [vmem:[%s283 + $0xf28] sm:$0xff]
        %v3194 = vld [vmem:[%s283 + $0xf30] sm:$0xff]
        %v3195 = vld [vmem:[%s283 + $0xf38] sm:$0xff]
        %v3196 = vld [vmem:[%s283 + $0xf40] sm:$0xff]
        %v3197 = vld [vmem:[%s283 + $0xf48] sm:$0xff]
        %v3198 = vld [vmem:[%s283 + $0xf50] sm:$0xff]
        %v3199 = vld [vmem:[%s283 + $0xf58] sm:$0xff]
        %v3200 = vld [vmem:[%s283 + $0xf60] sm:$0xff]
        %v3201 = vld [vmem:[%s283 + $0xf68] sm:$0xff]
        %v3202 = vld [vmem:[%s283 + $0xf70] sm:$0xff]
        %v3203 = vld [vmem:[%s283 + $0xf78] sm:$0xff]
        %v3204 = vld [vmem:[%s283 + $0xf80] sm:$0xff]
        %v3205 = vld [vmem:[%s283 + $0xf88] sm:$0xff]
        %v3206 = vld [vmem:[%s283 + $0xf90] sm:$0xff]
        %v3207 = vld [vmem:[%s283 + $0xf98] sm:$0xff]
        %v3208 = vld [vmem:[%s283 + $0xfa0] sm:$0xff]
        %v3209 = vld [vmem:[%s283 + $0xfa8] sm:$0xff]
        %v3210 = vld [vmem:[%s283 + $0xfb0] sm:$0xff]
        %v3211 = vld [vmem:[%s283 + $0xfb8] sm:$0xff]
        %v3212 = vld [vmem:[%s283 + $0xfc0] sm:$0xff]
        %v3213 = vld [vmem:[%s283 + $0xfc8] sm:$0xff]
        %v3214 = vld [vmem:[%s283 + $0xfd0] sm:$0xff]
        %v3215 = vld [vmem:[%s283 + $0xfd8] sm:$0xff]
        %v3216 = vld [vmem:[%s283 + $0xfe0] sm:$0xff]
        %v3217 = vld [vmem:[%s283 + $0xfe8] sm:$0xff]
        %v3218 = vld [vmem:[%s283 + $0xff0] sm:$0xff]
        %v3219 = vld [vmem:[%s283 + $0xff8] sm:$0xff]
        %v3220 = vld [vmem:[%s283 + $0x1000] sm:$0xff]
        %v3221 = vld [vmem:[%s283 + $0x1008] sm:$0xff]
        %v3222 = vld [vmem:[%s283 + $0x1010] sm:$0xff]
        %v3223 = vld [vmem:[%s283 + $0x1018] sm:$0xff]
        %v3224 = vld [vmem:[%s283 + $0x1020] sm:$0xff]
        %v3225 = vld [vmem:[%s283 + $0x1028] sm:$0xff]
        %v3226 = vld [vmem:[%s283 + $0x1030] sm:$0xff]
        %v3227 = vld [vmem:[%s283 + $0x1038] sm:$0xff]
        %v3228 = vld [vmem:[%s283 + $0x1040] sm:$0xff]
        %v3229 = vld [vmem:[%s283 + $0x1048] sm:$0xff]
        %v3230 = vld [vmem:[%s283 + $0x1050] sm:$0xff]
        %v3231 = vld [vmem:[%s283 + $0x1058] sm:$0xff]
        %v3232 = vld [vmem:[%s283 + $0x1060] sm:$0xff]
        %v3233 = vld [vmem:[%s283 + $0x1068] sm:$0xff]
        %v3234 = vld [vmem:[%s283 + $0x1070] sm:$0xff]
        %v3235 = vld [vmem:[%s283 + $0x1078] sm:$0xff]
        %v3236 = vld [vmem:[%s283 + $0x1080] sm:$0xff]
        %v3237 = vld [vmem:[%s283 + $0x1088] sm:$0xff]
        %v3238 = vld [vmem:[%s283 + $0x1090] sm:$0xff]
        %v3239 = vld [vmem:[%s283 + $0x1098] sm:$0xff]
        %v3240 = vld [vmem:[%s283 + $0x10a0] sm:$0xff]
        %v3241 = vld [vmem:[%s283 + $0x10a8] sm:$0xff]
        %v3242 = vld [vmem:[%s283 + $0x10b0] sm:$0xff]
        %v3243 = vld [vmem:[%s283 + $0x10b8] sm:$0xff]
        %v3244 = vld [vmem:[%s283 + $0x10c0] sm:$0xff]
        %v3245 = vld [vmem:[%s283 + $0x10c8] sm:$0xff]
        %v3246 = vld [vmem:[%s283 + $0x10d0] sm:$0xff]
        %v3247 = vld [vmem:[%s283 + $0x10d8] sm:$0xff]
        %v3248 = vld [vmem:[%s283 + $0x10e0] sm:$0xff]
        %v3249 = vld [vmem:[%s283 + $0x10e8] sm:$0xff]
        %v3250 = vld [vmem:[%s283 + $0x10f0] sm:$0xff]
        %v3251 = vld [vmem:[%s283 + $0x10f8] sm:$0xff]
        %v3252 = vld [vmem:[%s283 + $0x1100] sm:$0xff]
        %v3253 = vld [vmem:[%s283 + $0x1108] sm:$0xff]
        %v3254 = vld [vmem:[%s283 + $0x1110] sm:$0xff]
        %v3255 = vld [vmem:[%s283 + $0x1118] sm:$0xff]
        %v3256 = vld [vmem:[%s283 + $0x1120] sm:$0xff]
        %v3257 = vld [vmem:[%s283 + $0x1128] sm:$0xff]
        %v3258 = vld [vmem:[%s283 + $0x1130] sm:$0xff]
        %v3259 = vld [vmem:[%s283 + $0x1138] sm:$0xff]
        %v3260 = vld [vmem:[%s283 + $0x1140] sm:$0xff]
        %v3261 = vld [vmem:[%s283 + $0x1148] sm:$0xff]
        %v3262 = vld [vmem:[%s283 + $0x1150] sm:$0xff]
        %v3263 = vld [vmem:[%s283 + $0x1158] sm:$0xff]
        %v3264 = vld [vmem:[%s283 + $0x1160] sm:$0xff]
        %v3265 = vld [vmem:[%s283 + $0x1168] sm:$0xff]
        %v3266 = vld [vmem:[%s283 + $0x1170] sm:$0xff]
        %v3267 = vld [vmem:[%s283 + $0x1178] sm:$0xff]
        %v3268 = vld [vmem:[%s283 + $0x1180] sm:$0xff]
        %v3269 = vld [vmem:[%s283 + $0x1188] sm:$0xff]
        %v3270 = vld [vmem:[%s283 + $0x1190] sm:$0xff]
        %v3271 = vld [vmem:[%s283 + $0x1198] sm:$0xff]
        %v3272 = vld [vmem:[%s283 + $0x11a0] sm:$0xff]
        %v3273 = vld [vmem:[%s283 + $0x11a8] sm:$0xff]
        %v3274 = vld [vmem:[%s283 + $0x11b0] sm:$0xff]
        %v3275 = vld [vmem:[%s283 + $0x11b8] sm:$0xff]
        %v3276 = vld [vmem:[%s283 + $0x11c0] sm:$0xff]
        %v3277 = vld [vmem:[%s283 + $0x11c8] sm:$0xff]
        %v3278 = vld [vmem:[%s283 + $0x11d0] sm:$0xff]
        %v3279 = vld [vmem:[%s283 + $0x11d8] sm:$0xff]
        %v3280 = vld [vmem:[%s283 + $0x11e0] sm:$0xff]
        %v3281 = vld [vmem:[%s283 + $0x11e8] sm:$0xff]
        %v3282 = vld [vmem:[%s283 + $0x11f0] sm:$0xff]
        %v3283 = vld [vmem:[%s283 + $0x11f8] sm:$0xff]
        %v3284 = vld [vmem:[%s283 + $0x1200] sm:$0xff]
        %v3285 = vld [vmem:[%s283 + $0x1208] sm:$0xff]
        %v3286 = vld [vmem:[%s283 + $0x1210] sm:$0xff]
        %v3287 = vld [vmem:[%s283 + $0x1218] sm:$0xff]
        %v3288 = vld [vmem:[%s283 + $0x1220] sm:$0xff]
        %v3289 = vld [vmem:[%s283 + $0x1228] sm:$0xff]
        %v3290 = vld [vmem:[%s283 + $0x1230] sm:$0xff]
        %v3291 = vld [vmem:[%s283 + $0x1238] sm:$0xff]
        %v3292 = vld [vmem:[%s283 + $0x1240] sm:$0xff]
        %v3293 = vld [vmem:[%s283 + $0x1248] sm:$0xff]
        %v3294 = vld [vmem:[%s283 + $0x1250] sm:$0xff]
        %v3295 = vld [vmem:[%s283 + $0x1258] sm:$0xff]
        %v3296 = vld [vmem:[%s283 + $0x1260] sm:$0xff]
        %v3297 = vld [vmem:[%s283 + $0x1268] sm:$0xff]
        %v3298 = vld [vmem:[%s283 + $0x1270] sm:$0xff]
        %v3299 = vld [vmem:[%s283 + $0x1278] sm:$0xff]
        %v3300 = vld [vmem:[%s283 + $0x1280] sm:$0xff]
        %v3301 = vld [vmem:[%s283 + $0x1288] sm:$0xff]
        %v3302 = vld [vmem:[%s283 + $0x1290] sm:$0xff]
        %v3303 = vld [vmem:[%s283 + $0x1298] sm:$0xff]
        %v3304 = vld [vmem:[%s283 + $0x12a0] sm:$0xff]
        %v3305 = vld [vmem:[%s283 + $0x12a8] sm:$0xff]
        %v3306 = vld [vmem:[%s283 + $0x12b0] sm:$0xff]
        %v3307 = vld [vmem:[%s283 + $0x12b8] sm:$0xff]
        %v3308 = vld [vmem:[%s283 + $0x12c0] sm:$0xff]
        %v3309 = vld [vmem:[%s283 + $0x12c8] sm:$0xff]
        %v3310 = vld [vmem:[%s283 + $0x12d0] sm:$0xff]
        %v3311 = vld [vmem:[%s283 + $0x12d8] sm:$0xff]
        %v3312 = vld [vmem:[%s283 + $0x12e0] sm:$0xff]
        %v3313 = vld [vmem:[%s283 + $0x12e8] sm:$0xff]
        %v3314 = vld [vmem:[%s283 + $0x12f0] sm:$0xff]
        %v3315 = vld [vmem:[%s283 + $0x12f8] sm:$0xff]
        %v3316 = vld [vmem:[%s283 + $0x1300] sm:$0xff]
        %v3317 = vld [vmem:[%s283 + $0x1308] sm:$0xff]
        %v3318 = vld [vmem:[%s283 + $0x1310] sm:$0xff]
        %v3319 = vld [vmem:[%s283 + $0x1318] sm:$0xff]
        %v3320 = vld [vmem:[%s283 + $0x1320] sm:$0xff]
        %v3321 = vld [vmem:[%s283 + $0x1328] sm:$0xff]
        %v3322 = vld [vmem:[%s283 + $0x1330] sm:$0xff]
        %v3323 = vld [vmem:[%s283 + $0x1338] sm:$0xff]
        %v3324 = vld [vmem:[%s283 + $0x1340] sm:$0xff]
        %v3325 = vld [vmem:[%s283 + $0x1348] sm:$0xff]
        %v3326 = vld [vmem:[%s283 + $0x1350] sm:$0xff]
        %v3327 = vld [vmem:[%s283 + $0x1358] sm:$0xff]
        %v3328 = vld [vmem:[%s283 + $0x1360] sm:$0xff]
        %v3329 = vld [vmem:[%s283 + $0x1368] sm:$0xff]
        %v3330 = vld [vmem:[%s283 + $0x1370] sm:$0xff]
        %v3331 = vld [vmem:[%s283 + $0x1378] sm:$0xff]
        %v3332 = vld [vmem:[%s283 + $0x1380] sm:$0xff]
        %v3333 = vld [vmem:[%s283 + $0x1388] sm:$0xff]
        %v3334 = vld [vmem:[%s283 + $0x1390] sm:$0xff]
        %v3335 = vld [vmem:[%s283 + $0x1398] sm:$0xff]
        %v3336 = vld [vmem:[%s283 + $0x13a0] sm:$0xff]
        %v3337 = vld [vmem:[%s283 + $0x13a8] sm:$0xff]
        %v3338 = vld [vmem:[%s283 + $0x13b0] sm:$0xff]
        %v3339 = vld [vmem:[%s283 + $0x13b8] sm:$0xff]
        %v3340 = vld [vmem:[%s283 + $0x13c0] sm:$0xff]
        %v3341 = vld [vmem:[%s283 + $0x13c8] sm:$0xff]
        %v3342 = vld [vmem:[%s283 + $0x13d0] sm:$0xff]
        %v3343 = vld [vmem:[%s283 + $0x13d8] sm:$0xff]
        %v3344 = vld [vmem:[%s283 + $0x13e0] sm:$0xff]
        %v3345 = vld [vmem:[%s283 + $0x13e8] sm:$0xff]
        %v3346 = vld [vmem:[%s283 + $0x13f0] sm:$0xff]
        %v3347 = vld [vmem:[%s283 + $0x13f8] sm:$0xff]
        %v3348 = vld [vmem:[%s283 + $0x1400] sm:$0xff]
        %v3349 = vld [vmem:[%s283 + $0x1408] sm:$0xff]
        %v3350 = vld [vmem:[%s283 + $0x1410] sm:$0xff]
        %v3351 = vld [vmem:[%s283 + $0x1418] sm:$0xff]
        %v3352 = vld [vmem:[%s283 + $0x1420] sm:$0xff]
        %v3353 = vld [vmem:[%s283 + $0x1428] sm:$0xff]
        %v3354 = vld [vmem:[%s283 + $0x1430] sm:$0xff]
        %v3355 = vld [vmem:[%s283 + $0x1438] sm:$0xff]
        %v3356 = vld [vmem:[%s283 + $0x1440] sm:$0xff]
        %v3357 = vld [vmem:[%s283 + $0x1448] sm:$0xff]
        %v3358 = vld [vmem:[%s283 + $0x1450] sm:$0xff]
        %v3359 = vld [vmem:[%s283 + $0x1458] sm:$0xff]
        %v3360 = vld [vmem:[%s283 + $0x1460] sm:$0xff]
        %v3361 = vld [vmem:[%s283 + $0x1468] sm:$0xff]
        %v3362 = vld [vmem:[%s283 + $0x1470] sm:$0xff]
        %v3363 = vld [vmem:[%s283 + $0x1478] sm:$0xff]
        %v3364 = vld [vmem:[%s283 + $0x1480] sm:$0xff]
        %v3365 = vld [vmem:[%s283 + $0x1488] sm:$0xff]
        %v3366 = vld [vmem:[%s283 + $0x1490] sm:$0xff]
        %v3367 = vld [vmem:[%s283 + $0x1498] sm:$0xff]
        %v3368 = vld [vmem:[%s283 + $0x14a0] sm:$0xff]
        %v3369 = vld [vmem:[%s283 + $0x14a8] sm:$0xff]
        %v3370 = vld [vmem:[%s283 + $0x14b0] sm:$0xff]
        %v3371 = vld [vmem:[%s283 + $0x14b8] sm:$0xff]
        %v3372 = vld [vmem:[%s283 + $0x14c0] sm:$0xff]
        %v3373 = vld [vmem:[%s283 + $0x14c8] sm:$0xff]
        %v3374 = vld [vmem:[%s283 + $0x14d0] sm:$0xff]
        %v3375 = vld [vmem:[%s283 + $0x14d8] sm:$0xff]
        %v3376 = vld [vmem:[%s283 + $0x14e0] sm:$0xff]
        %v3377 = vld [vmem:[%s283 + $0x14e8] sm:$0xff]
        %v3378 = vld [vmem:[%s283 + $0x14f0] sm:$0xff]
        %v3379 = vld [vmem:[%s283 + $0x14f8] sm:$0xff]
        %v3380 = vld [vmem:[%s283 + $0x1500] sm:$0xff]
        %v3381 = vld [vmem:[%s283 + $0x1508] sm:$0xff]
        %v3382 = vld [vmem:[%s283 + $0x1510] sm:$0xff]
        %v3383 = vld [vmem:[%s283 + $0x1518] sm:$0xff]
        %v3384 = vld [vmem:[%s283 + $0x1520] sm:$0xff]
        %v3385 = vld [vmem:[%s283 + $0x1528] sm:$0xff]
        %v3386 = vld [vmem:[%s283 + $0x1530] sm:$0xff]
        %v3387 = vld [vmem:[%s283 + $0x1538] sm:$0xff]
        %v3388 = vld [vmem:[%s283 + $0x1540] sm:$0xff]
        %v3389 = vld [vmem:[%s283 + $0x1548] sm:$0xff]
        %v3390 = vld [vmem:[%s283 + $0x1550] sm:$0xff]
        %v3391 = vld [vmem:[%s283 + $0x1558] sm:$0xff]
        %v3392 = vld [vmem:[%s283 + $0x1560] sm:$0xff]
        %v3393 = vld [vmem:[%s283 + $0x1568] sm:$0xff]
        %v3394 = vld [vmem:[%s283 + $0x1570] sm:$0xff]
        %v3395 = vld [vmem:[%s283 + $0x1578] sm:$0xff]
        %v3396 = vld [vmem:[%s283 + $0x1580] sm:$0xff]
        %v3397 = vld [vmem:[%s283 + $0x1588] sm:$0xff]
        %v3398 = vld [vmem:[%s283 + $0x1590] sm:$0xff]
        %v3399 = vld [vmem:[%s283 + $0x1598] sm:$0xff]
        %v3400 = vld [vmem:[%s283 + $0x15a0] sm:$0xff]
        %v3401 = vld [vmem:[%s283 + $0x15a8] sm:$0xff]
        %v3402 = vld [vmem:[%s283 + $0x15b0] sm:$0xff]
        %v3403 = vld [vmem:[%s283 + $0x15b8] sm:$0xff]
        %v3404 = vld [vmem:[%s283 + $0x15c0] sm:$0xff]
        %v3405 = vld [vmem:[%s283 + $0x15c8] sm:$0xff]
        %v3406 = vld [vmem:[%s283 + $0x15d0] sm:$0xff]
        %v3407 = vld [vmem:[%s283 + $0x15d8] sm:$0xff]
        %v3408 = vld [vmem:[%s283 + $0x15e0] sm:$0xff]
        %v3409 = vld [vmem:[%s283 + $0x15e8] sm:$0xff]
        %v3410 = vld [vmem:[%s283 + $0x15f0] sm:$0xff]
        %v3411 = vld [vmem:[%s283 + $0x15f8] sm:$0xff]
        %v3412 = vld [vmem:[%s283 + $0x1600] sm:$0xff]
        %v3413 = vld [vmem:[%s283 + $0x1608] sm:$0xff]
        %v3414 = vld [vmem:[%s283 + $0x1610] sm:$0xff]
        %v3415 = vld [vmem:[%s283 + $0x1618] sm:$0xff]
        %v3416 = vld [vmem:[%s283 + $0x1620] sm:$0xff]
        %v3417 = vld [vmem:[%s283 + $0x1628] sm:$0xff]
        %v3418 = vld [vmem:[%s283 + $0x1630] sm:$0xff]
        %v3419 = vld [vmem:[%s283 + $0x1638] sm:$0xff]
        %v3420 = vld [vmem:[%s283 + $0x1640] sm:$0xff]
        %v3421 = vld [vmem:[%s283 + $0x1648] sm:$0xff]
        %v3422 = vld [vmem:[%s283 + $0x1650] sm:$0xff]
        %v3423 = vld [vmem:[%s283 + $0x1658] sm:$0xff]
        %v3424 = vld [vmem:[%s283 + $0x1660] sm:$0xff]
        %v3425 = vld [vmem:[%s283 + $0x1668] sm:$0xff]
        %v3426 = vld [vmem:[%s283 + $0x1670] sm:$0xff]
        %v3427 = vld [vmem:[%s283 + $0x1678] sm:$0xff]
        %v3428 = vld [vmem:[%s283 + $0x1680] sm:$0xff]
        %v3429 = vld [vmem:[%s283 + $0x1688] sm:$0xff]
        %v3430 = vld [vmem:[%s283 + $0x1690] sm:$0xff]
        %v3431 = vld [vmem:[%s283 + $0x1698] sm:$0xff]
        %v3432 = vld [vmem:[%s283 + $0x16a0] sm:$0xff]
        %v3433 = vld [vmem:[%s283 + $0x16a8] sm:$0xff]
        %v3434 = vld [vmem:[%s283 + $0x16b0] sm:$0xff]
        %v3435 = vld [vmem:[%s283 + $0x16b8] sm:$0xff]
        %v3436 = vld [vmem:[%s283 + $0x16c0] sm:$0xff]
        %v3437 = vld [vmem:[%s283 + $0x16c8] sm:$0xff]
        %v3438 = vld [vmem:[%s283 + $0x16d0] sm:$0xff]
        %v3439 = vld [vmem:[%s283 + $0x16d8] sm:$0xff]
        %v3440 = vld [vmem:[%s283 + $0x16e0] sm:$0xff]
        %v3441 = vld [vmem:[%s283 + $0x16e8] sm:$0xff]
        %v3442 = vld [vmem:[%s283 + $0x16f0] sm:$0xff]
        %v3443 = vld [vmem:[%s283 + $0x16f8] sm:$0xff]
        %v3444 = vld [vmem:[%s283 + $0x1700] sm:$0xff]
        %v3445 = vld [vmem:[%s283 + $0x1708] sm:$0xff]
        %v3446 = vld [vmem:[%s283 + $0x1710] sm:$0xff]
        %v3447 = vld [vmem:[%s283 + $0x1718] sm:$0xff]
        %v3448 = vld [vmem:[%s283 + $0x1720] sm:$0xff]
        %v3449 = vld [vmem:[%s283 + $0x1728] sm:$0xff]
        %v3450 = vld [vmem:[%s283 + $0x1730] sm:$0xff]
        %v3451 = vld [vmem:[%s283 + $0x1738] sm:$0xff]
        %v3452 = vld [vmem:[%s283 + $0x1740] sm:$0xff]
        %v3453 = vld [vmem:[%s283 + $0x1748] sm:$0xff]
        %v3454 = vld [vmem:[%s283 + $0x1750] sm:$0xff]
        %v3455 = vld [vmem:[%s283 + $0x1758] sm:$0xff]
        %v3456 = vld [vmem:[%s283 + $0x1760] sm:$0xff]
        %v3457 = vld [vmem:[%s283 + $0x1768] sm:$0xff]
        %v3458 = vld [vmem:[%s283 + $0x1770] sm:$0xff]
        %v3459 = vld [vmem:[%s283 + $0x1778] sm:$0xff]
        %v3460 = vld [vmem:[%s283 + $0x1780] sm:$0xff]
        %v3461 = vld [vmem:[%s283 + $0x1788] sm:$0xff]
        %v3462 = vld [vmem:[%s283 + $0x1790] sm:$0xff]
        %v3463 = vld [vmem:[%s283 + $0x1798] sm:$0xff]
        %v3464 = vld [vmem:[%s283 + $0x17a0] sm:$0xff]
        %v3465 = vld [vmem:[%s283 + $0x17a8] sm:$0xff]
        %v3466 = vld [vmem:[%s283 + $0x17b0] sm:$0xff]
        %v3467 = vld [vmem:[%s283 + $0x17b8] sm:$0xff]
        %v3468 = vld [vmem:[%s283 + $0x17c0] sm:$0xff]
        %v3469 = vld [vmem:[%s283 + $0x17c8] sm:$0xff]
        %v3470 = vld [vmem:[%s283 + $0x17d0] sm:$0xff]
        %v3471 = vld [vmem:[%s283 + $0x17d8] sm:$0xff]
        %v3472 = vld [vmem:[%s283 + $0x17e0] sm:$0xff]
        %v3473 = vld [vmem:[%s283 + $0x17e8] sm:$0xff]
        %v3474 = vld [vmem:[%s283 + $0x17f0] sm:$0xff]
        %v3475 = vld [vmem:[%s283 + $0x17f8] sm:$0xff]
        %v3476 = vld [vmem:[%s283 + $0x1800] sm:$0xff]
        %v3477 = vld [vmem:[%s283 + $0x1808] sm:$0xff]
        %v3478 = vld [vmem:[%s283 + $0x1810] sm:$0xff]
        %v3479 = vld [vmem:[%s283 + $0x1818] sm:$0xff]
        %v3480 = vld [vmem:[%s283 + $0x1820] sm:$0xff]
        %v3481 = vld [vmem:[%s283 + $0x1828] sm:$0xff]
        %v3482 = vld [vmem:[%s283 + $0x1830] sm:$0xff]
        %v3483 = vld [vmem:[%s283 + $0x1838] sm:$0xff]
        %v3484 = vld [vmem:[%s283 + $0x1840] sm:$0xff]
        %v3485 = vld [vmem:[%s283 + $0x1848] sm:$0xff]
        %v3486 = vld [vmem:[%s283 + $0x1850] sm:$0xff]
        %v3487 = vld [vmem:[%s283 + $0x1858] sm:$0xff]
        %v3488 = vld [vmem:[%s283 + $0x1860] sm:$0xff]
        %v3489 = vld [vmem:[%s283 + $0x1868] sm:$0xff]
        %v3490 = vld [vmem:[%s283 + $0x1870] sm:$0xff]
        %v3491 = vld [vmem:[%s283 + $0x1878] sm:$0xff]
        %v3492 = vld [vmem:[%s283 + $0x1880] sm:$0xff]
        %v3493 = vld [vmem:[%s283 + $0x1888] sm:$0xff]
        %v3494 = vld [vmem:[%s283 + $0x1890] sm:$0xff]
        %v3495 = vld [vmem:[%s283 + $0x1898] sm:$0xff]
        %v3496 = vld [vmem:[%s283 + $0x18a0] sm:$0xff]
        %v3497 = vld [vmem:[%s283 + $0x18a8] sm:$0xff]
        %v3498 = vld [vmem:[%s283 + $0x18b0] sm:$0xff]
        %v3499 = vld [vmem:[%s283 + $0x18b8] sm:$0xff]
        %v3500 = vld [vmem:[%s283 + $0x18c0] sm:$0xff]
        %v3501 = vld [vmem:[%s283 + $0x18c8] sm:$0xff]
        %v3502 = vld [vmem:[%s283 + $0x18d0] sm:$0xff]
        %v3503 = vld [vmem:[%s283 + $0x18d8] sm:$0xff]
        %v3504 = vld [vmem:[%s283 + $0x18e0] sm:$0xff]
        %v3505 = vld [vmem:[%s283 + $0x18e8] sm:$0xff]
        %v3506 = vld [vmem:[%s283 + $0x18f0] sm:$0xff]
        %v3507 = vld [vmem:[%s283 + $0x18f8] sm:$0xff]
        %v3508 = vld [vmem:[%s283 + $0x1900] sm:$0xff]
        %v3509 = vld [vmem:[%s283 + $0x1908] sm:$0xff]
        %v3510 = vld [vmem:[%s283 + $0x1910] sm:$0xff]
        %v3511 = vld [vmem:[%s283 + $0x1918] sm:$0xff]
        %v3512 = vld [vmem:[%s283 + $0x1920] sm:$0xff]
        %v3513 = vld [vmem:[%s283 + $0x1928] sm:$0xff]
        %v3514 = vld [vmem:[%s283 + $0x1930] sm:$0xff]
        %v3515 = vld [vmem:[%s283 + $0x1938] sm:$0xff]
        %v3516 = vld [vmem:[%s283 + $0x1940] sm:$0xff]
        %v3517 = vld [vmem:[%s283 + $0x1948] sm:$0xff]
        %v3518 = vld [vmem:[%s283 + $0x1950] sm:$0xff]
        %v3519 = vld [vmem:[%s283 + $0x1958] sm:$0xff]
        %v3520 = vld [vmem:[%s283 + $0x1960] sm:$0xff]
        %v3521 = vld [vmem:[%s283 + $0x1968] sm:$0xff]
        %v3522 = vld [vmem:[%s283 + $0x1970] sm:$0xff]
        %v3523 = vld [vmem:[%s283 + $0x1978] sm:$0xff]
        %v3524 = vld [vmem:[%s283 + $0x1980] sm:$0xff]
        %v3525 = vld [vmem:[%s283 + $0x1988] sm:$0xff]
        %v3526 = vld [vmem:[%s283 + $0x1990] sm:$0xff]
        %v3527 = vld [vmem:[%s283 + $0x1998] sm:$0xff]
        %v3528 = vld [vmem:[%s283 + $0x19a0] sm:$0xff]
        %v3529 = vld [vmem:[%s283 + $0x19a8] sm:$0xff]
        %v3530 = vld [vmem:[%s283 + $0x19b0] sm:$0xff]
        %v3531 = vld [vmem:[%s283 + $0x19b8] sm:$0xff]
        %v3532 = vld [vmem:[%s283 + $0x19c0] sm:$0xff]
        %v3533 = vld [vmem:[%s283 + $0x19c8] sm:$0xff]
        %v3534 = vld [vmem:[%s283 + $0x19d0] sm:$0xff]
        %v3535 = vld [vmem:[%s283 + $0x19d8] sm:$0xff]
        %v3536 = vld [vmem:[%s283 + $0x19e0] sm:$0xff]
        %v3537 = vld [vmem:[%s283 + $0x19e8] sm:$0xff]
        %v3538 = vld [vmem:[%s283 + $0x19f0] sm:$0xff]
        %v3539 = vld [vmem:[%s283 + $0x19f8] sm:$0xff]
        %v3540 = vld [vmem:[%s283 + $0x1a00] sm:$0xff]
        %v3541 = vld [vmem:[%s283 + $0x1a08] sm:$0xff]
        %v3542 = vld [vmem:[%s283 + $0x1a10] sm:$0xff]
        %v3543 = vld [vmem:[%s283 + $0x1a18] sm:$0xff]
        %v3544 = vld [vmem:[%s283 + $0x1a20] sm:$0xff]
        %v3545 = vld [vmem:[%s283 + $0x1a28] sm:$0xff]
        %v3546 = vld [vmem:[%s283 + $0x1a30] sm:$0xff]
        %v3547 = vld [vmem:[%s283 + $0x1a38] sm:$0xff]
        %v3548 = vld [vmem:[%s283 + $0x1a40] sm:$0xff]
        %v3549 = vld [vmem:[%s283 + $0x1a48] sm:$0xff]
        %v3550 = vld [vmem:[%s283 + $0x1a50] sm:$0xff]
        %v3551 = vld [vmem:[%s283 + $0x1a58] sm:$0xff]
        %v3552 = vld [vmem:[%s283 + $0x1a60] sm:$0xff]
        %v3553 = vld [vmem:[%s283 + $0x1a68] sm:$0xff]
        %v3554 = vld [vmem:[%s283 + $0x1a70] sm:$0xff]
        %v3555 = vld [vmem:[%s283 + $0x1a78] sm:$0xff]
        %v3556 = vld [vmem:[%s283 + $0x1a80] sm:$0xff]
        %v3557 = vld [vmem:[%s283 + $0x1a88] sm:$0xff]
        %v3558 = vld [vmem:[%s283 + $0x1a90] sm:$0xff]
        %v3559 = vld [vmem:[%s283 + $0x1a98] sm:$0xff]
        %v3560 = vld [vmem:[%s283 + $0x1aa0] sm:$0xff]
        %v3561 = vld [vmem:[%s283 + $0x1aa8] sm:$0xff]
        %v3562 = vld [vmem:[%s283 + $0x1ab0] sm:$0xff]
        %v3563 = vld [vmem:[%s283 + $0x1ab8] sm:$0xff]
        %v3564 = vld [vmem:[%s283 + $0x1ac0] sm:$0xff]
        %v3565 = vld [vmem:[%s283 + $0x1ac8] sm:$0xff]
        %v3566 = vld [vmem:[%s283 + $0x1ad0] sm:$0xff]
        %v3567 = vld [vmem:[%s283 + $0x1ad8] sm:$0xff]
        %v3568 = vld [vmem:[%s283 + $0x1ae0] sm:$0xff]
        %v3569 = vld [vmem:[%s283 + $0x1ae8] sm:$0xff]
        %v3570 = vld [vmem:[%s283 + $0x1af0] sm:$0xff]
        %v3571 = vld [vmem:[%s283 + $0x1af8] sm:$0xff]
        %v3572 = vld [vmem:[%s283 + $0x1b00] sm:$0xff]
        %v3573 = vld [vmem:[%s283 + $0x1b08] sm:$0xff]
        %v3574 = vld [vmem:[%s283 + $0x1b10] sm:$0xff]
        %v3575 = vld [vmem:[%s283 + $0x1b18] sm:$0xff]
        %v3576 = vld [vmem:[%s283 + $0x1b20] sm:$0xff]
        %v3577 = vld [vmem:[%s283 + $0x1b28] sm:$0xff]
        %v3578 = vld [vmem:[%s283 + $0x1b30] sm:$0xff]
        %v3579 = vld [vmem:[%s283 + $0x1b38] sm:$0xff]
        %v3580 = vld [vmem:[%s283 + $0x1b40] sm:$0xff]
        %v3581 = vld [vmem:[%s283 + $0x1b48] sm:$0xff]
        %v3582 = vld [vmem:[%s283 + $0x1b50] sm:$0xff]
        %v3583 = vld [vmem:[%s283 + $0x1b58] sm:$0xff]
        %v3584 = vld [vmem:[%s283 + $0x1b60] sm:$0xff]
        %v3585 = vld [vmem:[%s283 + $0x1b68] sm:$0xff]
        %v3586 = vld [vmem:[%s283 + $0x1b70] sm:$0xff]
        %v3587 = vld [vmem:[%s283 + $0x1b78] sm:$0xff]
        %v3588 = vld [vmem:[%s283 + $0x1b80] sm:$0xff]
        %v3589 = vld [vmem:[%s283 + $0x1b88] sm:$0xff]
        %v3590 = vld [vmem:[%s283 + $0x1b90] sm:$0xff]
        %v3591 = vld [vmem:[%s283 + $0x1b98] sm:$0xff]
        %v3592 = vld [vmem:[%s283 + $0x1ba0] sm:$0xff]
        %v3593 = vld [vmem:[%s283 + $0x1ba8] sm:$0xff]
        %v3594 = vld [vmem:[%s283 + $0x1bb0] sm:$0xff]
        %v3595 = vld [vmem:[%s283 + $0x1bb8] sm:$0xff]
        %v3596 = vld [vmem:[%s283 + $0x1bc0] sm:$0xff]
        %v3597 = vld [vmem:[%s283 + $0x1bc8] sm:$0xff]
        %v3598 = vld [vmem:[%s283 + $0x1bd0] sm:$0xff]
        %v3599 = vld [vmem:[%s283 + $0x1bd8] sm:$0xff]
        %v3600 = vld [vmem:[%s283 + $0x1be0] sm:$0xff]
        %v3601 = vld [vmem:[%s283 + $0x1be8] sm:$0xff]
        %v3602 = vld [vmem:[%s283 + $0x1bf0] sm:$0xff]
        %v3603 = vld [vmem:[%s283 + $0x1bf8] sm:$0xff]
        %v3604 = vld [vmem:[%s283 + $0x1c00] sm:$0xff]
        %v3605 = vld [vmem:[%s283 + $0x1c08] sm:$0xff]
        %v3606 = vld [vmem:[%s283 + $0x1c10] sm:$0xff]
        %v3607 = vld [vmem:[%s283 + $0x1c18] sm:$0xff]
        %v3608 = vld [vmem:[%s283 + $0x1c20] sm:$0xff]
        %v3609 = vld [vmem:[%s283 + $0x1c28] sm:$0xff]
        %v3610 = vld [vmem:[%s283 + $0x1c30] sm:$0xff]
        %v3611 = vld [vmem:[%s283 + $0x1c38] sm:$0xff]
        %v3612 = vld [vmem:[%s283 + $0x1c40] sm:$0xff]
        %v3613 = vld [vmem:[%s283 + $0x1c48] sm:$0xff]
        %v3614 = vld [vmem:[%s283 + $0x1c50] sm:$0xff]
        %v3615 = vld [vmem:[%s283 + $0x1c58] sm:$0xff]
        %v3616 = vld [vmem:[%s283 + $0x1c60] sm:$0xff]
        %v3617 = vld [vmem:[%s283 + $0x1c68] sm:$0xff]
        %v3618 = vld [vmem:[%s283 + $0x1c70] sm:$0xff]
        %v3619 = vld [vmem:[%s283 + $0x1c78] sm:$0xff]
        %v3620 = vld [vmem:[%s283 + $0x1c80] sm:$0xff]
        %v3621 = vld [vmem:[%s283 + $0x1c88] sm:$0xff]
        %v3622 = vld [vmem:[%s283 + $0x1c90] sm:$0xff]
        %v3623 = vld [vmem:[%s283 + $0x1c98] sm:$0xff]
        %v3624 = vld [vmem:[%s283 + $0x1ca0] sm:$0xff]
        %v3625 = vld [vmem:[%s283 + $0x1ca8] sm:$0xff]
        %v3626 = vld [vmem:[%s283 + $0x1cb0] sm:$0xff]
        %v3627 = vld [vmem:[%s283 + $0x1cb8] sm:$0xff]
        %v3628 = vld [vmem:[%s283 + $0x1cc0] sm:$0xff]
        %v3629 = vld [vmem:[%s283 + $0x1cc8] sm:$0xff]
        %v3630 = vld [vmem:[%s283 + $0x1cd0] sm:$0xff]
        %v3631 = vld [vmem:[%s283 + $0x1cd8] sm:$0xff]
        %v3632 = vld [vmem:[%s283 + $0x1ce0] sm:$0xff]
        %v3633 = vld [vmem:[%s283 + $0x1ce8] sm:$0xff]
        %v3634 = vld [vmem:[%s283 + $0x1cf0] sm:$0xff]
        %v3635 = vld [vmem:[%s283 + $0x1cf8] sm:$0xff]
        %v3636 = vld [vmem:[%s283 + $0x1d00] sm:$0xff]
        %v3637 = vld [vmem:[%s283 + $0x1d08] sm:$0xff]
        %v3638 = vld [vmem:[%s283 + $0x1d10] sm:$0xff]
        %v3639 = vld [vmem:[%s283 + $0x1d18] sm:$0xff]
        %v3640 = vld [vmem:[%s283 + $0x1d20] sm:$0xff]
        %v3641 = vld [vmem:[%s283 + $0x1d28] sm:$0xff]
        %v3642 = vld [vmem:[%s283 + $0x1d30] sm:$0xff]
        %v3643 = vld [vmem:[%s283 + $0x1d38] sm:$0xff]
        %v3644 = vld [vmem:[%s283 + $0x1d40] sm:$0xff]
        %v3645 = vld [vmem:[%s283 + $0x1d48] sm:$0xff]
        %v3646 = vld [vmem:[%s283 + $0x1d50] sm:$0xff]
        %v3647 = vld [vmem:[%s283 + $0x1d58] sm:$0xff]
        %v3648 = vld [vmem:[%s283 + $0x1d60] sm:$0xff]
        %v3649 = vld [vmem:[%s283 + $0x1d68] sm:$0xff]
        %v3650 = vld [vmem:[%s283 + $0x1d70] sm:$0xff]
        %v3651 = vld [vmem:[%s283 + $0x1d78] sm:$0xff]
        %v3652 = vld [vmem:[%s283 + $0x1d80] sm:$0xff]
        %v3653 = vld [vmem:[%s283 + $0x1d88] sm:$0xff]
        %v3654 = vld [vmem:[%s283 + $0x1d90] sm:$0xff]
        %v3655 = vld [vmem:[%s283 + $0x1d98] sm:$0xff]
        %v3656 = vld [vmem:[%s283 + $0x1da0] sm:$0xff]
        %v3657 = vld [vmem:[%s283 + $0x1da8] sm:$0xff]
        %v3658 = vld [vmem:[%s283 + $0x1db0] sm:$0xff]
        %v3659 = vld [vmem:[%s283 + $0x1db8] sm:$0xff]
        %v3660 = vld [vmem:[%s283 + $0x1dc0] sm:$0xff]
        %v3661 = vld [vmem:[%s283 + $0x1dc8] sm:$0xff]
        %v3662 = vld [vmem:[%s283 + $0x1dd0] sm:$0xff]
        %v3663 = vld [vmem:[%s283 + $0x1dd8] sm:$0xff]
        %v3664 = vld [vmem:[%s283 + $0x1de0] sm:$0xff]
        %v3665 = vld [vmem:[%s283 + $0x1de8] sm:$0xff]
        %v3666 = vld [vmem:[%s283 + $0x1df0] sm:$0xff]
        %v3667 = vld [vmem:[%s283 + $0x1df8] sm:$0xff]
        %v3668 = vld [vmem:[%s283 + $0x1e00] sm:$0xff]
        %v3669 = vld [vmem:[%s283 + $0x1e08] sm:$0xff]
        %v3670 = vld [vmem:[%s283 + $0x1e10] sm:$0xff]
        %v3671 = vld [vmem:[%s283 + $0x1e18] sm:$0xff]
        %v3672 = vld [vmem:[%s283 + $0x1e20] sm:$0xff]
        %v3673 = vld [vmem:[%s283 + $0x1e28] sm:$0xff]
        %v3674 = vld [vmem:[%s283 + $0x1e30] sm:$0xff]
        %v3675 = vld [vmem:[%s283 + $0x1e38] sm:$0xff]
        %v3676 = vld [vmem:[%s283 + $0x1e40] sm:$0xff]
        %v3677 = vld [vmem:[%s283 + $0x1e48] sm:$0xff]
        %v3678 = vld [vmem:[%s283 + $0x1e50] sm:$0xff]
        %v3679 = vld [vmem:[%s283 + $0x1e58] sm:$0xff]
        %v3680 = vld [vmem:[%s283 + $0x1e60] sm:$0xff]
        %v3681 = vld [vmem:[%s283 + $0x1e68] sm:$0xff]
        %v3682 = vld [vmem:[%s283 + $0x1e70] sm:$0xff]
        %v3683 = vld [vmem:[%s283 + $0x1e78] sm:$0xff]
        %v3684 = vld [vmem:[%s283 + $0x1e80] sm:$0xff]
        %v3685 = vld [vmem:[%s283 + $0x1e88] sm:$0xff]
        %v3686 = vld [vmem:[%s283 + $0x1e90] sm:$0xff]
        %v3687 = vld [vmem:[%s283 + $0x1e98] sm:$0xff]
        %v3688 = vld [vmem:[%s283 + $0x1ea0] sm:$0xff]
        %v3689 = vld [vmem:[%s283 + $0x1ea8] sm:$0xff]
        %v3690 = vld [vmem:[%s283 + $0x1eb0] sm:$0xff]
        %v3691 = vld [vmem:[%s283 + $0x1eb8] sm:$0xff]
        %v3692 = vld [vmem:[%s283 + $0x1ec0] sm:$0xff]
        %v3693 = vld [vmem:[%s283 + $0x1ec8] sm:$0xff]
        %v3694 = vld [vmem:[%s283 + $0x1ed0] sm:$0xff]
        %v3695 = vld [vmem:[%s283 + $0x1ed8] sm:$0xff]
        %v3696 = vld [vmem:[%s283 + $0x1ee0] sm:$0xff]
        %v3697 = vld [vmem:[%s283 + $0x1ee8] sm:$0xff]
        %v3698 = vld [vmem:[%s283 + $0x1ef0] sm:$0xff]
        %v3699 = vld [vmem:[%s283 + $0x1ef8] sm:$0xff]
        %v3700 = vld [vmem:[%s283 + $0x1f00] sm:$0xff]
        %v3701 = vld [vmem:[%s283 + $0x1f08] sm:$0xff]
        %v3702 = vld [vmem:[%s283 + $0x1f10] sm:$0xff]
        %v3703 = vld [vmem:[%s283 + $0x1f18] sm:$0xff]
        %v3704 = vld [vmem:[%s283 + $0x1f20] sm:$0xff]
        %v3705 = vld [vmem:[%s283 + $0x1f28] sm:$0xff]
        %v3706 = vld [vmem:[%s283 + $0x1f30] sm:$0xff]
        %v3707 = vld [vmem:[%s283 + $0x1f38] sm:$0xff]
        %v3708 = vld [vmem:[%s283 + $0x1f40] sm:$0xff]
        %v3709 = vld [vmem:[%s283 + $0x1f48] sm:$0xff]
        %v3710 = vld [vmem:[%s283 + $0x1f50] sm:$0xff]
        %v3711 = vld [vmem:[%s283 + $0x1f58] sm:$0xff]
        %v3712 = vld [vmem:[%s283 + $0x1f60] sm:$0xff]
        %v3713 = vld [vmem:[%s283 + $0x1f68] sm:$0xff]
        %v3714 = vld [vmem:[%s283 + $0x1f70] sm:$0xff]
        %v3715 = vld [vmem:[%s283 + $0x1f78] sm:$0xff]
        %v3716 = vld [vmem:[%s283 + $0x1f80] sm:$0xff]
        %v3717 = vld [vmem:[%s283 + $0x1f88] sm:$0xff]
        %v3718 = vld [vmem:[%s283 + $0x1f90] sm:$0xff]
        %v3719 = vld [vmem:[%s283 + $0x1f98] sm:$0xff]
        %v3720 = vld [vmem:[%s283 + $0x1fa0] sm:$0xff]
        %v3721 = vld [vmem:[%s283 + $0x1fa8] sm:$0xff]
        %v3722 = vld [vmem:[%s283 + $0x1fb0] sm:$0xff]
        %v3723 = vld [vmem:[%s283 + $0x1fb8] sm:$0xff]
        %v3724 = vld [vmem:[%s283 + $0x1fc0] sm:$0xff]
        %v3725 = vld [vmem:[%s283 + $0x1fc8] sm:$0xff]
        %v3726 = vld [vmem:[%s283 + $0x1fd0] sm:$0xff]
        %v3727 = vld [vmem:[%s283 + $0x1fd8] sm:$0xff]
        %v3728 = vld [vmem:[%s283 + $0x1fe0] sm:$0xff]
        %v3729 = vld [vmem:[%s283 + $0x1fe8] sm:$0xff]
        %v3730 = vld [vmem:[%s283 + $0x1ff0] sm:$0xff]
        %v3731 = vld [vmem:[%s283 + $0x1ff8] sm:$0xff]
        %3732 = vmatprep.subr.mxu0 %v2709
        %3733 = vmatpush1.msra.mxu0 %v2708
        %3734 = vmatprep.subr.mxu0 %v2725
        %3735 = vmatpush1.msra.mxu0 %v2724
        %3736 = vmatprep.subr.mxu0 %v2741
        %3737 = vmatpush1.msra.mxu0 %v2740
        %3738 = vmatprep.subr.mxu0 %v2757
        %3739 = vmatpush1.msra.mxu0 %v2756
        %3740 = vmatprep.subr.mxu0 %v2773
        %3741 = vmatpush1.msra.mxu0 %v2772
        %3742 = vmatprep.subr.mxu0 %v2789
        %3743 = vmatpush1.msra.mxu0 %v2788
        %3744 = vmatprep.subr.mxu0 %v2805
        %3745 = vmatpush1.msra.mxu0 %v2804
        %3746 = vmatprep.subr.mxu0 %v2821
        %3747 = vmatpush1.msra.mxu0 %v2820
        %3748 = vmatprep.subr.mxu0 %v2837
        %3749 = vmatpush1.msra.mxu0 %v2836
        %3750 = vmatprep.subr.mxu0 %v2853
        %3751 = vmatpush1.msra.mxu0 %v2852
        %3752 = vmatprep.subr.mxu0 %v2869
        %3753 = vmatpush1.msra.mxu0 %v2868
        %3754 = vmatprep.subr.mxu0 %v2885
        %3755 = vmatpush1.msra.mxu0 %v2884
        %3756 = vmatprep.subr.mxu0 %v2901
        %3757 = vmatpush1.msra.mxu0 %v2900
        %3758 = vmatprep.subr.mxu0 %v2917
        %3759 = vmatpush1.msra.mxu0 %v2916
        %3760 = vmatprep.subr.mxu0 %v2933
        %3761 = vmatpush1.msra.mxu0 %v2932
        %3762 = vmatprep.subr.mxu0 %v2949
        %3763 = vmatpush1.msra.mxu0 %v2948
        %3764 = vmatprep.subr.mxu0 %v2965
        %3765 = vmatpush1.msra.mxu0 %v2964
        %3766 = vmatprep.subr.mxu0 %v2981
        %3767 = vmatpush1.msra.mxu0 %v2980
        %3768 = vmatprep.subr.mxu0 %v2997
        %3769 = vmatpush1.msra.mxu0 %v2996
        %3770 = vmatprep.subr.mxu0 %v3013
        %3771 = vmatpush1.msra.mxu0 %v3012
        %3772 = vmatprep.subr.mxu0 %v3029
        %3773 = vmatpush1.msra.mxu0 %v3028
        %3774 = vmatprep.subr.mxu0 %v3045
        %3775 = vmatpush1.msra.mxu0 %v3044
        %3776 = vmatprep.subr.mxu0 %v3061
        %3777 = vmatpush1.msra.mxu0 %v3060
        %3778 = vmatprep.subr.mxu0 %v3077
        %3779 = vmatpush1.msra.mxu0 %v3076
        %3780 = vmatprep.subr.mxu0 %v3093
        %3781 = vmatpush1.msra.mxu0 %v3092
        %3782 = vmatprep.subr.mxu0 %v3109
        %3783 = vmatpush1.msra.mxu0 %v3108
        %3784 = vmatprep.subr.mxu0 %v3125
        %3785 = vmatpush1.msra.mxu0 %v3124
        %3786 = vmatprep.subr.mxu0 %v3141
        %3787 = vmatpush1.msra.mxu0 %v3140
        %3788 = vmatprep.subr.mxu0 %v3157
        %3789 = vmatpush1.msra.mxu0 %v3156
        %3790 = vmatprep.subr.mxu0 %v3173
        %3791 = vmatpush1.msra.mxu0 %v3172
        %3792 = vmatprep.subr.mxu0 %v3189
        %3793 = vmatpush1.msra.mxu0 %v3188
        %3794 = vmatprep.subr.mxu0 %v3205
        %3795 = vmatpush1.msra.mxu0 %v3204
        %3796 = vmatprep.mubr.f32.mxu0 %v2689
        %3797 = vmatmul.mubr.f32.gmra.mrb[0].mxu0 %v2688
        %v3798 = vpop.f32.mrb[0].mxu0
        %v3799 = vadd.f32 0.0, %v3798
        %v3800 = vpop.f32.mrb[0].mxu0
        %v3801 = vadd.f32 0.0, %v3800
        %3802 = vdwg.mxu0
        %3803 = vmatprep.subr.mxu0 %v3221
        %3804 = vmatpush1.msra.mxu0 %v3220
        %3805 = vmatprep.subr.mxu0 %v3237
        %3806 = vmatpush1.msra.mxu0 %v3236
        %3807 = vmatprep.subr.mxu0 %v3253
        %3808 = vmatpush1.msra.mxu0 %v3252
        %3809 = vmatprep.subr.mxu0 %v3269
        %3810 = vmatpush1.msra.mxu0 %v3268
        %3811 = vmatprep.subr.mxu0 %v3285
        %3812 = vmatpush1.msra.mxu0 %v3284
        %3813 = vmatprep.subr.mxu0 %v3301
        %3814 = vmatpush1.msra.mxu0 %v3300
        %3815 = vmatprep.subr.mxu0 %v3317
        %3816 = vmatpush1.msra.mxu0 %v3316
        %3817 = vmatprep.subr.mxu0 %v3333
        %3818 = vmatpush1.msra.mxu0 %v3332
        %3819 = vmatprep.subr.mxu0 %v3349
        %3820 = vmatpush1.msra.mxu0 %v3348
        %3821 = vmatprep.subr.mxu0 %v3365
        %3822 = vmatpush1.msra.mxu0 %v3364
        %3823 = vmatprep.subr.mxu0 %v3381
        %3824 = vmatpush1.msra.mxu0 %v3380
        %3825 = vmatprep.subr.mxu0 %v3397
        %3826 = vmatpush1.msra.mxu0 %v3396
        %3827 = vmatprep.subr.mxu0 %v3413
        %3828 = vmatpush1.msra.mxu0 %v3412
        %3829 = vmatprep.subr.mxu0 %v3429
        %3830 = vmatpush1.msra.mxu0 %v3428
        %3831 = vmatprep.subr.mxu0 %v3445
        %3832 = vmatpush1.msra.mxu0 %v3444
        %3833 = vmatprep.subr.mxu0 %v3461
        %3834 = vmatpush1.msra.mxu0 %v3460
        %3835 = vmatprep.subr.mxu0 %v3477
        %3836 = vmatpush1.msra.mxu0 %v3476
        %3837 = vmatprep.subr.mxu0 %v3493
        %3838 = vmatpush1.msra.mxu0 %v3492
        %3839 = vmatprep.subr.mxu0 %v3509
        %3840 = vmatpush1.msra.mxu0 %v3508
        %3841 = vmatprep.subr.mxu0 %v3525
        %3842 = vmatpush1.msra.mxu0 %v3524
        %3843 = vmatprep.subr.mxu0 %v3541
        %3844 = vmatpush1.msra.mxu0 %v3540
        %3845 = vmatprep.subr.mxu0 %v3557
        %3846 = vmatpush1.msra.mxu0 %v3556
        %3847 = vmatprep.subr.mxu0 %v3573
        %3848 = vmatpush1.msra.mxu0 %v3572
        %3849 = vmatprep.subr.mxu0 %v3589
        %3850 = vmatpush1.msra.mxu0 %v3588
        %3851 = vmatprep.subr.mxu0 %v3605
        %3852 = vmatpush1.msra.mxu0 %v3604
        %3853 = vmatprep.subr.mxu0 %v3621
        %3854 = vmatpush1.msra.mxu0 %v3620
        %3855 = vmatprep.subr.mxu0 %v3637
        %3856 = vmatpush1.msra.mxu0 %v3636
        %3857 = vmatprep.subr.mxu0 %v3653
        %3858 = vmatpush1.msra.mxu0 %v3652
        %3859 = vmatprep.subr.mxu0 %v3669
        %3860 = vmatpush1.msra.mxu0 %v3668
        %3861 = vmatprep.subr.mxu0 %v3685
        %3862 = vmatpush1.msra.mxu0 %v3684
        %3863 = vmatprep.subr.mxu0 %v3701
        %3864 = vmatpush1.msra.mxu0 %v3700
        %3865 = vmatprep.subr.mxu0 %v3717
        %3866 = vmatpush1.msra.mxu0 %v3716
        %3867 = vmatprep.mubr.f32.mxu0 %v2691
        %3868 = vmatmul.mubr.f32.gmra.mrb[0].mxu0 %v2690
        %v3869 = vpop.f32.mrb[0].mxu0
        %v3870 = vadd.f32 %v3799, %v3869
        %v3871 = vpop.f32.mrb[0].mxu0
        %v3872 = vadd.f32 %v3801, %v3871
        %3873 = vdwg.mxu0
        %3874 = vmatprep.subr.mxu0 %v2711
        %3875 = vmatpush1.msra.mxu0 %v2710
        %3876 = vmatprep.subr.mxu0 %v2727
        %3877 = vmatpush1.msra.mxu0 %v2726
        %3878 = vmatprep.subr.mxu0 %v2743
        %3879 = vmatpush1.msra.mxu0 %v2742
        %3880 = vmatprep.subr.mxu0 %v2759
        %3881 = vmatpush1.msra.mxu0 %v2758
        %3882 = vmatprep.subr.mxu0 %v2775
        %3883 = vmatpush1.msra.mxu0 %v2774
        %3884 = vmatprep.subr.mxu0 %v2791
        %3885 = vmatpush1.msra.mxu0 %v2790
        %3886 = vmatprep.subr.mxu0 %v2807
        %3887 = vmatpush1.msra.mxu0 %v2806
        %3888 = vmatprep.subr.mxu0 %v2823
        %3889 = vmatpush1.msra.mxu0 %v2822
        %3890 = vmatprep.subr.mxu0 %v2839
        %3891 = vmatpush1.msra.mxu0 %v2838
        %3892 = vmatprep.subr.mxu0 %v2855
        %3893 = vmatpush1.msra.mxu0 %v2854
        %3894 = vmatprep.subr.mxu0 %v2871
        %3895 = vmatpush1.msra.mxu0 %v2870
        %3896 = vmatprep.subr.mxu0 %v2887
        %3897 = vmatpush1.msra.mxu0 %v2886
        %3898 = vmatprep.subr.mxu0 %v2903
        %3899 = vmatpush1.msra.mxu0 %v2902
        %3900 = vmatprep.subr.mxu0 %v2919
        %3901 = vmatpush1.msra.mxu0 %v2918
        %3902 = vmatprep.subr.mxu0 %v2935
        %3903 = vmatpush1.msra.mxu0 %v2934
        %3904 = vmatprep.subr.mxu0 %v2951
        %3905 = vmatpush1.msra.mxu0 %v2950
        %3906 = vmatprep.subr.mxu0 %v2967
        %3907 = vmatpush1.msra.mxu0 %v2966
        %3908 = vmatprep.subr.mxu0 %v2983
        %3909 = vmatpush1.msra.mxu0 %v2982
        %3910 = vmatprep.subr.mxu0 %v2999
        %3911 = vmatpush1.msra.mxu0 %v2998
        %3912 = vmatprep.subr.mxu0 %v3015
        %3913 = vmatpush1.msra.mxu0 %v3014
        %3914 = vmatprep.subr.mxu0 %v3031
        %3915 = vmatpush1.msra.mxu0 %v3030
        %3916 = vmatprep.subr.mxu0 %v3047
        %3917 = vmatpush1.msra.mxu0 %v3046
        %3918 = vmatprep.subr.mxu0 %v3063
        %3919 = vmatpush1.msra.mxu0 %v3062
        %3920 = vmatprep.subr.mxu0 %v3079
        %3921 = vmatpush1.msra.mxu0 %v3078
        %3922 = vmatprep.subr.mxu0 %v3095
        %3923 = vmatpush1.msra.mxu0 %v3094
        %3924 = vmatprep.subr.mxu0 %v3111
        %3925 = vmatpush1.msra.mxu0 %v3110
        %3926 = vmatprep.subr.mxu0 %v3127
        %3927 = vmatpush1.msra.mxu0 %v3126
        %3928 = vmatprep.subr.mxu0 %v3143
        %3929 = vmatpush1.msra.mxu0 %v3142
        %3930 = vmatprep.subr.mxu0 %v3159
        %3931 = vmatpush1.msra.mxu0 %v3158
        %3932 = vmatprep.subr.mxu0 %v3175
        %3933 = vmatpush1.msra.mxu0 %v3174
        %3934 = vmatprep.subr.mxu0 %v3191
        %3935 = vmatpush1.msra.mxu0 %v3190
        %3936 = vmatprep.subr.mxu0 %v3207
        %3937 = vmatpush1.msra.mxu0 %v3206
        %3938 = vmatprep.mubr.f32.mxu0 %v2689
        %3939 = vmatmul.mubr.f32.gmra.mrb[0].mxu0 %v2688
        %v3940 = vpop.f32.mrb[0].mxu0
        %v3941 = vadd.f32 0.0, %v3940
        %v3942 = vpop.f32.mrb[0].mxu0
        %v3943 = vadd.f32 0.0, %v3942
        %3944 = vdwg.mxu0
        %3945 = vmatprep.subr.mxu0 %v3223
        %3946 = vmatpush1.msra.mxu0 %v3222
        %3947 = vmatprep.subr.mxu0 %v3239
        %3948 = vmatpush1.msra.mxu0 %v3238
        %3949 = vmatprep.subr.mxu0 %v3255
        %3950 = vmatpush1.msra.mxu0 %v3254
        %3951 = vmatprep.subr.mxu0 %v3271
        %3952 = vmatpush1.msra.mxu0 %v3270
        %3953 = vmatprep.subr.mxu0 %v3287
        %3954 = vmatpush1.msra.mxu0 %v3286
        %3955 = vmatprep.subr.mxu0 %v3303
        %3956 = vmatpush1.msra.mxu0 %v3302
        %3957 = vmatprep.subr.mxu0 %v3319
        %3958 = vmatpush1.msra.mxu0 %v3318
        %3959 = vmatprep.subr.mxu0 %v3335
        %3960 = vmatpush1.msra.mxu0 %v3334
        %3961 = vmatprep.subr.mxu0 %v3351
        %3962 = vmatpush1.msra.mxu0 %v3350
        %3963 = vmatprep.subr.mxu0 %v3367
        %3964 = vmatpush1.msra.mxu0 %v3366
        %3965 = vmatprep.subr.mxu0 %v3383
        %3966 = vmatpush1.msra.mxu0 %v3382
        %3967 = vmatprep.subr.mxu0 %v3399
        %3968 = vmatpush1.msra.mxu0 %v3398
        %3969 = vmatprep.subr.mxu0 %v3415
        %3970 = vmatpush1.msra.mxu0 %v3414
        %3971 = vmatprep.subr.mxu0 %v3431
        %3972 = vmatpush1.msra.mxu0 %v3430
        %3973 = vmatprep.subr.mxu0 %v3447
        %3974 = vmatpush1.msra.mxu0 %v3446
        %3975 = vmatprep.subr.mxu0 %v3463
        %3976 = vmatpush1.msra.mxu0 %v3462
        %3977 = vmatprep.subr.mxu0 %v3479
        %3978 = vmatpush1.msra.mxu0 %v3478
        %3979 = vmatprep.subr.mxu0 %v3495
        %3980 = vmatpush1.msra.mxu0 %v3494
        %3981 = vmatprep.subr.mxu0 %v3511
        %3982 = vmatpush1.msra.mxu0 %v3510
        %3983 = vmatprep.subr.mxu0 %v3527
        %3984 = vmatpush1.msra.mxu0 %v3526
        %3985 = vmatprep.subr.mxu0 %v3543
        %3986 = vmatpush1.msra.mxu0 %v3542
        %3987 = vmatprep.subr.mxu0 %v3559
        %3988 = vmatpush1.msra.mxu0 %v3558
        %3989 = vmatprep.subr.mxu0 %v3575
        %3990 = vmatpush1.msra.mxu0 %v3574
        %3991 = vmatprep.subr.mxu0 %v3591
        %3992 = vmatpush1.msra.mxu0 %v3590
        %3993 = vmatprep.subr.mxu0 %v3607
        %3994 = vmatpush1.msra.mxu0 %v3606
        %3995 = vmatprep.subr.mxu0 %v3623
        %3996 = vmatpush1.msra.mxu0 %v3622
        %3997 = vmatprep.subr.mxu0 %v3639
        %3998 = vmatpush1.msra.mxu0 %v3638
        %3999 = vmatprep.subr.mxu0 %v3655
        %4000 = vmatpush1.msra.mxu0 %v3654
        %4001 = vmatprep.subr.mxu0 %v3671
        %4002 = vmatpush1.msra.mxu0 %v3670
        %4003 = vmatprep.subr.mxu0 %v3687
        %4004 = vmatpush1.msra.mxu0 %v3686
        %4005 = vmatprep.subr.mxu0 %v3703
        %4006 = vmatpush1.msra.mxu0 %v3702
        %4007 = vmatprep.subr.mxu0 %v3719
        %4008 = vmatpush1.msra.mxu0 %v3718
        %4009 = vmatprep.mubr.f32.mxu0 %v2691
        %4010 = vmatmul.mubr.f32.gmra.mrb[0].mxu0 %v2690
        %v4011 = vpop.f32.mrb[0].mxu0
        %v4012 = vadd.f32 %v3941, %v4011
        %v4013 = vpop.f32.mrb[0].mxu0
        %v4014 = vadd.f32 %v3943, %v4013
        %4015 = vdwg.mxu0
        %4016 = vmatprep.subr.mxu0 %v2713
        %4017 = vmatpush1.msra.mxu0 %v2712
        %4018 = vmatprep.subr.mxu0 %v2729
        %4019 = vmatpush1.msra.mxu0 %v2728
        %4020 = vmatprep.subr.mxu0 %v2745
        %4021 = vmatpush1.msra.mxu0 %v2744
        %4022 = vmatprep.subr.mxu0 %v2761
        %4023 = vmatpush1.msra.mxu0 %v2760
        %4024 = vmatprep.subr.mxu0 %v2777
        %4025 = vmatpush1.msra.mxu0 %v2776
        %4026 = vmatprep.subr.mxu0 %v2793
        %4027 = vmatpush1.msra.mxu0 %v2792
        %4028 = vmatprep.subr.mxu0 %v2809
        %4029 = vmatpush1.msra.mxu0 %v2808
        %4030 = vmatprep.subr.mxu0 %v2825
        %4031 = vmatpush1.msra.mxu0 %v2824
        %4032 = vmatprep.subr.mxu0 %v2841
        %4033 = vmatpush1.msra.mxu0 %v2840
        %4034 = vmatprep.subr.mxu0 %v2857
        %4035 = vmatpush1.msra.mxu0 %v2856
        %4036 = vmatprep.subr.mxu0 %v2873
        %4037 = vmatpush1.msra.mxu0 %v2872
        %4038 = vmatprep.subr.mxu0 %v2889
        %4039 = vmatpush1.msra.mxu0 %v2888
        %4040 = vmatprep.subr.mxu0 %v2905
        %4041 = vmatpush1.msra.mxu0 %v2904
        %4042 = vmatprep.subr.mxu0 %v2921
        %4043 = vmatpush1.msra.mxu0 %v2920
        %4044 = vmatprep.subr.mxu0 %v2937
        %4045 = vmatpush1.msra.mxu0 %v2936
        %4046 = vmatprep.subr.mxu0 %v2953
        %4047 = vmatpush1.msra.mxu0 %v2952
        %4048 = vmatprep.subr.mxu0 %v2969
        %4049 = vmatpush1.msra.mxu0 %v2968
        %4050 = vmatprep.subr.mxu0 %v2985
        %4051 = vmatpush1.msra.mxu0 %v2984
        %4052 = vmatprep.subr.mxu0 %v3001
        %4053 = vmatpush1.msra.mxu0 %v3000
        %4054 = vmatprep.subr.mxu0 %v3017
        %4055 = vmatpush1.msra.mxu0 %v3016
        %4056 = vmatprep.subr.mxu0 %v3033
        %4057 = vmatpush1.msra.mxu0 %v3032
        %4058 = vmatprep.subr.mxu0 %v3049
        %4059 = vmatpush1.msra.mxu0 %v3048
        %4060 = vmatprep.subr.mxu0 %v3065
        %4061 = vmatpush1.msra.mxu0 %v3064
        %4062 = vmatprep.subr.mxu0 %v3081
        %4063 = vmatpush1.msra.mxu0 %v3080
        %4064 = vmatprep.subr.mxu0 %v3097
        %4065 = vmatpush1.msra.mxu0 %v3096
        %4066 = vmatprep.subr.mxu0 %v3113
        %4067 = vmatpush1.msra.mxu0 %v3112
        %4068 = vmatprep.subr.mxu0 %v3129
        %4069 = vmatpush1.msra.mxu0 %v3128
        %4070 = vmatprep.subr.mxu0 %v3145
        %4071 = vmatpush1.msra.mxu0 %v3144
        %4072 = vmatprep.subr.mxu0 %v3161
        %4073 = vmatpush1.msra.mxu0 %v3160
        %4074 = vmatprep.subr.mxu0 %v3177
        %4075 = vmatpush1.msra.mxu0 %v3176
        %4076 = vmatprep.subr.mxu0 %v3193
        %4077 = vmatpush1.msra.mxu0 %v3192
        %4078 = vmatprep.subr.mxu0 %v3209
        %4079 = vmatpush1.msra.mxu0 %v3208
        %4080 = vmatprep.mubr.f32.mxu0 %v2689
        %4081 = vmatmul.mubr.f32.gmra.mrb[0].mxu0 %v2688
        %v4082 = vpop.f32.mrb[0].mxu0
        %v4083 = vadd.f32 0.0, %v4082
        %v4084 = vpop.f32.mrb[0].mxu0
        %v4085 = vadd.f32 0.0, %v4084
        %4086 = vdwg.mxu0
        %4087 = vmatprep.subr.mxu0 %v3225
        %4088 = vmatpush1.msra.mxu0 %v3224
        %4089 = vmatprep.subr.mxu0 %v3241
        %4090 = vmatpush1.msra.mxu0 %v3240
        %4091 = vmatprep.subr.mxu0 %v3257
        %4092 = vmatpush1.msra.mxu0 %v3256
        %4093 = vmatprep.subr.mxu0 %v3273
        %4094 = vmatpush1.msra.mxu0 %v3272
        %4095 = vmatprep.subr.mxu0 %v3289
        %4096 = vmatpush1.msra.mxu0 %v3288
        %4097 = vmatprep.subr.mxu0 %v3305
        %4098 = vmatpush1.msra.mxu0 %v3304
        %4099 = vmatprep.subr.mxu0 %v3321
        %4100 = vmatpush1.msra.mxu0 %v3320
        %4101 = vmatprep.subr.mxu0 %v3337
        %4102 = vmatpush1.msra.mxu0 %v3336
        %4103 = vmatprep.subr.mxu0 %v3353
        %4104 = vmatpush1.msra.mxu0 %v3352
        %4105 = vmatprep.subr.mxu0 %v3369
        %4106 = vmatpush1.msra.mxu0 %v3368
        %4107 = vmatprep.subr.mxu0 %v3385
        %4108 = vmatpush1.msra.mxu0 %v3384
        %4109 = vmatprep.subr.mxu0 %v3401
        %4110 = vmatpush1.msra.mxu0 %v3400
        %4111 = vmatprep.subr.mxu0 %v3417
        %4112 = vmatpush1.msra.mxu0 %v3416
        %4113 = vmatprep.subr.mxu0 %v3433
        %4114 = vmatpush1.msra.mxu0 %v3432
        %4115 = vmatprep.subr.mxu0 %v3449
        %4116 = vmatpush1.msra.mxu0 %v3448
        %4117 = vmatprep.subr.mxu0 %v3465
        %4118 = vmatpush1.msra.mxu0 %v3464
        %4119 = vmatprep.subr.mxu0 %v3481
        %4120 = vmatpush1.msra.mxu0 %v3480
        %4121 = vmatprep.subr.mxu0 %v3497
        %4122 = vmatpush1.msra.mxu0 %v3496
        %4123 = vmatprep.subr.mxu0 %v3513
        %4124 = vmatpush1.msra.mxu0 %v3512
        %4125 = vmatprep.subr.mxu0 %v3529
        %4126 = vmatpush1.msra.mxu0 %v3528
        %4127 = vmatprep.subr.mxu0 %v3545
        %4128 = vmatpush1.msra.mxu0 %v3544
        %4129 = vmatprep.subr.mxu0 %v3561
        %4130 = vmatpush1.msra.mxu0 %v3560
        %4131 = vmatprep.subr.mxu0 %v3577
        %4132 = vmatpush1.msra.mxu0 %v3576
        %4133 = vmatprep.subr.mxu0 %v3593
        %4134 = vmatpush1.msra.mxu0 %v3592
        %4135 = vmatprep.subr.mxu0 %v3609
        %4136 = vmatpush1.msra.mxu0 %v3608
        %4137 = vmatprep.subr.mxu0 %v3625
        %4138 = vmatpush1.msra.mxu0 %v3624
        %4139 = vmatprep.subr.mxu0 %v3641
        %4140 = vmatpush1.msra.mxu0 %v3640
        %4141 = vmatprep.subr.mxu0 %v3657
        %4142 = vmatpush1.msra.mxu0 %v3656
        %4143 = vmatprep.subr.mxu0 %v3673
        %4144 = vmatpush1.msra.mxu0 %v3672
        %4145 = vmatprep.subr.mxu0 %v3689
        %4146 = vmatpush1.msra.mxu0 %v3688
        %4147 = vmatprep.subr.mxu0 %v3705
        %4148 = vmatpush1.msra.mxu0 %v3704
        %4149 = vmatprep.subr.mxu0 %v3721
        %4150 = vmatpush1.msra.mxu0 %v3720
        %4151 = vmatprep.mubr.f32.mxu0 %v2691
        %4152 = vmatmul.mubr.f32.gmra.mrb[0].mxu0 %v2690
        %v4153 = vpop.f32.mrb[0].mxu0
        %v4154 = vadd.f32 %v4083, %v4153
        %v4155 = vpop.f32.mrb[0].mxu0
        %v4156 = vadd.f32 %v4085, %v4155
        %4157 = vdwg.mxu0
        %4158 = vmatprep.subr.mxu0 %v2715
        %4159 = vmatpush1.msra.mxu0 %v2714
        %4160 = vmatprep.subr.mxu0 %v2731
        %4161 = vmatpush1.msra.mxu0 %v2730
        %4162 = vmatprep.subr.mxu0 %v2747
        %4163 = vmatpush1.msra.mxu0 %v2746
        %4164 = vmatprep.subr.mxu0 %v2763
        %4165 = vmatpush1.msra.mxu0 %v2762
        %4166 = vmatprep.subr.mxu0 %v2779
        %4167 = vmatpush1.msra.mxu0 %v2778
        %4168 = vmatprep.subr.mxu0 %v2795
        %4169 = vmatpush1.msra.mxu0 %v2794
        %4170 = vmatprep.subr.mxu0 %v2811
        %4171 = vmatpush1.msra.mxu0 %v2810
        %4172 = vmatprep.subr.mxu0 %v2827
        %4173 = vmatpush1.msra.mxu0 %v2826
        %4174 = vmatprep.subr.mxu0 %v2843
        %4175 = vmatpush1.msra.mxu0 %v2842
        %4176 = vmatprep.subr.mxu0 %v2859
        %4177 = vmatpush1.msra.mxu0 %v2858
        %4178 = vmatprep.subr.mxu0 %v2875
        %4179 = vmatpush1.msra.mxu0 %v2874
        %4180 = vmatprep.subr.mxu0 %v2891
        %4181 = vmatpush1.msra.mxu0 %v2890
        %4182 = vmatprep.subr.mxu0 %v2907
        %4183 = vmatpush1.msra.mxu0 %v2906
        %4184 = vmatprep.subr.mxu0 %v2923
        %4185 = vmatpush1.msra.mxu0 %v2922
        %4186 = vmatprep.subr.mxu0 %v2939
        %4187 = vmatpush1.msra.mxu0 %v2938
        %4188 = vmatprep.subr.mxu0 %v2955
        %4189 = vmatpush1.msra.mxu0 %v2954
        %4190 = vmatprep.subr.mxu0 %v2971
        %4191 = vmatpush1.msra.mxu0 %v2970
        %4192 = vmatprep.subr.mxu0 %v2987
        %4193 = vmatpush1.msra.mxu0 %v2986
        %4194 = vmatprep.subr.mxu0 %v3003
        %4195 = vmatpush1.msra.mxu0 %v3002
        %4196 = vmatprep.subr.mxu0 %v3019
        %4197 = vmatpush1.msra.mxu0 %v3018
        %4198 = vmatprep.subr.mxu0 %v3035
        %4199 = vmatpush1.msra.mxu0 %v3034
        %4200 = vmatprep.subr.mxu0 %v3051
        %4201 = vmatpush1.msra.mxu0 %v3050
        %4202 = vmatprep.subr.mxu0 %v3067
        %4203 = vmatpush1.msra.mxu0 %v3066
        %4204 = vmatprep.subr.mxu0 %v3083
        %4205 = vmatpush1.msra.mxu0 %v3082
        %4206 = vmatprep.subr.mxu0 %v3099
        %4207 = vmatpush1.msra.mxu0 %v3098
        %4208 = vmatprep.subr.mxu0 %v3115
        %4209 = vmatpush1.msra.mxu0 %v3114
        %4210 = vmatprep.subr.mxu0 %v3131
        %4211 = vmatpush1.msra.mxu0 %v3130
        %4212 = vmatprep.subr.mxu0 %v3147
        %4213 = vmatpush1.msra.mxu0 %v3146
        %4214 = vmatprep.subr.mxu0 %v3163
        %4215 = vmatpush1.msra.mxu0 %v3162
        %4216 = vmatprep.subr.mxu0 %v3179
        %4217 = vmatpush1.msra.mxu0 %v3178
        %4218 = vmatprep.subr.mxu0 %v3195
        %4219 = vmatpush1.msra.mxu0 %v3194
        %4220 = vmatprep.subr.mxu0 %v3211
        %4221 = vmatpush1.msra.mxu0 %v3210
        %4222 = vmatprep.mubr.f32.mxu0 %v2689
        %4223 = vmatmul.mubr.f32.gmra.mrb[0].mxu0 %v2688
        %v4224 = vpop.f32.mrb[0].mxu0
        %v4225 = vadd.f32 0.0, %v4224
        %v4226 = vpop.f32.mrb[0].mxu0
        %v4227 = vadd.f32 0.0, %v4226
        %4228 = vdwg.mxu0
        %4229 = vmatprep.subr.mxu0 %v3227
        %4230 = vmatpush1.msra.mxu0 %v3226
        %4231 = vmatprep.subr.mxu0 %v3243
        %4232 = vmatpush1.msra.mxu0 %v3242
        %4233 = vmatprep.subr.mxu0 %v3259
        %4234 = vmatpush1.msra.mxu0 %v3258
        %4235 = vmatprep.subr.mxu0 %v3275
        %4236 = vmatpush1.msra.mxu0 %v3274
        %4237 = vmatprep.subr.mxu0 %v3291
        %4238 = vmatpush1.msra.mxu0 %v3290
        %4239 = vmatprep.subr.mxu0 %v3307
        %4240 = vmatpush1.msra.mxu0 %v3306
        %4241 = vmatprep.subr.mxu0 %v3323
        %4242 = vmatpush1.msra.mxu0 %v3322
        %4243 = vmatprep.subr.mxu0 %v3339
        %4244 = vmatpush1.msra.mxu0 %v3338
        %4245 = vmatprep.subr.mxu0 %v3355
        %4246 = vmatpush1.msra.mxu0 %v3354
        %4247 = vmatprep.subr.mxu0 %v3371
        %4248 = vmatpush1.msra.mxu0 %v3370
        %4249 = vmatprep.subr.mxu0 %v3387
        %4250 = vmatpush1.msra.mxu0 %v3386
        %4251 = vmatprep.subr.mxu0 %v3403
        %4252 = vmatpush1.msra.mxu0 %v3402
        %4253 = vmatprep.subr.mxu0 %v3419
        %4254 = vmatpush1.msra.mxu0 %v3418
        %4255 = vmatprep.subr.mxu0 %v3435
        %4256 = vmatpush1.msra.mxu0 %v3434
        %4257 = vmatprep.subr.mxu0 %v3451
        %4258 = vmatpush1.msra.mxu0 %v3450
        %4259 = vmatprep.subr.mxu0 %v3467
        %4260 = vmatpush1.msra.mxu0 %v3466
        %4261 = vmatprep.subr.mxu0 %v3483
        %4262 = vmatpush1.msra.mxu0 %v3482
        %4263 = vmatprep.subr.mxu0 %v3499
        %4264 = vmatpush1.msra.mxu0 %v3498
        %4265 = vmatprep.subr.mxu0 %v3515
        %4266 = vmatpush1.msra.mxu0 %v3514
        %4267 = vmatprep.subr.mxu0 %v3531
        %4268 = vmatpush1.msra.mxu0 %v3530
        %4269 = vmatprep.subr.mxu0 %v3547
        %4270 = vmatpush1.msra.mxu0 %v3546
        %4271 = vmatprep.subr.mxu0 %v3563
        %4272 = vmatpush1.msra.mxu0 %v3562
        %4273 = vmatprep.subr.mxu0 %v3579
        %4274 = vmatpush1.msra.mxu0 %v3578
        %4275 = vmatprep.subr.mxu0 %v3595
        %4276 = vmatpush1.msra.mxu0 %v3594
        %4277 = vmatprep.subr.mxu0 %v3611
        %4278 = vmatpush1.msra.mxu0 %v3610
        %4279 = vmatprep.subr.mxu0 %v3627
        %4280 = vmatpush1.msra.mxu0 %v3626
        %4281 = vmatprep.subr.mxu0 %v3643
        %4282 = vmatpush1.msra.mxu0 %v3642
        %4283 = vmatprep.subr.mxu0 %v3659
        %4284 = vmatpush1.msra.mxu0 %v3658
        %4285 = vmatprep.subr.mxu0 %v3675
        %4286 = vmatpush1.msra.mxu0 %v3674
        %4287 = vmatprep.subr.mxu0 %v3691
        %4288 = vmatpush1.msra.mxu0 %v3690
        %4289 = vmatprep.subr.mxu0 %v3707
        %4290 = vmatpush1.msra.mxu0 %v3706
        %4291 = vmatprep.subr.mxu0 %v3723
        %4292 = vmatpush1.msra.mxu0 %v3722
        %4293 = vmatprep.mubr.f32.mxu0 %v2691
        %4294 = vmatmul.mubr.f32.gmra.mrb[0].mxu0 %v2690
        %v4295 = vpop.f32.mrb[0].mxu0
        %v4296 = vadd.f32 %v4225, %v4295
        %v4297 = vpop.f32.mrb[0].mxu0
        %v4298 = vadd.f32 %v4227, %v4297
        %4299 = vdwg.mxu0
        %4300 = vmatprep.subr.mxu0 %v2717
        %4301 = vmatpush1.msra.mxu0 %v2716
        %4302 = vmatprep.subr.mxu0 %v2733
        %4303 = vmatpush1.msra.mxu0 %v2732
        %4304 = vmatprep.subr.mxu0 %v2749
        %4305 = vmatpush1.msra.mxu0 %v2748
        %4306 = vmatprep.subr.mxu0 %v2765
        %4307 = vmatpush1.msra.mxu0 %v2764
        %4308 = vmatprep.subr.mxu0 %v2781
        %4309 = vmatpush1.msra.mxu0 %v2780
        %4310 = vmatprep.subr.mxu0 %v2797
        %4311 = vmatpush1.msra.mxu0 %v2796
        %4312 = vmatprep.subr.mxu0 %v2813
        %4313 = vmatpush1.msra.mxu0 %v2812
        %4314 = vmatprep.subr.mxu0 %v2829
        %4315 = vmatpush1.msra.mxu0 %v2828
        %4316 = vmatprep.subr.mxu0 %v2845
        %4317 = vmatpush1.msra.mxu0 %v2844
        %4318 = vmatprep.subr.mxu0 %v2861
        %4319 = vmatpush1.msra.mxu0 %v2860
        %4320 = vmatprep.subr.mxu0 %v2877
        %4321 = vmatpush1.msra.mxu0 %v2876
        %4322 = vmatprep.subr.mxu0 %v2893
        %4323 = vmatpush1.msra.mxu0 %v2892
        %4324 = vmatprep.subr.mxu0 %v2909
        %4325 = vmatpush1.msra.mxu0 %v2908
        %4326 = vmatprep.subr.mxu0 %v2925
        %4327 = vmatpush1.msra.mxu0 %v2924
        %4328 = vmatprep.subr.mxu0 %v2941
        %4329 = vmatpush1.msra.mxu0 %v2940
        %4330 = vmatprep.subr.mxu0 %v2957
        %4331 = vmatpush1.msra.mxu0 %v2956
        %4332 = vmatprep.subr.mxu0 %v2973
        %4333 = vmatpush1.msra.mxu0 %v2972
        %4334 = vmatprep.subr.mxu0 %v2989
        %4335 = vmatpush1.msra.mxu0 %v2988
        %4336 = vmatprep.subr.mxu0 %v3005
        %4337 = vmatpush1.msra.mxu0 %v3004
        %4338 = vmatprep.subr.mxu0 %v3021
        %4339 = vmatpush1.msra.mxu0 %v3020
        %4340 = vmatprep.subr.mxu0 %v3037
        %4341 = vmatpush1.msra.mxu0 %v3036
        %4342 = vmatprep.subr.mxu0 %v3053
        %4343 = vmatpush1.msra.mxu0 %v3052
        %4344 = vmatprep.subr.mxu0 %v3069
        %4345 = vmatpush1.msra.mxu0 %v3068
        %4346 = vmatprep.subr.mxu0 %v3085
        %4347 = vmatpush1.msra.mxu0 %v3084
        %4348 = vmatprep.subr.mxu0 %v3101
        %4349 = vmatpush1.msra.mxu0 %v3100
        %4350 = vmatprep.subr.mxu0 %v3117
        %4351 = vmatpush1.msra.mxu0 %v3116
        %4352 = vmatprep.subr.mxu0 %v3133
        %4353 = vmatpush1.msra.mxu0 %v3132
        %4354 = vmatprep.subr.mxu0 %v3149
        %4355 = vmatpush1.msra.mxu0 %v3148
        %4356 = vmatprep.subr.mxu0 %v3165
        %4357 = vmatpush1.msra.mxu0 %v3164
        %4358 = vmatprep.subr.mxu0 %v3181
        %4359 = vmatpush1.msra.mxu0 %v3180
        %4360 = vmatprep.subr.mxu0 %v3197
        %4361 = vmatpush1.msra.mxu0 %v3196
        %4362 = vmatprep.subr.mxu0 %v3213
        %4363 = vmatpush1.msra.mxu0 %v3212
        %4364 = vmatprep.mubr.f32.mxu0 %v2689
        %4365 = vmatmul.mubr.f32.gmra.mrb[0].mxu0 %v2688
        %v4366 = vpop.f32.mrb[0].mxu0
        %v4367 = vadd.f32 0.0, %v4366
        %v4368 = vpop.f32.mrb[0].mxu0
        %v4369 = vadd.f32 0.0, %v4368
        %4370 = vdwg.mxu0
        %4371 = vmatprep.subr.mxu0 %v3229
        %4372 = vmatpush1.msra.mxu0 %v3228
        %4373 = vmatprep.subr.mxu0 %v3245
        %4374 = vmatpush1.msra.mxu0 %v3244
        %4375 = vmatprep.subr.mxu0 %v3261
        %4376 = vmatpush1.msra.mxu0 %v3260
        %4377 = vmatprep.subr.mxu0 %v3277
        %4378 = vmatpush1.msra.mxu0 %v3276
        %4379 = vmatprep.subr.mxu0 %v3293
        %4380 = vmatpush1.msra.mxu0 %v3292
        %4381 = vmatprep.subr.mxu0 %v3309
        %4382 = vmatpush1.msra.mxu0 %v3308
        %4383 = vmatprep.subr.mxu0 %v3325
        %4384 = vmatpush1.msra.mxu0 %v3324
        %4385 = vmatprep.subr.mxu0 %v3341
        %4386 = vmatpush1.msra.mxu0 %v3340
        %4387 = vmatprep.subr.mxu0 %v3357
        %4388 = vmatpush1.msra.mxu0 %v3356
        %4389 = vmatprep.subr.mxu0 %v3373
        %4390 = vmatpush1.msra.mxu0 %v3372
        %4391 = vmatprep.subr.mxu0 %v3389
        %4392 = vmatpush1.msra.mxu0 %v3388
        %4393 = vmatprep.subr.mxu0 %v3405
        %4394 = vmatpush1.msra.mxu0 %v3404
        %4395 = vmatprep.subr.mxu0 %v3421
        %4396 = vmatpush1.msra.mxu0 %v3420
        %4397 = vmatprep.subr.mxu0 %v3437
        %4398 = vmatpush1.msra.mxu0 %v3436
        %4399 = vmatprep.subr.mxu0 %v3453
        %4400 = vmatpush1.msra.mxu0 %v3452
        %4401 = vmatprep.subr.mxu0 %v3469
        %4402 = vmatpush1.msra.mxu0 %v3468
        %4403 = vmatprep.subr.mxu0 %v3485
        %4404 = vmatpush1.msra.mxu0 %v3484
        %4405 = vmatprep.subr.mxu0 %v3501
        %4406 = vmatpush1.msra.mxu0 %v3500
        %4407 = vmatprep.subr.mxu0 %v3517
        %4408 = vmatpush1.msra.mxu0 %v3516
        %4409 = vmatprep.subr.mxu0 %v3533
        %4410 = vmatpush1.msra.mxu0 %v3532
        %4411 = vmatprep.subr.mxu0 %v3549
        %4412 = vmatpush1.msra.mxu0 %v3548
        %4413 = vmatprep.subr.mxu0 %v3565
        %4414 = vmatpush1.msra.mxu0 %v3564
        %4415 = vmatprep.subr.mxu0 %v3581
        %4416 = vmatpush1.msra.mxu0 %v3580
        %4417 = vmatprep.subr.mxu0 %v3597
        %4418 = vmatpush1.msra.mxu0 %v3596
        %4419 = vmatprep.subr.mxu0 %v3613
        %4420 = vmatpush1.msra.mxu0 %v3612
        %4421 = vmatprep.subr.mxu0 %v3629
        %4422 = vmatpush1.msra.mxu0 %v3628
        %4423 = vmatprep.subr.mxu0 %v3645
        %4424 = vmatpush1.msra.mxu0 %v3644
        %4425 = vmatprep.subr.mxu0 %v3661
        %4426 = vmatpush1.msra.mxu0 %v3660
        %4427 = vmatprep.subr.mxu0 %v3677
        %4428 = vmatpush1.msra.mxu0 %v3676
        %4429 = vmatprep.subr.mxu0 %v3693
        %4430 = vmatpush1.msra.mxu0 %v3692
        %4431 = vmatprep.subr.mxu0 %v3709
        %4432 = vmatpush1.msra.mxu0 %v3708
        %4433 = vmatprep.subr.mxu0 %v3725
        %4434 = vmatpush1.msra.mxu0 %v3724
        %4435 = vmatprep.mubr.f32.mxu0 %v2691
        %4436 = vmatmul.mubr.f32.gmra.mrb[0].mxu0 %v2690
        %v4437 = vpop.f32.mrb[0].mxu0
        %v4438 = vadd.f32 %v4367, %v4437
        %v4439 = vpop.f32.mrb[0].mxu0
        %v4440 = vadd.f32 %v4369, %v4439
        %4441 = vdwg.mxu0
        %4442 = vmatprep.subr.mxu0 %v2719
        %4443 = vmatpush1.msra.mxu0 %v2718
        %4444 = vmatprep.subr.mxu0 %v2735
        %4445 = vmatpush1.msra.mxu0 %v2734
        %4446 = vmatprep.subr.mxu0 %v2751
        %4447 = vmatpush1.msra.mxu0 %v2750
        %4448 = vmatprep.subr.mxu0 %v2767
        %4449 = vmatpush1.msra.mxu0 %v2766
        %4450 = vmatprep.subr.mxu0 %v2783
        %4451 = vmatpush1.msra.mxu0 %v2782
        %4452 = vmatprep.subr.mxu0 %v2799
        %4453 = vmatpush1.msra.mxu0 %v2798
        %4454 = vmatprep.subr.mxu0 %v2815
        %4455 = vmatpush1.msra.mxu0 %v2814
        %4456 = vmatprep.subr.mxu0 %v2831
        %4457 = vmatpush1.msra.mxu0 %v2830
        %4458 = vmatprep.subr.mxu0 %v2847
        %4459 = vmatpush1.msra.mxu0 %v2846
        %4460 = vmatprep.subr.mxu0 %v2863
        %4461 = vmatpush1.msra.mxu0 %v2862
        %4462 = vmatprep.subr.mxu0 %v2879
        %4463 = vmatpush1.msra.mxu0 %v2878
        %4464 = vmatprep.subr.mxu0 %v2895
        %4465 = vmatpush1.msra.mxu0 %v2894
        %4466 = vmatprep.subr.mxu0 %v2911
        %4467 = vmatpush1.msra.mxu0 %v2910
        %4468 = vmatprep.subr.mxu0 %v2927
        %4469 = vmatpush1.msra.mxu0 %v2926
        %4470 = vmatprep.subr.mxu0 %v2943
        %4471 = vmatpush1.msra.mxu0 %v2942
        %4472 = vmatprep.subr.mxu0 %v2959
        %4473 = vmatpush1.msra.mxu0 %v2958
        %4474 = vmatprep.subr.mxu0 %v2975
        %4475 = vmatpush1.msra.mxu0 %v2974
        %4476 = vmatprep.subr.mxu0 %v2991
        %4477 = vmatpush1.msra.mxu0 %v2990
        %4478 = vmatprep.subr.mxu0 %v3007
        %4479 = vmatpush1.msra.mxu0 %v3006
        %4480 = vmatprep.subr.mxu0 %v3023
        %4481 = vmatpush1.msra.mxu0 %v3022
        %4482 = vmatprep.subr.mxu0 %v3039
        %4483 = vmatpush1.msra.mxu0 %v3038
        %4484 = vmatprep.subr.mxu0 %v3055
        %4485 = vmatpush1.msra.mxu0 %v3054
        %4486 = vmatprep.subr.mxu0 %v3071
        %4487 = vmatpush1.msra.mxu0 %v3070
        %4488 = vmatprep.subr.mxu0 %v3087
        %4489 = vmatpush1.msra.mxu0 %v3086
        %4490 = vmatprep.subr.mxu0 %v3103
        %4491 = vmatpush1.msra.mxu0 %v3102
        %4492 = vmatprep.subr.mxu0 %v3119
        %4493 = vmatpush1.msra.mxu0 %v3118
        %4494 = vmatprep.subr.mxu0 %v3135
        %4495 = vmatpush1.msra.mxu0 %v3134
        %4496 = vmatprep.subr.mxu0 %v3151
        %4497 = vmatpush1.msra.mxu0 %v3150
        %4498 = vmatprep.subr.mxu0 %v3167
        %4499 = vmatpush1.msra.mxu0 %v3166
        %4500 = vmatprep.subr.mxu0 %v3183
        %4501 = vmatpush1.msra.mxu0 %v3182
        %4502 = vmatprep.subr.mxu0 %v3199
        %4503 = vmatpush1.msra.mxu0 %v3198
        %4504 = vmatprep.subr.mxu0 %v3215
        %4505 = vmatpush1.msra.mxu0 %v3214
        %4506 = vmatprep.mubr.f32.mxu0 %v2689
        %4507 = vmatmul.mubr.f32.gmra.mrb[0].mxu0 %v2688
        %v4508 = vpop.f32.mrb[0].mxu0
        %v4509 = vadd.f32 0.0, %v4508
        %v4510 = vpop.f32.mrb[0].mxu0
        %v4511 = vadd.f32 0.0, %v4510
        %4512 = vdwg.mxu0
        %4513 = vmatprep.subr.mxu0 %v3231
        %4514 = vmatpush1.msra.mxu0 %v3230
        %4515 = vmatprep.subr.mxu0 %v3247
        %4516 = vmatpush1.msra.mxu0 %v3246
        %4517 = vmatprep.subr.mxu0 %v3263
        %4518 = vmatpush1.msra.mxu0 %v3262
        %4519 = vmatprep.subr.mxu0 %v3279
        %4520 = vmatpush1.msra.mxu0 %v3278
        %4521 = vmatprep.subr.mxu0 %v3295
        %4522 = vmatpush1.msra.mxu0 %v3294
        %4523 = vmatprep.subr.mxu0 %v3311
        %4524 = vmatpush1.msra.mxu0 %v3310
        %4525 = vmatprep.subr.mxu0 %v3327
        %4526 = vmatpush1.msra.mxu0 %v3326
        %4527 = vmatprep.subr.mxu0 %v3343
        %4528 = vmatpush1.msra.mxu0 %v3342
        %4529 = vmatprep.subr.mxu0 %v3359
        %4530 = vmatpush1.msra.mxu0 %v3358
        %4531 = vmatprep.subr.mxu0 %v3375
        %4532 = vmatpush1.msra.mxu0 %v3374
        %4533 = vmatprep.subr.mxu0 %v3391
        %4534 = vmatpush1.msra.mxu0 %v3390
        %4535 = vmatprep.subr.mxu0 %v3407
        %4536 = vmatpush1.msra.mxu0 %v3406
        %4537 = vmatprep.subr.mxu0 %v3423
        %4538 = vmatpush1.msra.mxu0 %v3422
        %4539 = vmatprep.subr.mxu0 %v3439
        %4540 = vmatpush1.msra.mxu0 %v3438
        %4541 = vmatprep.subr.mxu0 %v3455
        %4542 = vmatpush1.msra.mxu0 %v3454
        %4543 = vmatprep.subr.mxu0 %v3471
        %4544 = vmatpush1.msra.mxu0 %v3470
        %4545 = vmatprep.subr.mxu0 %v3487
        %4546 = vmatpush1.msra.mxu0 %v3486
        %4547 = vmatprep.subr.mxu0 %v3503
        %4548 = vmatpush1.msra.mxu0 %v3502
        %4549 = vmatprep.subr.mxu0 %v3519
        %4550 = vmatpush1.msra.mxu0 %v3518
        %4551 = vmatprep.subr.mxu0 %v3535
        %4552 = vmatpush1.msra.mxu0 %v3534
        %4553 = vmatprep.subr.mxu0 %v3551
        %4554 = vmatpush1.msra.mxu0 %v3550
        %4555 = vmatprep.subr.mxu0 %v3567
        %4556 = vmatpush1.msra.mxu0 %v3566
        %4557 = vmatprep.subr.mxu0 %v3583
        %4558 = vmatpush1.msra.mxu0 %v3582
        %4559 = vmatprep.subr.mxu0 %v3599
        %4560 = vmatpush1.msra.mxu0 %v3598
        %4561 = vmatprep.subr.mxu0 %v3615
        %4562 = vmatpush1.msra.mxu0 %v3614
        %4563 = vmatprep.subr.mxu0 %v3631
        %4564 = vmatpush1.msra.mxu0 %v3630
        %4565 = vmatprep.subr.mxu0 %v3647
        %4566 = vmatpush1.msra.mxu0 %v3646
        %4567 = vmatprep.subr.mxu0 %v3663
        %4568 = vmatpush1.msra.mxu0 %v3662
        %4569 = vmatprep.subr.mxu0 %v3679
        %4570 = vmatpush1.msra.mxu0 %v3678
        %4571 = vmatprep.subr.mxu0 %v3695
        %4572 = vmatpush1.msra.mxu0 %v3694
        %4573 = vmatprep.subr.mxu0 %v3711
        %4574 = vmatpush1.msra.mxu0 %v3710
        %4575 = vmatprep.subr.mxu0 %v3727
        %4576 = vmatpush1.msra.mxu0 %v3726
        %4577 = vmatprep.mubr.f32.mxu0 %v2691
        %4578 = vmatmul.mubr.f32.gmra.mrb[0].mxu0 %v2690
        %v4579 = vpop.f32.mrb[0].mxu0
        %v4580 = vadd.f32 %v4509, %v4579
        %v4581 = vpop.f32.mrb[0].mxu0
        %v4582 = vadd.f32 %v4511, %v4581
        %4583 = vdwg.mxu0
        %4584 = vmatprep.subr.mxu0 %v2721
        %4585 = vmatpush1.msra.mxu0 %v2720
        %4586 = vmatprep.subr.mxu0 %v2737
        %4587 = vmatpush1.msra.mxu0 %v2736
        %4588 = vmatprep.subr.mxu0 %v2753
        %4589 = vmatpush1.msra.mxu0 %v2752
        %4590 = vmatprep.subr.mxu0 %v2769
        %4591 = vmatpush1.msra.mxu0 %v2768
        %4592 = vmatprep.subr.mxu0 %v2785
        %4593 = vmatpush1.msra.mxu0 %v2784
        %4594 = vmatprep.subr.mxu0 %v2801
        %4595 = vmatpush1.msra.mxu0 %v2800
        %4596 = vmatprep.subr.mxu0 %v2817
        %4597 = vmatpush1.msra.mxu0 %v2816
        %4598 = vmatprep.subr.mxu0 %v2833
        %4599 = vmatpush1.msra.mxu0 %v2832
        %4600 = vmatprep.subr.mxu0 %v2849
        %4601 = vmatpush1.msra.mxu0 %v2848
        %4602 = vmatprep.subr.mxu0 %v2865
        %4603 = vmatpush1.msra.mxu0 %v2864
        %4604 = vmatprep.subr.mxu0 %v2881
        %4605 = vmatpush1.msra.mxu0 %v2880
        %4606 = vmatprep.subr.mxu0 %v2897
        %4607 = vmatpush1.msra.mxu0 %v2896
        %4608 = vmatprep.subr.mxu0 %v2913
        %4609 = vmatpush1.msra.mxu0 %v2912
        %4610 = vmatprep.subr.mxu0 %v2929
        %4611 = vmatpush1.msra.mxu0 %v2928
        %4612 = vmatprep.subr.mxu0 %v2945
        %4613 = vmatpush1.msra.mxu0 %v2944
        %4614 = vmatprep.subr.mxu0 %v2961
        %4615 = vmatpush1.msra.mxu0 %v2960
        %4616 = vmatprep.subr.mxu0 %v2977
        %4617 = vmatpush1.msra.mxu0 %v2976
        %4618 = vmatprep.subr.mxu0 %v2993
        %4619 = vmatpush1.msra.mxu0 %v2992
        %4620 = vmatprep.subr.mxu0 %v3009
        %4621 = vmatpush1.msra.mxu0 %v3008
        %4622 = vmatprep.subr.mxu0 %v3025
        %4623 = vmatpush1.msra.mxu0 %v3024
        %4624 = vmatprep.subr.mxu0 %v3041
        %4625 = vmatpush1.msra.mxu0 %v3040
        %4626 = vmatprep.subr.mxu0 %v3057
        %4627 = vmatpush1.msra.mxu0 %v3056
        %4628 = vmatprep.subr.mxu0 %v3073
        %4629 = vmatpush1.msra.mxu0 %v3072
        %4630 = vmatprep.subr.mxu0 %v3089
        %4631 = vmatpush1.msra.mxu0 %v3088
        %4632 = vmatprep.subr.mxu0 %v3105
        %4633 = vmatpush1.msra.mxu0 %v3104
        %4634 = vmatprep.subr.mxu0 %v3121
        %4635 = vmatpush1.msra.mxu0 %v3120
        %4636 = vmatprep.subr.mxu0 %v3137
        %4637 = vmatpush1.msra.mxu0 %v3136
        %4638 = vmatprep.subr.mxu0 %v3153
        %4639 = vmatpush1.msra.mxu0 %v3152
        %4640 = vmatprep.subr.mxu0 %v3169
        %4641 = vmatpush1.msra.mxu0 %v3168
        %4642 = vmatprep.subr.mxu0 %v3185
        %4643 = vmatpush1.msra.mxu0 %v3184
        %4644 = vmatprep.subr.mxu0 %v3201
        %4645 = vmatpush1.msra.mxu0 %v3200
        %4646 = vmatprep.subr.mxu0 %v3217
        %4647 = vmatpush1.msra.mxu0 %v3216
        %4648 = vmatprep.mubr.f32.mxu0 %v2689
        %4649 = vmatmul.mubr.f32.gmra.mrb[0].mxu0 %v2688
        %v4650 = vpop.f32.mrb[0].mxu0
        %v4651 = vadd.f32 0.0, %v4650
        %v4652 = vpop.f32.mrb[0].mxu0
        %v4653 = vadd.f32 0.0, %v4652
        %4654 = vdwg.mxu0
        %4655 = vmatprep.subr.mxu0 %v3233
        %4656 = vmatpush1.msra.mxu0 %v3232
        %4657 = vmatprep.subr.mxu0 %v3249
        %4658 = vmatpush1.msra.mxu0 %v3248
        %4659 = vmatprep.subr.mxu0 %v3265
        %4660 = vmatpush1.msra.mxu0 %v3264
        %4661 = vmatprep.subr.mxu0 %v3281
        %4662 = vmatpush1.msra.mxu0 %v3280
        %4663 = vmatprep.subr.mxu0 %v3297
        %4664 = vmatpush1.msra.mxu0 %v3296
        %4665 = vmatprep.subr.mxu0 %v3313
        %4666 = vmatpush1.msra.mxu0 %v3312
        %4667 = vmatprep.subr.mxu0 %v3329
        %4668 = vmatpush1.msra.mxu0 %v3328
        %4669 = vmatprep.subr.mxu0 %v3345
        %4670 = vmatpush1.msra.mxu0 %v3344
        %4671 = vmatprep.subr.mxu0 %v3361
        %4672 = vmatpush1.msra.mxu0 %v3360
        %4673 = vmatprep.subr.mxu0 %v3377
        %4674 = vmatpush1.msra.mxu0 %v3376
        %4675 = vmatprep.subr.mxu0 %v3393
        %4676 = vmatpush1.msra.mxu0 %v3392
        %4677 = vmatprep.subr.mxu0 %v3409
        %4678 = vmatpush1.msra.mxu0 %v3408
        %4679 = vmatprep.subr.mxu0 %v3425
        %4680 = vmatpush1.msra.mxu0 %v3424
        %4681 = vmatprep.subr.mxu0 %v3441
        %4682 = vmatpush1.msra.mxu0 %v3440
        %4683 = vmatprep.subr.mxu0 %v3457
        %4684 = vmatpush1.msra.mxu0 %v3456
        %4685 = vmatprep.subr.mxu0 %v3473
        %4686 = vmatpush1.msra.mxu0 %v3472
        %4687 = vmatprep.subr.mxu0 %v3489
        %4688 = vmatpush1.msra.mxu0 %v3488
        %4689 = vmatprep.subr.mxu0 %v3505
        %4690 = vmatpush1.msra.mxu0 %v3504
        %4691 = vmatprep.subr.mxu0 %v3521
        %4692 = vmatpush1.msra.mxu0 %v3520
        %4693 = vmatprep.subr.mxu0 %v3537
        %4694 = vmatpush1.msra.mxu0 %v3536
        %4695 = vmatprep.subr.mxu0 %v3553
        %4696 = vmatpush1.msra.mxu0 %v3552
        %4697 = vmatprep.subr.mxu0 %v3569
        %4698 = vmatpush1.msra.mxu0 %v3568
        %4699 = vmatprep.subr.mxu0 %v3585
        %4700 = vmatpush1.msra.mxu0 %v3584
        %4701 = vmatprep.subr.mxu0 %v3601
        %4702 = vmatpush1.msra.mxu0 %v3600
        %4703 = vmatprep.subr.mxu0 %v3617
        %4704 = vmatpush1.msra.mxu0 %v3616
        %4705 = vmatprep.subr.mxu0 %v3633
        %4706 = vmatpush1.msra.mxu0 %v3632
        %4707 = vmatprep.subr.mxu0 %v3649
        %4708 = vmatpush1.msra.mxu0 %v3648
        %4709 = vmatprep.subr.mxu0 %v3665
        %4710 = vmatpush1.msra.mxu0 %v3664
        %4711 = vmatprep.subr.mxu0 %v3681
        %4712 = vmatpush1.msra.mxu0 %v3680
        %4713 = vmatprep.subr.mxu0 %v3697
        %4714 = vmatpush1.msra.mxu0 %v3696
        %4715 = vmatprep.subr.mxu0 %v3713
        %4716 = vmatpush1.msra.mxu0 %v3712
        %4717 = vmatprep.subr.mxu0 %v3729
        %4718 = vmatpush1.msra.mxu0 %v3728
        %4719 = vmatprep.mubr.f32.mxu0 %v2691
        %4720 = vmatmul.mubr.f32.gmra.mrb[0].mxu0 %v2690
        %v4721 = vpop.f32.mrb[0].mxu0
        %v4722 = vadd.f32 %v4651, %v4721
        %v4723 = vpop.f32.mrb[0].mxu0
        %v4724 = vadd.f32 %v4653, %v4723
        %4725 = vdwg.mxu0
        %4726 = vmatprep.subr.mxu0 %v2723
        %4727 = vmatpush1.msra.mxu0 %v2722
        %4728 = vmatprep.subr.mxu0 %v2739
        %4729 = vmatpush1.msra.mxu0 %v2738
        %4730 = vmatprep.subr.mxu0 %v2755
        %4731 = vmatpush1.msra.mxu0 %v2754
        %4732 = vmatprep.subr.mxu0 %v2771
        %4733 = vmatpush1.msra.mxu0 %v2770
        %4734 = vmatprep.subr.mxu0 %v2787
        %4735 = vmatpush1.msra.mxu0 %v2786
        %4736 = vmatprep.subr.mxu0 %v2803
        %4737 = vmatpush1.msra.mxu0 %v2802
        %4738 = vmatprep.subr.mxu0 %v2819
        %4739 = vmatpush1.msra.mxu0 %v2818
        %4740 = vmatprep.subr.mxu0 %v2835
        %4741 = vmatpush1.msra.mxu0 %v2834
        %4742 = vmatprep.subr.mxu0 %v2851
        %4743 = vmatpush1.msra.mxu0 %v2850
        %4744 = vmatprep.subr.mxu0 %v2867
        %4745 = vmatpush1.msra.mxu0 %v2866
        %4746 = vmatprep.subr.mxu0 %v2883
        %4747 = vmatpush1.msra.mxu0 %v2882
        %4748 = vmatprep.subr.mxu0 %v2899
        %4749 = vmatpush1.msra.mxu0 %v2898
        %4750 = vmatprep.subr.mxu0 %v2915
        %4751 = vmatpush1.msra.mxu0 %v2914
        %4752 = vmatprep.subr.mxu0 %v2931
        %4753 = vmatpush1.msra.mxu0 %v2930
        %4754 = vmatprep.subr.mxu0 %v2947
        %4755 = vmatpush1.msra.mxu0 %v2946
        %4756 = vmatprep.subr.mxu0 %v2963
        %4757 = vmatpush1.msra.mxu0 %v2962
        %4758 = vmatprep.subr.mxu0 %v2979
        %4759 = vmatpush1.msra.mxu0 %v2978
        %4760 = vmatprep.subr.mxu0 %v2995
        %4761 = vmatpush1.msra.mxu0 %v2994
        %4762 = vmatprep.subr.mxu0 %v3011
        %4763 = vmatpush1.msra.mxu0 %v3010
        %4764 = vmatprep.subr.mxu0 %v3027
        %4765 = vmatpush1.msra.mxu0 %v3026
        %4766 = vmatprep.subr.mxu0 %v3043
        %4767 = vmatpush1.msra.mxu0 %v3042
        %4768 = vmatprep.subr.mxu0 %v3059
        %4769 = vmatpush1.msra.mxu0 %v3058
        %4770 = vmatprep.subr.mxu0 %v3075
        %4771 = vmatpush1.msra.mxu0 %v3074
        %4772 = vmatprep.subr.mxu0 %v3091
        %4773 = vmatpush1.msra.mxu0 %v3090
        %4774 = vmatprep.subr.mxu0 %v3107
        %4775 = vmatpush1.msra.mxu0 %v3106
        %4776 = vmatprep.subr.mxu0 %v3123
        %4777 = vmatpush1.msra.mxu0 %v3122
        %4778 = vmatprep.subr.mxu0 %v3139
        %4779 = vmatpush1.msra.mxu0 %v3138
        %4780 = vmatprep.subr.mxu0 %v3155
        %4781 = vmatpush1.msra.mxu0 %v3154
        %4782 = vmatprep.subr.mxu0 %v3171
        %4783 = vmatpush1.msra.mxu0 %v3170
        %4784 = vmatprep.subr.mxu0 %v3187
        %4785 = vmatpush1.msra.mxu0 %v3186
        %4786 = vmatprep.subr.mxu0 %v3203
        %4787 = vmatpush1.msra.mxu0 %v3202
        %4788 = vmatprep.subr.mxu0 %v3219
        %4789 = vmatpush1.msra.mxu0 %v3218
        %4790 = vmatprep.mubr.f32.mxu0 %v2689
        %4791 = vmatmul.mubr.f32.gmra.mrb[0].mxu0 %v2688
        %v4792 = vpop.f32.mrb[0].mxu0
        %v4793 = vadd.f32 0.0, %v4792
        %v4794 = vpop.f32.mrb[0].mxu0
        %v4795 = vadd.f32 0.0, %v4794
        %4796 = vdwg.mxu0
        %4797 = vmatprep.subr.mxu0 %v3235
        %4798 = vmatpush1.msra.mxu0 %v3234
        %4799 = vmatprep.subr.mxu0 %v3251
        %4800 = vmatpush1.msra.mxu0 %v3250
        %4801 = vmatprep.subr.mxu0 %v3267
        %4802 = vmatpush1.msra.mxu0 %v3266
        %4803 = vmatprep.subr.mxu0 %v3283
        %4804 = vmatpush1.msra.mxu0 %v3282
        %4805 = vmatprep.subr.mxu0 %v3299
        %4806 = vmatpush1.msra.mxu0 %v3298
        %4807 = vmatprep.subr.mxu0 %v3315
        %4808 = vmatpush1.msra.mxu0 %v3314
        %4809 = vmatprep.subr.mxu0 %v3331
        %4810 = vmatpush1.msra.mxu0 %v3330
        %4811 = vmatprep.subr.mxu0 %v3347
        %4812 = vmatpush1.msra.mxu0 %v3346
        %4813 = vmatprep.subr.mxu0 %v3363
        %4814 = vmatpush1.msra.mxu0 %v3362
        %4815 = vmatprep.subr.mxu0 %v3379
        %4816 = vmatpush1.msra.mxu0 %v3378
        %4817 = vmatprep.subr.mxu0 %v3395
        %4818 = vmatpush1.msra.mxu0 %v3394
        %4819 = vmatprep.subr.mxu0 %v3411
        %4820 = vmatpush1.msra.mxu0 %v3410
        %4821 = vmatprep.subr.mxu0 %v3427
        %4822 = vmatpush1.msra.mxu0 %v3426
        %4823 = vmatprep.subr.mxu0 %v3443
        %4824 = vmatpush1.msra.mxu0 %v3442
        %4825 = vmatprep.subr.mxu0 %v3459
        %4826 = vmatpush1.msra.mxu0 %v3458
        %4827 = vmatprep.subr.mxu0 %v3475
        %4828 = vmatpush1.msra.mxu0 %v3474
        %4829 = vmatprep.subr.mxu0 %v3491
        %4830 = vmatpush1.msra.mxu0 %v3490
        %4831 = vmatprep.subr.mxu0 %v3507
        %4832 = vmatpush1.msra.mxu0 %v3506
        %4833 = vmatprep.subr.mxu0 %v3523
        %4834 = vmatpush1.msra.mxu0 %v3522
        %4835 = vmatprep.subr.mxu0 %v3539
        %4836 = vmatpush1.msra.mxu0 %v3538
        %4837 = vmatprep.subr.mxu0 %v3555
        %4838 = vmatpush1.msra.mxu0 %v3554
        %4839 = vmatprep.subr.mxu0 %v3571
        %4840 = vmatpush1.msra.mxu0 %v3570
        %4841 = vmatprep.subr.mxu0 %v3587
        %4842 = vmatpush1.msra.mxu0 %v3586
        %4843 = vmatprep.subr.mxu0 %v3603
        %4844 = vmatpush1.msra.mxu0 %v3602
        %4845 = vmatprep.subr.mxu0 %v3619
        %4846 = vmatpush1.msra.mxu0 %v3618
        %4847 = vmatprep.subr.mxu0 %v3635
        %4848 = vmatpush1.msra.mxu0 %v3634
        %4849 = vmatprep.subr.mxu0 %v3651
        %4850 = vmatpush1.msra.mxu0 %v3650
        %4851 = vmatprep.subr.mxu0 %v3667
        %4852 = vmatpush1.msra.mxu0 %v3666
        %4853 = vmatprep.subr.mxu0 %v3683
        %4854 = vmatpush1.msra.mxu0 %v3682
        %4855 = vmatprep.subr.mxu0 %v3699
        %4856 = vmatpush1.msra.mxu0 %v3698
        %4857 = vmatprep.subr.mxu0 %v3715
        %4858 = vmatpush1.msra.mxu0 %v3714
        %4859 = vmatprep.subr.mxu0 %v3731
        %4860 = vmatpush1.msra.mxu0 %v3730
        %4861 = vmatprep.mubr.f32.mxu0 %v2691
        %4862 = vmatmul.mubr.f32.gmra.mrb[0].mxu0 %v2690
        %v4863 = vpop.f32.mrb[0].mxu0
        %v4864 = vadd.f32 %v4793, %v4863
        %v4865 = vpop.f32.mrb[0].mxu0
        %v4866 = vadd.f32 %v4795, %v4865
        %4867 = vdwg.mxu0
        %v4868 = vadd.f32 %v2692, %v3870
        %v4869 = vadd.f32 %v2693, %v3872
        %v4870 = vadd.f32 %v2694, %v4012
        %v4871 = vadd.f32 %v2695, %v4014
        %v4872 = vadd.f32 %v2696, %v4154
        %v4873 = vadd.f32 %v2697, %v4156
        %v4874 = vadd.f32 %v2698, %v4296
        %v4875 = vadd.f32 %v2699, %v4298
        %v4876 = vadd.f32 %v2700, %v4438
        %v4877 = vadd.f32 %v2701, %v4440
        %v4878 = vadd.f32 %v2702, %v4580
        %v4879 = vadd.f32 %v2703, %v4582
        %v4880 = vadd.f32 %v2704, %v4722
        %v4881 = vadd.f32 %v2705, %v4724
        %v4882 = vadd.f32 %v2706, %v4864
        %v4883 = vadd.f32 %v2707, %v4866
        %4884 = vst [vmem:[%s325] sm:$0xff] %v4868
        %4885 = vst [vmem:[%s325 + $0x8] sm:$0xff] %v4869
        %4886 = vst [vmem:[%s325 + $0x10] sm:$0xff] %v4870
        %4887 = vst [vmem:[%s325 + $0x18] sm:$0xff] %v4871
        %4888 = vst [vmem:[%s325 + $0x20] sm:$0xff] %v4872
        %4889 = vst [vmem:[%s325 + $0x28] sm:$0xff] %v4873
        %4890 = vst [vmem:[%s325 + $0x30] sm:$0xff] %v4874
        %4891 = vst [vmem:[%s325 + $0x38] sm:$0xff] %v4875
        %4892 = vst [vmem:[%s325 + $0x40] sm:$0xff] %v4876
        %4893 = vst [vmem:[%s325 + $0x48] sm:$0xff] %v4877
        %4894 = vst [vmem:[%s325 + $0x50] sm:$0xff] %v4878
        %4895 = vst [vmem:[%s325 + $0x58] sm:$0xff] %v4879
        %4896 = vst [vmem:[%s325 + $0x60] sm:$0xff] %v4880
        %4897 = vst [vmem:[%s325 + $0x68] sm:$0xff] %v4881
        %4898 = vst [vmem:[%s325 + $0x70] sm:$0xff] %v4882
        %4899 = vst [vmem:[%s325 + $0x78] sm:$0xff] %v4883
        %p4900 = scmp.lt.s32.totalorder %s24, 0
        %s4901 = scalar_select %p4900, %s24, 0
        %s4902 = smul.addr %s4901, 16
        %s4903 = smul.addr %s4902, 8
        %s4904 = scalar_lea.vmem %s5, %s4903
        // Predicated region
        $region57: #{_net_forward_impl.1} parent=39 // pred_check
          %p4905 = pneg %p173
        $region58: #{_net_forward_impl.1} parent=39 // pred_check_branch
          %4907 = sbr.rel (%p4905) target = $region60
        $region59: #{_net_forward_impl.1} parent=39 // pred_region
          _
        $region60: #{_net_forward_impl.1} parent=39 // pred_fallthru
          _
        // Predicated region
        $region61: #{_net_forward_impl.1} parent=39 // pred_check
          %p4908 = pneg %p173
        $region62: #{_net_forward_impl.1} parent=39 // pred_check_branch
          %4910 = sbr.rel (%p4908) target = $region64
        $region63: #{_net_forward_impl.1} parent=39 // pred_region
          %p4911 = scmp.lt.s32.totalorder %s24, 0
          %s4912 = scalar_select %p4911, %s24, 0
          %s4913 = smul.addr %s4912, 16
          %s4914 = smul.addr %s4913, 8
          %s4915 = scalar_lea.vmem %s5, %s4914
        $region64: #{_net_forward_impl.1} parent=39 // pred_fallthru
          _
      $region40: #{_net_forward_impl.1} parent=5 // pred_fallthru
        _
      %p4916 = scmp.le.s32.totalorder 2, %s15
      // Predicated region
      $region65: #{_net_forward_impl.1} parent=5 // pred_check
        %p4917 = pneg %p4916
      $region66: #{_net_forward_impl.1} parent=5 // pred_check_branch
        %4919 = sbr.rel (%p4917) target = $region68
      $region67: #{_net_forward_impl.1} parent=5 // pred_region
        %s4920 = ssub.s32 %s15, 2
      $region68: #{_net_forward_impl.1} parent=5 // pred_fallthru
        _
    $region6: #{_net_forward_impl.1} parent=1 // loop_footer
      %s19 = sadd.s32 1, %s15
    $region7: #{_net_forward_impl.1} parent=1 // loop_footer_branch
      %14 = sbr.rel target = $region3
    $region8: #{_net_forward_impl.1} parent=1 // loop_exit
      _
    %4921 = vsyncpa [#allocation3], 1
    %s4922 = scalar_lea.sflag [#allocation3], 1
    %4923 = vsyncpa %s4922, 1
    %4924 = vsyncpa [#allocation5], 1
    %s4925 = scalar_lea.sflag [#allocation5], 1
    %4926 = vsyncpa %s4925, 1

</llo_original>
